<compile_context>
chip_gen: v7x
topology: tpu7x:2x2x1
jax: 0.10.0
libtpu: 0.0.40
codegen_flags: <defaults>
</compile_context>

<pallas_src>
import functools

import jax
import jax.numpy as jnp
from jax import lax
from jax.experimental import pallas as pl
from jax.experimental.pallas import tpu as pltpu

KSIZE = 7
PAD = KSIZE // 2


def _pick_rows_per_tile(H, W):
    """Rows per lane tile: row-aligned, ~512-1024 lanes, 128-aligned if possible."""
    HW = H * W
    if HW <= 1024:
        return H
    base = max(1, 512 // W)
    hi = max(base, min(H, 1024 // max(W, 1)))
    for r in range(base, hi + 1):
        if (r * W) % 128 == 0:
            return r
    return base


def _spatial_attention_kernel(wb_ref, x_ref, o_ref, pad_ref, att_ref, *,
                              H, W, CH, rows_per_tile, unroll):
    # wb_ref : SMEM (2*7*7 + 1,) f32  -- flattened conv weight followed by bias
    # x_ref  : VMEM (Bt, C, H*W)      -- lane-dense view of Bt batch elements
    # o_ref  : VMEM (Bt, C, H*W)
    # pad_ref: VMEM (2, H+2*PAD, WPAD) f32 -- zero-padded pooled maps (WPAD>=W+6)
    # att_ref: VMEM (1, H*W) f32           -- flattened attention map
    Bt, C, HW = x_ref.shape
    WPAD = pad_ref.shape[-1]
    nfull = C // CH
    rem = C - nfull * CH
    n_tiles = -(-H // rows_per_tile)
    use_roll = (W + 2 * PAD) <= 128 and WPAD == 128
    inv_c = 1.0 / C

    # Halo (and unused lanes) must be zero; the interior is rewritten for every
    # batch element below, so one zero-fill per grid step suffices. Re-zeroed
    # every step because the batch grid axis is "parallel" (an init-once
    # @pl.when(program_id==0) would be unsound under megacore sharding).
    pad_ref[...] = jnp.zeros_like(pad_ref)

    for b in range(Bt):
        # ---- fused channel max + mean, streamed over row-aligned lane tiles --
        for t in range(n_tiles):
            r0 = t * rows_per_tile
            nr = min(rows_per_tile, H - r0)
            lo = r0 * W
            tl = nr * W

            chunk0 = x_ref[b, 0:CH, lo:lo + tl]            # (CH, tl), x dtype
            mx_p = chunk0
            sm_p = chunk0.astype(jnp.float32)

            if nfull > 1:
                if nfull <= 8:
                    for i in range(1, nfull):
                        ci = x_ref[b, i * CH:(i + 1) * CH, lo:lo + tl]
                        mx_p = jnp.maximum(mx_p, ci)
                        sm_p = sm_p + ci.astype(jnp.float32)
                else:
                    def pool_body(i, carry):
                        mx_c, sm_c = carry
                        s = pl.multiple_of(i * CH, CH)
                        ci = x_ref[b, pl.ds(s, CH), lo:lo + tl]
                        return (jnp.maximum(mx_c, ci),
                                sm_c + ci.astype(jnp.float32))
                    mx_p, sm_p = lax.fori_loop(1, nfull, pool_body,
                                               (mx_p, sm_p), unroll=unroll)

            mx = jnp.max(mx_p, axis=0, keepdims=True).astype(jnp.float32)
            sm = jnp.sum(sm_p, axis=0, keepdims=True)
            if rem:
                tail = x_ref[b, nfull * CH:C, lo:lo + tl]
                mx = jnp.maximum(
                    mx, jnp.max(tail, axis=0, keepdims=True).astype(jnp.float32))
                sm = sm + jnp.sum(tail.astype(jnp.float32), axis=0, keepdims=True)
            avg = sm * inv_c

            # scatter the nr pooled rows into the zero-padded conv scratch
            for hh in range(nr):
                h = r0 + hh
                c0 = hh * W
                pad_ref[0, PAD + h:PAD + h + 1, PAD:PAD + W] = mx[:, c0:c0 + W]
                pad_ref[1, PAD + h:PAD + h + 1, PAD:PAD + W] = avg[:, c0:c0 + W]

        # ---- 7x7 "same" conv: 14 band loads, 98 taps via XLU lane rotations --
        accs = []
        for c in range(2):
            acc = None
            for dy in range(KSIZE):
                band = pad_ref[c, dy:dy + H, :]            # (H, WPAD) f32
                for dx in range(KSIZE):
                    w = wb_ref[c * KSIZE * KSIZE + dy * KSIZE + dx]
                    if use_roll:
                        # column j of src <- band[:, j + dx]; wrapped lanes land
                        # at columns >= 128 - dx >= W and are discarded below.
                        src = band if dx == 0 else pltpu.roll(
                            band, shift=WPAD - dx, axis=1)
                    else:
                        src = band[:, dx:dx + W]
                    tap = w * src
                    acc = tap if acc is None else acc + tap
            accs.append(acc)
        bias = wb_ref[2 * KSIZE * KSIZE]
        att_full = jax.nn.sigmoid(accs[0] + accs[1] + bias)   # (H, WPAD|W) f32

        # ---- flatten the attention map back to the lane-dense (1, HW) layout -
        for h in range(H):
            att_ref[0:1, h * W:(h + 1) * W] = att_full[h:h + 1, 0:W]

        # ---- rescale x: lane-tiled, C-chunked, lane-dense stores --------------
        for t in range(n_tiles):
            r0 = t * rows_per_tile
            nr = min(rows_per_tile, H - r0)
            lo = r0 * W
            tl = nr * W
            att_t = att_ref[0:1, lo:lo + tl].astype(o_ref.dtype)
            # hoisted broadcast (JAX does not CSE broadcast_in_dim in the loop)
            att_x = jnp.broadcast_to(att_t, (CH, tl))
            if nfull <= 8:
                for i in range(nfull):
                    s = i * CH
                    o_ref[b, s:s + CH, lo:lo + tl] = (
                        x_ref[b, s:s + CH, lo:lo + tl] * att_x
                    ).astype(o_ref.dtype)
            else:
                def scale_body(i, carry):
                    s = pl.multiple_of(i * CH, CH)
                    o_ref[b, pl.ds(s, CH), lo:lo + tl] = (
                        x_ref[b, pl.ds(s, CH), lo:lo + tl] * att_x
                    ).astype(o_ref.dtype)
                    return carry
                lax.fori_loop(0, nfull, scale_body, 0, unroll=unroll)
            if rem:
                s = nfull * CH
                o_ref[b, s:C, lo:lo + tl] = (
                    x_ref[b, s:C, lo:lo + tl] * att_x[:rem]
                ).astype(o_ref.dtype)


def spatial_attention(x, weight, bias):
    """x: (B, C, H, W); weight: (1, 2, 7, 7); bias: (1,)."""
    B, C, H, W = x.shape
    HW = H * W
    itemsize = jnp.dtype(x.dtype).itemsize

    x_flat = x.reshape(B, C, HW)                             # lane-dense view
    wb = jnp.concatenate(
        [weight.reshape(-1), bias.reshape(-1)]).astype(jnp.float32)

    # Dtype-aware channel-chunk height: 8 (f32) / 16 (bf16) / 32 (int8) sublanes.
    packing = max(1, 4 // itemsize)
    CH = int(min(C, 8 * packing))
    rows_per_tile = _pick_rows_per_tile(H, W)

    # Fold multiple batch elements per grid step when blocks are tiny, keeping
    # >= 2 grid steps so v7x's two TensorCores both get work.
    block_bytes = C * HW * itemsize
    Bt = 1
    if B > 2 and block_bytes < (1 << 20):
        max_fold = max(1, (1 << 20) // block_bytes)
        for d in range(1, B + 1):
            if B % d == 0 and d <= max_fold and B // d >= 2:
                Bt = d
    grid = (B // Bt,)

    # 128-lane padded conv scratch enables the roll-based tap path.
    WPAD = 128 if (W + 2 * PAD) <= 128 else (W + 2 * PAD)

    kernel = functools.partial(_spatial_attention_kernel, H=H, W=W, CH=CH,
                               rows_per_tile=rows_per_tile, unroll=4)

    grid_spec = pltpu.PrefetchScalarGridSpec(
        num_scalar_prefetch=0,
        grid=grid,
        in_specs=[
            pl.BlockSpec(memory_space=pltpu.MemorySpace.SMEM),    # weights+bias
            pl.BlockSpec((Bt, C, HW), lambda g: (g, 0, 0)),       # x, lane-dense
        ],
        out_specs=pl.BlockSpec((Bt, C, HW), lambda g: (g, 0, 0)),
        scratch_shapes=[
            pltpu.VMEM((2, H + 2 * PAD, WPAD), jnp.float32),      # padded pools
            pltpu.VMEM((1, HW), jnp.float32),                     # flat attention
        ],
    )

    # VMEM budget: double-buffered in+out blocks + scratch + headroom, clamped
    # to the physical per-core capacity (64 MiB on v7x, 128 MiB on v5e/v6e).
    scratch_bytes = (2 * (H + 2 * PAD) * WPAD + HW) * 4
    vmem_needed = 4 * Bt * block_bytes + scratch_bytes + (2 << 20)
    try:
        phys = int(getattr(pltpu.get_tpu_info(), "vmem_capacity_bytes", 64 << 20))
    except Exception:
        phys = 64 << 20
    vmem_limit = int(min(max(vmem_needed, 32 << 20), phys))

    cost = pl.CostEstimate(
        flops=int(B * HW * (3 * C + 2 * 2 * KSIZE * KSIZE + 1)),
        transcendentals=int(B * HW),
        bytes_accessed=int(2 * B * C * HW * itemsize),
    )

    out_flat = pl.pallas_call(
        kernel,
        out_shape=jax.ShapeDtypeStruct((B, C, HW), x.dtype),
        grid_spec=grid_spec,
        compiler_params=pltpu.CompilerParams(
            dimension_semantics=("parallel",),
            vmem_limit_bytes=vmem_limit,
        ),
        cost_estimate=cost,
    )(wb, x_flat)
    return out_flat.reshape(B, C, H, W)


def spatial_attention_reference(x, weight, bias):
    xf = x.astype(jnp.float32)
    max_p = jnp.max(xf, axis=1, keepdims=True)
    avg_p = jnp.mean(xf, axis=1, keepdims=True)
    pooled = jnp.concatenate([max_p, avg_p], axis=1)          # (B, 2, H, W)
    att = jax.lax.conv_general_dilated(
        pooled, weight, window_strides=(1, 1), padding="SAME",
        dimension_numbers=("NCHW", "OIHW", "NCHW"),
    ) + bias.reshape(1, 1, 1, 1)
    att = jax.nn.sigmoid(att)
    return xf * att


if __name__ == "__main__":
    key = jax.random.PRNGKey(0)
    kx, kw, kb = jax.random.split(key, 3)

    # Deterministic synthetic parameters (nn.Conv2d(2, 1, 7, padding=3) shapes).
    weight = jax.random.normal(kw, (1, 2, KSIZE, KSIZE), dtype=jnp.float32) * 0.1
    bias = jax.random.normal(kb, (1,), dtype=jnp.float32) * 0.1

    # Primary small test (f32), matches the module's expected tiny shapes.
    B, C, H, W = 2, 4, 16, 16
    x = jax.random.normal(kx, (B, C, H, W), dtype=jnp.float32)
    out = jax.block_until_ready(spatial_attention(x, weight, bias))
    ref = spatial_attention_reference(x, weight, bias)
    assert jnp.allclose(out, ref, atol=1e-5, rtol=1e-5), \
        float(jnp.max(jnp.abs(out - ref)))

    # Medium test: exercises the lane-tiled streaming + fori_loop C-chunk paths.
    x2 = jax.random.normal(kx, (2, 96, 40, 40), dtype=jnp.float32)
    out2 = jax.block_until_ready(spatial_attention(x2, weight, bias))
    ref2 = spatial_attention_reference(x2, weight, bias)
    assert jnp.allclose(out2, ref2, atol=1e-4, rtol=1e-4), \
        float(jnp.max(jnp.abs(out2 - ref2)))

    # bf16 test: packed (CH=16) channel chunks and bf16 rescale/stores.
    x3 = jax.random.normal(kx, (2, 32, 16, 16), dtype=jnp.float32).astype(jnp.bfloat16)
    out3 = jax.block_until_ready(spatial_attention(x3, weight, bias))
    ref3 = spatial_attention_reference(x3, weight, bias)
    assert jnp.allclose(out3.astype(jnp.float32), ref3, atol=6e-2, rtol=6e-2), \
        float(jnp.max(jnp.abs(out3.astype(jnp.float32) - ref3)))

    print("KERNEL_OK")
</pallas_src>

<mosaic_0001>
module attributes {stable_mosaic.version = 11 : i64} {
  func.func @_spatial_attention_kernel(%arg0: i32, %arg1: memref<99xf32, #tpu.memory_space<smem>>, %arg2: memref<1x4x256xf32, #tpu.memory_space<vmem>>, %arg3: memref<1x4x256xf32, #tpu.memory_space<vmem>>, %arg4: memref<2x22x128xf32, #tpu.memory_space<vmem>>, %arg5: memref<1x256xf32, #tpu.memory_space<vmem>>) attributes {dimension_semantics = [#tpu.dimension_semantics<parallel>], iteration_bounds = array<i64: 2>, scalar_prefetch = 0 : i64, scratch_operands = 2 : i64, tpu.core_type = #tpu.core_type<tc>, window_params = [{transform_indices = @transform_0, window_bounds = array<i64: 99>}, {transform_indices = @transform_1, window_bounds = array<i64: 1, 4, 256>}, {transform_indices = @transform_2, window_bounds = array<i64: 1, 4, 256>}]} {
    %cst = arith.constant 0.000000e+00 : f32
    %0 = vector.broadcast %cst : f32 to vector<2x22x128xf32>
    %c0 = arith.constant 0 : index
    %c0_0 = arith.constant 0 : index
    %c0_1 = arith.constant 0 : index
    %1 = vector.load %arg4[%c0, %c0_0, %c0_1] : memref<2x22x128xf32, #tpu.memory_space<vmem>>, vector<2x22x128xf32>
    tpu.vector_store %arg4[%c0, %c0_0, %c0_1], %0 {strides = array<i32>} : memref<2x22x128xf32, #tpu.memory_space<vmem>>, vector<2x22x128xf32>,
    %c0_2 = arith.constant 0 : index
    %c0_3 = arith.constant 0 : index
    %c0_4 = arith.constant 0 : index
    %2 = vector.load %arg2[%c0_2, %c0_3, %c0_4] : memref<1x4x256xf32, #tpu.memory_space<vmem>>, vector<1x4x256xf32>
    %3 = vector.shape_cast %2 : vector<1x4x256xf32> to vector<4x256xf32>
    %cst_5 = arith.constant dense<0xFF800000> : vector<256xf32>
    %4 = vector.multi_reduction <maximumf>, %3, %cst_5 [0] : vector<4x256xf32> to vector<256xf32>
    %5 = vector.shape_cast %4 : vector<256xf32> to vector<1x256xf32>
    %cst_6 = arith.constant dense<0.000000e+00> : vector<256xf32>
    %6 = vector.multi_reduction <add>, %3, %cst_6 [0] : vector<4x256xf32> to vector<256xf32>
    %7 = vector.shape_cast %6 : vector<256xf32> to vector<1x256xf32>
    %cst_7 = arith.constant 2.500000e-01 : f32
    %8 = vector.broadcast %cst_7 : f32 to vector<1x256xf32>
    %9 = arith.mulf %7, %8 : vector<1x256xf32>
    %10 = vector.extract_strided_slice %5 {offsets = [0, 0], sizes = [1, 16], strides = [1, 1]} : vector<1x256xf32> to vector<1x16xf32>
    %c0_8 = arith.constant 0 : index
    %c3 = arith.constant 3 : index
    %c3_9 = arith.constant 3 : index
    %11 = vector.load %arg4[%c0_8, %c3, %c3_9] : memref<2x22x128xf32, #tpu.memory_space<vmem>>, vector<1x1x16xf32>
    %12 = vector.shape_cast %11 : vector<1x1x16xf32> to vector<1x16xf32>
    %13 = vector.shape_cast %10 : vector<1x16xf32> to vector<1x1x16xf32>
    tpu.vector_store %arg4[%c0_8, %c3, %c3_9], %13 {strides = array<i32>} : memref<2x22x128xf32, #tpu.memory_space<vmem>>, vector<1x1x16xf32>,
    %14 = vector.extract_strided_slice %9 {offsets = [0, 0], sizes = [1, 16], strides = [1, 1]} : vector<1x256xf32> to vector<1x16xf32>
    %c1 = arith.constant 1 : index
    %c3_10 = arith.constant 3 : index
    %c3_11 = arith.constant 3 : index
    %15 = vector.load %arg4[%c1, %c3_10, %c3_11] : memref<2x22x128xf32, #tpu.memory_space<vmem>>, vector<1x1x16xf32>
    %16 = vector.shape_cast %15 : vector<1x1x16xf32> to vector<1x16xf32>
    %17 = vector.shape_cast %14 : vector<1x16xf32> to vector<1x1x16xf32>
    tpu.vector_store %arg4[%c1, %c3_10, %c3_11], %17 {strides = array<i32>} : memref<2x22x128xf32, #tpu.memory_space<vmem>>, vector<1x1x16xf32>,
    %18 = vector.extract_strided_slice %5 {offsets = [0, 16], sizes = [1, 16], strides = [1, 1]} : vector<1x256xf32> to vector<1x16xf32>
    %c0_12 = arith.constant 0 : index
    %c4 = arith.constant 4 : index
    %c3_13 = arith.constant 3 : index
    %19 = vector.load %arg4[%c0_12, %c4, %c3_13] : memref<2x22x128xf32, #tpu.memory_space<vmem>>, vector<1x1x16xf32>
    %20 = vector.shape_cast %19 : vector<1x1x16xf32> to vector<1x16xf32>
    %21 = vector.shape_cast %18 : vector<1x16xf32> to vector<1x1x16xf32>
    tpu.vector_store %arg4[%c0_12, %c4, %c3_13], %21 {strides = array<i32>} : memref<2x22x128xf32, #tpu.memory_space<vmem>>, vector<1x1x16xf32>,
    %22 = vector.extract_strided_slice %9 {offsets = [0, 16], sizes = [1, 16], strides = [1, 1]} : vector<1x256xf32> to vector<1x16xf32>
    %c1_14 = arith.constant 1 : index
    %c4_15 = arith.constant 4 : index
    %c3_16 = arith.constant 3 : index
    %23 = vector.load %arg4[%c1_14, %c4_15, %c3_16] : memref<2x22x128xf32, #tpu.memory_space<vmem>>, vector<1x1x16xf32>
    %24 = vector.shape_cast %23 : vector<1x1x16xf32> to vector<1x16xf32>
    %25 = vector.shape_cast %22 : vector<1x16xf32> to vector<1x1x16xf32>
    tpu.vector_store %arg4[%c1_14, %c4_15, %c3_16], %25 {strides = array<i32>} : memref<2x22x128xf32, #tpu.memory_space<vmem>>, vector<1x1x16xf32>,
    %26 = vector.extract_strided_slice %5 {offsets = [0, 32], sizes = [1, 16], strides = [1, 1]} : vector<1x256xf32> to vector<1x16xf32>
    %c0_17 = arith.constant 0 : index
    %c5 = arith.constant 5 : index
    %c3_18 = arith.constant 3 : index
    %27 = vector.load %arg4[%c0_17, %c5, %c3_18] : memref<2x22x128xf32, #tpu.memory_space<vmem>>, vector<1x1x16xf32>
    %28 = vector.shape_cast %27 : vector<1x1x16xf32> to vector<1x16xf32>
    %29 = vector.shape_cast %26 : vector<1x16xf32> to vector<1x1x16xf32>
    tpu.vector_store %arg4[%c0_17, %c5, %c3_18], %29 {strides = array<i32>} : memref<2x22x128xf32, #tpu.memory_space<vmem>>, vector<1x1x16xf32>,
    %30 = vector.extract_strided_slice %9 {offsets = [0, 32], sizes = [1, 16], strides = [1, 1]} : vector<1x256xf32> to vector<1x16xf32>
    %c1_19 = arith.constant 1 : index
    %c5_20 = arith.constant 5 : index
    %c3_21 = arith.constant 3 : index
    %31 = vector.load %arg4[%c1_19, %c5_20, %c3_21] : memref<2x22x128xf32, #tpu.memory_space<vmem>>, vector<1x1x16xf32>
    %32 = vector.shape_cast %31 : vector<1x1x16xf32> to vector<1x16xf32>
    %33 = vector.shape_cast %30 : vector<1x16xf32> to vector<1x1x16xf32>
    tpu.vector_store %arg4[%c1_19, %c5_20, %c3_21], %33 {strides = array<i32>} : memref<2x22x128xf32, #tpu.memory_space<vmem>>, vector<1x1x16xf32>,
    %34 = vector.extract_strided_slice %5 {offsets = [0, 48], sizes = [1, 16], strides = [1, 1]} : vector<1x256xf32> to vector<1x16xf32>
    %c0_22 = arith.constant 0 : index
    %c6 = arith.constant 6 : index
    %c3_23 = arith.constant 3 : index
    %35 = vector.load %arg4[%c0_22, %c6, %c3_23] : memref<2x22x128xf32, #tpu.memory_space<vmem>>, vector<1x1x16xf32>
    %36 = vector.shape_cast %35 : vector<1x1x16xf32> to vector<1x16xf32>
    %37 = vector.shape_cast %34 : vector<1x16xf32> to vector<1x1x16xf32>
    tpu.vector_store %arg4[%c0_22, %c6, %c3_23], %37 {strides = array<i32>} : memref<2x22x128xf32, #tpu.memory_space<vmem>>, vector<1x1x16xf32>,
    %38 = vector.extract_strided_slice %9 {offsets = [0, 48], sizes = [1, 16], strides = [1, 1]} : vector<1x256xf32> to vector<1x16xf32>
    %c1_24 = arith.constant 1 : index
    %c6_25 = arith.constant 6 : index
    %c3_26 = arith.constant 3 : index
    %39 = vector.load %arg4[%c1_24, %c6_25, %c3_26] : memref<2x22x128xf32, #tpu.memory_space<vmem>>, vector<1x1x16xf32>
    %40 = vector.shape_cast %39 : vector<1x1x16xf32> to vector<1x16xf32>
    %41 = vector.shape_cast %38 : vector<1x16xf32> to vector<1x1x16xf32>
    tpu.vector_store %arg4[%c1_24, %c6_25, %c3_26], %41 {strides = array<i32>} : memref<2x22x128xf32, #tpu.memory_space<vmem>>, vector<1x1x16xf32>,
    %42 = vector.extract_strided_slice %5 {offsets = [0, 64], sizes = [1, 16], strides = [1, 1]} : vector<1x256xf32> to vector<1x16xf32>
    %c0_27 = arith.constant 0 : index
    %c7 = arith.constant 7 : index
    %c3_28 = arith.constant 3 : index
    %43 = vector.load %arg4[%c0_27, %c7, %c3_28] : memref<2x22x128xf32, #tpu.memory_space<vmem>>, vector<1x1x16xf32>
    %44 = vector.shape_cast %43 : vector<1x1x16xf32> to vector<1x16xf32>
    %45 = vector.shape_cast %42 : vector<1x16xf32> to vector<1x1x16xf32>
    tpu.vector_store %arg4[%c0_27, %c7, %c3_28], %45 {strides = array<i32>} : memref<2x22x128xf32, #tpu.memory_space<vmem>>, vector<1x1x16xf32>,
    %46 = vector.extract_strided_slice %9 {offsets = [0, 64], sizes = [1, 16], strides = [1, 1]} : vector<1x256xf32> to vector<1x16xf32>
    %c1_29 = arith.constant 1 : index
    %c7_30 = arith.constant 7 : index
    %c3_31 = arith.constant 3 : index
    %47 = vector.load %arg4[%c1_29, %c7_30, %c3_31] : memref<2x22x128xf32, #tpu.memory_space<vmem>>, vector<1x1x16xf32>
    %48 = vector.shape_cast %47 : vector<1x1x16xf32> to vector<1x16xf32>
    %49 = vector.shape_cast %46 : vector<1x16xf32> to vector<1x1x16xf32>
    tpu.vector_store %arg4[%c1_29, %c7_30, %c3_31], %49 {strides = array<i32>} : memref<2x22x128xf32, #tpu.memory_space<vmem>>, vector<1x1x16xf32>,
    %50 = vector.extract_strided_slice %5 {offsets = [0, 80], sizes = [1, 16], strides = [1, 1]} : vector<1x256xf32> to vector<1x16xf32>
    %c0_32 = arith.constant 0 : index
    %c8 = arith.constant 8 : index
    %c3_33 = arith.constant 3 : index
    %51 = vector.load %arg4[%c0_32, %c8, %c3_33] : memref<2x22x128xf32, #tpu.memory_space<vmem>>, vector<1x1x16xf32>
    %52 = vector.shape_cast %51 : vector<1x1x16xf32> to vector<1x16xf32>
    %53 = vector.shape_cast %50 : vector<1x16xf32> to vector<1x1x16xf32>
    tpu.vector_store %arg4[%c0_32, %c8, %c3_33], %53 {strides = array<i32>} : memref<2x22x128xf32, #tpu.memory_space<vmem>>, vector<1x1x16xf32>,
    %54 = vector.extract_strided_slice %9 {offsets = [0, 80], sizes = [1, 16], strides = [1, 1]} : vector<1x256xf32> to vector<1x16xf32>
    %c1_34 = arith.constant 1 : index
    %c8_35 = arith.constant 8 : index
    %c3_36 = arith.constant 3 : index
    %55 = vector.load %arg4[%c1_34, %c8_35, %c3_36] : memref<2x22x128xf32, #tpu.memory_space<vmem>>, vector<1x1x16xf32>
    %56 = vector.shape_cast %55 : vector<1x1x16xf32> to vector<1x16xf32>
    %57 = vector.shape_cast %54 : vector<1x16xf32> to vector<1x1x16xf32>
    tpu.vector_store %arg4[%c1_34, %c8_35, %c3_36], %57 {strides = array<i32>} : memref<2x22x128xf32, #tpu.memory_space<vmem>>, vector<1x1x16xf32>,
    %58 = vector.extract_strided_slice %5 {offsets = [0, 96], sizes = [1, 16], strides = [1, 1]} : vector<1x256xf32> to vector<1x16xf32>
    %c0_37 = arith.constant 0 : index
    %c9 = arith.constant 9 : index
    %c3_38 = arith.constant 3 : index
    %59 = vector.load %arg4[%c0_37, %c9, %c3_38] : memref<2x22x128xf32, #tpu.memory_space<vmem>>, vector<1x1x16xf32>
    %60 = vector.shape_cast %59 : vector<1x1x16xf32> to vector<1x16xf32>
    %61 = vector.shape_cast %58 : vector<1x16xf32> to vector<1x1x16xf32>
    tpu.vector_store %arg4[%c0_37, %c9, %c3_38], %61 {strides = array<i32>} : memref<2x22x128xf32, #tpu.memory_space<vmem>>, vector<1x1x16xf32>,
    %62 = vector.extract_strided_slice %9 {offsets = [0, 96], sizes = [1, 16], strides = [1, 1]} : vector<1x256xf32> to vector<1x16xf32>
    %c1_39 = arith.constant 1 : index
    %c9_40 = arith.constant 9 : index
    %c3_41 = arith.constant 3 : index
    %63 = vector.load %arg4[%c1_39, %c9_40, %c3_41] : memref<2x22x128xf32, #tpu.memory_space<vmem>>, vector<1x1x16xf32>
    %64 = vector.shape_cast %63 : vector<1x1x16xf32> to vector<1x16xf32>
    %65 = vector.shape_cast %62 : vector<1x16xf32> to vector<1x1x16xf32>
    tpu.vector_store %arg4[%c1_39, %c9_40, %c3_41], %65 {strides = array<i32>} : memref<2x22x128xf32, #tpu.memory_space<vmem>>, vector<1x1x16xf32>,
    %66 = vector.extract_strided_slice %5 {offsets = [0, 112], sizes = [1, 16], strides = [1, 1]} : vector<1x256xf32> to vector<1x16xf32>
    %c0_42 = arith.constant 0 : index
    %c10 = arith.constant 10 : index
    %c3_43 = arith.constant 3 : index
    %67 = vector.load %arg4[%c0_42, %c10, %c3_43] : memref<2x22x128xf32, #tpu.memory_space<vmem>>, vector<1x1x16xf32>
    %68 = vector.shape_cast %67 : vector<1x1x16xf32> to vector<1x16xf32>
    %69 = vector.shape_cast %66 : vector<1x16xf32> to vector<1x1x16xf32>
    tpu.vector_store %arg4[%c0_42, %c10, %c3_43], %69 {strides = array<i32>} : memref<2x22x128xf32, #tpu.memory_space<vmem>>, vector<1x1x16xf32>,
    %70 = vector.extract_strided_slice %9 {offsets = [0, 112], sizes = [1, 16], strides = [1, 1]} : vector<1x256xf32> to vector<1x16xf32>
    %c1_44 = arith.constant 1 : index
    %c10_45 = arith.constant 10 : index
    %c3_46 = arith.constant 3 : index
    %71 = vector.load %arg4[%c1_44, %c10_45, %c3_46] : memref<2x22x128xf32, #tpu.memory_space<vmem>>, vector<1x1x16xf32>
    %72 = vector.shape_cast %71 : vector<1x1x16xf32> to vector<1x16xf32>
    %73 = vector.shape_cast %70 : vector<1x16xf32> to vector<1x1x16xf32>
    tpu.vector_store %arg4[%c1_44, %c10_45, %c3_46], %73 {strides = array<i32>} : memref<2x22x128xf32, #tpu.memory_space<vmem>>, vector<1x1x16xf32>,
    %74 = vector.extract_strided_slice %5 {offsets = [0, 128], sizes = [1, 16], strides = [1, 1]} : vector<1x256xf32> to vector<1x16xf32>
    %c0_47 = arith.constant 0 : index
    %c11 = arith.constant 11 : index
    %c3_48 = arith.constant 3 : index
    %75 = vector.load %arg4[%c0_47, %c11, %c3_48] : memref<2x22x128xf32, #tpu.memory_space<vmem>>, vector<1x1x16xf32>
    %76 = vector.shape_cast %75 : vector<1x1x16xf32> to vector<1x16xf32>
    %77 = vector.shape_cast %74 : vector<1x16xf32> to vector<1x1x16xf32>
    tpu.vector_store %arg4[%c0_47, %c11, %c3_48], %77 {strides = array<i32>} : memref<2x22x128xf32, #tpu.memory_space<vmem>>, vector<1x1x16xf32>,
    %78 = vector.extract_strided_slice %9 {offsets = [0, 128], sizes = [1, 16], strides = [1, 1]} : vector<1x256xf32> to vector<1x16xf32>
    %c1_49 = arith.constant 1 : index
    %c11_50 = arith.constant 11 : index
    %c3_51 = arith.constant 3 : index
    %79 = vector.load %arg4[%c1_49, %c11_50, %c3_51] : memref<2x22x128xf32, #tpu.memory_space<vmem>>, vector<1x1x16xf32>
    %80 = vector.shape_cast %79 : vector<1x1x16xf32> to vector<1x16xf32>
    %81 = vector.shape_cast %78 : vector<1x16xf32> to vector<1x1x16xf32>
    tpu.vector_store %arg4[%c1_49, %c11_50, %c3_51], %81 {strides = array<i32>} : memref<2x22x128xf32, #tpu.memory_space<vmem>>, vector<1x1x16xf32>,
    %82 = vector.extract_strided_slice %5 {offsets = [0, 144], sizes = [1, 16], strides = [1, 1]} : vector<1x256xf32> to vector<1x16xf32>
    %c0_52 = arith.constant 0 : index
    %c12 = arith.constant 12 : index
    %c3_53 = arith.constant 3 : index
    %83 = vector.load %arg4[%c0_52, %c12, %c3_53] : memref<2x22x128xf32, #tpu.memory_space<vmem>>, vector<1x1x16xf32>
    %84 = vector.shape_cast %83 : vector<1x1x16xf32> to vector<1x16xf32>
    %85 = vector.shape_cast %82 : vector<1x16xf32> to vector<1x1x16xf32>
    tpu.vector_store %arg4[%c0_52, %c12, %c3_53], %85 {strides = array<i32>} : memref<2x22x128xf32, #tpu.memory_space<vmem>>, vector<1x1x16xf32>,
    %86 = vector.extract_strided_slice %9 {offsets = [0, 144], sizes = [1, 16], strides = [1, 1]} : vector<1x256xf32> to vector<1x16xf32>
    %c1_54 = arith.constant 1 : index
    %c12_55 = arith.constant 12 : index
    %c3_56 = arith.constant 3 : index
    %87 = vector.load %arg4[%c1_54, %c12_55, %c3_56] : memref<2x22x128xf32, #tpu.memory_space<vmem>>, vector<1x1x16xf32>
    %88 = vector.shape_cast %87 : vector<1x1x16xf32> to vector<1x16xf32>
    %89 = vector.shape_cast %86 : vector<1x16xf32> to vector<1x1x16xf32>
    tpu.vector_store %arg4[%c1_54, %c12_55, %c3_56], %89 {strides = array<i32>} : memref<2x22x128xf32, #tpu.memory_space<vmem>>, vector<1x1x16xf32>,
    %90 = vector.extract_strided_slice %5 {offsets = [0, 160], sizes = [1, 16], strides = [1, 1]} : vector<1x256xf32> to vector<1x16xf32>
    %c0_57 = arith.constant 0 : index
    %c13 = arith.constant 13 : index
    %c3_58 = arith.constant 3 : index
    %91 = vector.load %arg4[%c0_57, %c13, %c3_58] : memref<2x22x128xf32, #tpu.memory_space<vmem>>, vector<1x1x16xf32>
    %92 = vector.shape_cast %91 : vector<1x1x16xf32> to vector<1x16xf32>
    %93 = vector.shape_cast %90 : vector<1x16xf32> to vector<1x1x16xf32>
    tpu.vector_store %arg4[%c0_57, %c13, %c3_58], %93 {strides = array<i32>} : memref<2x22x128xf32, #tpu.memory_space<vmem>>, vector<1x1x16xf32>,
    %94 = vector.extract_strided_slice %9 {offsets = [0, 160], sizes = [1, 16], strides = [1, 1]} : vector<1x256xf32> to vector<1x16xf32>
    %c1_59 = arith.constant 1 : index
    %c13_60 = arith.constant 13 : index
    %c3_61 = arith.constant 3 : index
    %95 = vector.load %arg4[%c1_59, %c13_60, %c3_61] : memref<2x22x128xf32, #tpu.memory_space<vmem>>, vector<1x1x16xf32>
    %96 = vector.shape_cast %95 : vector<1x1x16xf32> to vector<1x16xf32>
    %97 = vector.shape_cast %94 : vector<1x16xf32> to vector<1x1x16xf32>
    tpu.vector_store %arg4[%c1_59, %c13_60, %c3_61], %97 {strides = array<i32>} : memref<2x22x128xf32, #tpu.memory_space<vmem>>, vector<1x1x16xf32>,
    %98 = vector.extract_strided_slice %5 {offsets = [0, 176], sizes = [1, 16], strides = [1, 1]} : vector<1x256xf32> to vector<1x16xf32>
    %c0_62 = arith.constant 0 : index
    %c14 = arith.constant 14 : index
    %c3_63 = arith.constant 3 : index
    %99 = vector.load %arg4[%c0_62, %c14, %c3_63] : memref<2x22x128xf32, #tpu.memory_space<vmem>>, vector<1x1x16xf32>
    %100 = vector.shape_cast %99 : vector<1x1x16xf32> to vector<1x16xf32>
    %101 = vector.shape_cast %98 : vector<1x16xf32> to vector<1x1x16xf32>
    tpu.vector_store %arg4[%c0_62, %c14, %c3_63], %101 {strides = array<i32>} : memref<2x22x128xf32, #tpu.memory_space<vmem>>, vector<1x1x16xf32>,
    %102 = vector.extract_strided_slice %9 {offsets = [0, 176], sizes = [1, 16], strides = [1, 1]} : vector<1x256xf32> to vector<1x16xf32>
    %c1_64 = arith.constant 1 : index
    %c14_65 = arith.constant 14 : index
    %c3_66 = arith.constant 3 : index
    %103 = vector.load %arg4[%c1_64, %c14_65, %c3_66] : memref<2x22x128xf32, #tpu.memory_space<vmem>>, vector<1x1x16xf32>
    %104 = vector.shape_cast %103 : vector<1x1x16xf32> to vector<1x16xf32>
    %105 = vector.shape_cast %102 : vector<1x16xf32> to vector<1x1x16xf32>
    tpu.vector_store %arg4[%c1_64, %c14_65, %c3_66], %105 {strides = array<i32>} : memref<2x22x128xf32, #tpu.memory_space<vmem>>, vector<1x1x16xf32>,
    %106 = vector.extract_strided_slice %5 {offsets = [0, 192], sizes = [1, 16], strides = [1, 1]} : vector<1x256xf32> to vector<1x16xf32>
    %c0_67 = arith.constant 0 : index
    %c15 = arith.constant 15 : index
    %c3_68 = arith.constant 3 : index
    %107 = vector.load %arg4[%c0_67, %c15, %c3_68] : memref<2x22x128xf32, #tpu.memory_space<vmem>>, vector<1x1x16xf32>
    %108 = vector.shape_cast %107 : vector<1x1x16xf32> to vector<1x16xf32>
    %109 = vector.shape_cast %106 : vector<1x16xf32> to vector<1x1x16xf32>
    tpu.vector_store %arg4[%c0_67, %c15, %c3_68], %109 {strides = array<i32>} : memref<2x22x128xf32, #tpu.memory_space<vmem>>, vector<1x1x16xf32>,
    %110 = vector.extract_strided_slice %9 {offsets = [0, 192], sizes = [1, 16], strides = [1, 1]} : vector<1x256xf32> to vector<1x16xf32>
    %c1_69 = arith.constant 1 : index
    %c15_70 = arith.constant 15 : index
    %c3_71 = arith.constant 3 : index
    %111 = vector.load %arg4[%c1_69, %c15_70, %c3_71] : memref<2x22x128xf32, #tpu.memory_space<vmem>>, vector<1x1x16xf32>
    %112 = vector.shape_cast %111 : vector<1x1x16xf32> to vector<1x16xf32>
    %113 = vector.shape_cast %110 : vector<1x16xf32> to vector<1x1x16xf32>
    tpu.vector_store %arg4[%c1_69, %c15_70, %c3_71], %113 {strides = array<i32>} : memref<2x22x128xf32, #tpu.memory_space<vmem>>, vector<1x1x16xf32>,
    %114 = vector.extract_strided_slice %5 {offsets = [0, 208], sizes = [1, 16], strides = [1, 1]} : vector<1x256xf32> to vector<1x16xf32>
    %c0_72 = arith.constant 0 : index
    %c16 = arith.constant 16 : index
    %c3_73 = arith.constant 3 : index
    %115 = vector.load %arg4[%c0_72, %c16, %c3_73] : memref<2x22x128xf32, #tpu.memory_space<vmem>>, vector<1x1x16xf32>
    %116 = vector.shape_cast %115 : vector<1x1x16xf32> to vector<1x16xf32>
    %117 = vector.shape_cast %114 : vector<1x16xf32> to vector<1x1x16xf32>
    tpu.vector_store %arg4[%c0_72, %c16, %c3_73], %117 {strides = array<i32>} : memref<2x22x128xf32, #tpu.memory_space<vmem>>, vector<1x1x16xf32>,
    %118 = vector.extract_strided_slice %9 {offsets = [0, 208], sizes = [1, 16], strides = [1, 1]} : vector<1x256xf32> to vector<1x16xf32>
    %c1_74 = arith.constant 1 : index
    %c16_75 = arith.constant 16 : index
    %c3_76 = arith.constant 3 : index
    %119 = vector.load %arg4[%c1_74, %c16_75, %c3_76] : memref<2x22x128xf32, #tpu.memory_space<vmem>>, vector<1x1x16xf32>
    %120 = vector.shape_cast %119 : vector<1x1x16xf32> to vector<1x16xf32>
    %121 = vector.shape_cast %118 : vector<1x16xf32> to vector<1x1x16xf32>
    tpu.vector_store %arg4[%c1_74, %c16_75, %c3_76], %121 {strides = array<i32>} : memref<2x22x128xf32, #tpu.memory_space<vmem>>, vector<1x1x16xf32>,
    %122 = vector.extract_strided_slice %5 {offsets = [0, 224], sizes = [1, 16], strides = [1, 1]} : vector<1x256xf32> to vector<1x16xf32>
    %c0_77 = arith.constant 0 : index
    %c17 = arith.constant 17 : index
    %c3_78 = arith.constant 3 : index
    %123 = vector.load %arg4[%c0_77, %c17, %c3_78] : memref<2x22x128xf32, #tpu.memory_space<vmem>>, vector<1x1x16xf32>
    %124 = vector.shape_cast %123 : vector<1x1x16xf32> to vector<1x16xf32>
    %125 = vector.shape_cast %122 : vector<1x16xf32> to vector<1x1x16xf32>
    tpu.vector_store %arg4[%c0_77, %c17, %c3_78], %125 {strides = array<i32>} : memref<2x22x128xf32, #tpu.memory_space<vmem>>, vector<1x1x16xf32>,
    %126 = vector.extract_strided_slice %9 {offsets = [0, 224], sizes = [1, 16], strides = [1, 1]} : vector<1x256xf32> to vector<1x16xf32>
    %c1_79 = arith.constant 1 : index
    %c17_80 = arith.constant 17 : index
    %c3_81 = arith.constant 3 : index
    %127 = vector.load %arg4[%c1_79, %c17_80, %c3_81] : memref<2x22x128xf32, #tpu.memory_space<vmem>>, vector<1x1x16xf32>
    %128 = vector.shape_cast %127 : vector<1x1x16xf32> to vector<1x16xf32>
    %129 = vector.shape_cast %126 : vector<1x16xf32> to vector<1x1x16xf32>
    tpu.vector_store %arg4[%c1_79, %c17_80, %c3_81], %129 {strides = array<i32>} : memref<2x22x128xf32, #tpu.memory_space<vmem>>, vector<1x1x16xf32>,
    %130 = vector.extract_strided_slice %5 {offsets = [0, 240], sizes = [1, 16], strides = [1, 1]} : vector<1x256xf32> to vector<1x16xf32>
    %c0_82 = arith.constant 0 : index
    %c18 = arith.constant 18 : index
    %c3_83 = arith.constant 3 : index
    %131 = vector.load %arg4[%c0_82, %c18, %c3_83] : memref<2x22x128xf32, #tpu.memory_space<vmem>>, vector<1x1x16xf32>
    %132 = vector.shape_cast %131 : vector<1x1x16xf32> to vector<1x16xf32>
    %133 = vector.shape_cast %130 : vector<1x16xf32> to vector<1x1x16xf32>
    tpu.vector_store %arg4[%c0_82, %c18, %c3_83], %133 {strides = array<i32>} : memref<2x22x128xf32, #tpu.memory_space<vmem>>, vector<1x1x16xf32>,
    %134 = vector.extract_strided_slice %9 {offsets = [0, 240], sizes = [1, 16], strides = [1, 1]} : vector<1x256xf32> to vector<1x16xf32>
    %c1_84 = arith.constant 1 : index
    %c18_85 = arith.constant 18 : index
    %c3_86 = arith.constant 3 : index
    %135 = vector.load %arg4[%c1_84, %c18_85, %c3_86] : memref<2x22x128xf32, #tpu.memory_space<vmem>>, vector<1x1x16xf32>
    %136 = vector.shape_cast %135 : vector<1x1x16xf32> to vector<1x16xf32>
    %137 = vector.shape_cast %134 : vector<1x16xf32> to vector<1x1x16xf32>
    tpu.vector_store %arg4[%c1_84, %c18_85, %c3_86], %137 {strides = array<i32>} : memref<2x22x128xf32, #tpu.memory_space<vmem>>, vector<1x1x16xf32>,
    %c0_87 = arith.constant 0 : index
    %c0_88 = arith.constant 0 : index
    %c0_89 = arith.constant 0 : index
    %138 = vector.load %arg4[%c0_87, %c0_88, %c0_89] : memref<2x22x128xf32, #tpu.memory_space<vmem>>, vector<1x16x128xf32>
    %139 = vector.shape_cast %138 : vector<1x16x128xf32> to vector<16x128xf32>
    %c0_90 = arith.constant 0 : index
    %140 = memref.load %arg1[%c0_90] : memref<99xf32, #tpu.memory_space<smem>>
    %141 = vector.broadcast %140 : f32 to vector<16x128xf32>
    %142 = arith.mulf %141, %139 : vector<16x128xf32>
    %c1_91 = arith.constant 1 : index
    %143 = memref.load %arg1[%c1_91] : memref<99xf32, #tpu.memory_space<smem>>
    %c127_i32 = arith.constant 127 : i32
    %144 = tpu.dynamic_rotate %139 by %c127_i32 dim 1 : vector<16x128xf32>, i32 -> vector<16x128xf32>
    %145 = vector.broadcast %143 : f32 to vector<16x128xf32>
    %146 = arith.mulf %145, %144 : vector<16x128xf32>
    %147 = arith.addf %142, %146 : vector<16x128xf32>
    %c2 = arith.constant 2 : index
    %148 = memref.load %arg1[%c2] : memref<99xf32, #tpu.memory_space<smem>>
    %c126_i32 = arith.constant 126 : i32
    %149 = tpu.dynamic_rotate %139 by %c126_i32 dim 1 : vector<16x128xf32>, i32 -> vector<16x128xf32>
    %150 = vector.broadcast %148 : f32 to vector<16x128xf32>
    %151 = arith.mulf %150, %149 : vector<16x128xf32>
    %152 = arith.addf %147, %151 : vector<16x128xf32>
    %c3_92 = arith.constant 3 : index
    %153 = memref.load %arg1[%c3_92] : memref<99xf32, #tpu.memory_space<smem>>
    %c125_i32 = arith.constant 125 : i32
    %154 = tpu.dynamic_rotate %139 by %c125_i32 dim 1 : vector<16x128xf32>, i32 -> vector<16x128xf32>
    %155 = vector.broadcast %153 : f32 to vector<16x128xf32>
    %156 = arith.mulf %155, %154 : vector<16x128xf32>
    %157 = arith.addf %152, %156 : vector<16x128xf32>
    %c4_93 = arith.constant 4 : index
    %158 = memref.load %arg1[%c4_93] : memref<99xf32, #tpu.memory_space<smem>>
    %c124_i32 = arith.constant 124 : i32
    %159 = tpu.dynamic_rotate %139 by %c124_i32 dim 1 : vector<16x128xf32>, i32 -> vector<16x128xf32>
    %160 = vector.broadcast %158 : f32 to vector<16x128xf32>
    %161 = arith.mulf %160, %159 : vector<16x128xf32>
    %162 = arith.addf %157, %161 : vector<16x128xf32>
    %c5_94 = arith.constant 5 : index
    %163 = memref.load %arg1[%c5_94] : memref<99xf32, #tpu.memory_space<smem>>
    %c123_i32 = arith.constant 123 : i32
    %164 = tpu.dynamic_rotate %139 by %c123_i32 dim 1 : vector<16x128xf32>, i32 -> vector<16x128xf32>
    %165 = vector.broadcast %163 : f32 to vector<16x128xf32>
    %166 = arith.mulf %165, %164 : vector<16x128xf32>
    %167 = arith.addf %162, %166 : vector<16x128xf32>
    %c6_95 = arith.constant 6 : index
    %168 = memref.load %arg1[%c6_95] : memref<99xf32, #tpu.memory_space<smem>>
    %c122_i32 = arith.constant 122 : i32
    %169 = tpu.dynamic_rotate %139 by %c122_i32 dim 1 : vector<16x128xf32>, i32 -> vector<16x128xf32>
    %170 = vector.broadcast %168 : f32 to vector<16x128xf32>
    %171 = arith.mulf %170, %169 : vector<16x128xf32>
    %172 = arith.addf %167, %171 : vector<16x128xf32>
    %c0_96 = arith.constant 0 : index
    %c1_97 = arith.constant 1 : index
    %c0_98 = arith.constant 0 : index
    %173 = vector.load %arg4[%c0_96, %c1_97, %c0_98] : memref<2x22x128xf32, #tpu.memory_space<vmem>>, vector<1x16x128xf32>
    %174 = vector.shape_cast %173 : vector<1x16x128xf32> to vector<16x128xf32>
    %c7_99 = arith.constant 7 : index
    %175 = memref.load %arg1[%c7_99] : memref<99xf32, #tpu.memory_space<smem>>
    %176 = vector.broadcast %175 : f32 to vector<16x128xf32>
    %177 = arith.mulf %176, %174 : vector<16x128xf32>
    %178 = arith.addf %172, %177 : vector<16x128xf32>
    %c8_100 = arith.constant 8 : index
    %179 = memref.load %arg1[%c8_100] : memref<99xf32, #tpu.memory_space<smem>>
    %c127_i32_101 = arith.constant 127 : i32
    %180 = tpu.dynamic_rotate %174 by %c127_i32_101 dim 1 : vector<16x128xf32>, i32 -> vector<16x128xf32>
    %181 = vector.broadcast %179 : f32 to vector<16x128xf32>
    %182 = arith.mulf %181, %180 : vector<16x128xf32>
    %183 = arith.addf %178, %182 : vector<16x128xf32>
    %c9_102 = arith.constant 9 : index
    %184 = memref.load %arg1[%c9_102] : memref<99xf32, #tpu.memory_space<smem>>
    %c126_i32_103 = arith.constant 126 : i32
    %185 = tpu.dynamic_rotate %174 by %c126_i32_103 dim 1 : vector<16x128xf32>, i32 -> vector<16x128xf32>
    %186 = vector.broadcast %184 : f32 to vector<16x128xf32>
    %187 = arith.mulf %186, %185 : vector<16x128xf32>
    %188 = arith.addf %183, %187 : vector<16x128xf32>
    %c10_104 = arith.constant 10 : index
    %189 = memref.load %arg1[%c10_104] : memref<99xf32, #tpu.memory_space<smem>>
    %c125_i32_105 = arith.constant 125 : i32
    %190 = tpu.dynamic_rotate %174 by %c125_i32_105 dim 1 : vector<16x128xf32>, i32 -> vector<16x128xf32>
    %191 = vector.broadcast %189 : f32 to vector<16x128xf32>
    %192 = arith.mulf %191, %190 : vector<16x128xf32>
    %193 = arith.addf %188, %192 : vector<16x128xf32>
    %c11_106 = arith.constant 11 : index
    %194 = memref.load %arg1[%c11_106] : memref<99xf32, #tpu.memory_space<smem>>
    %c124_i32_107 = arith.constant 124 : i32
    %195 = tpu.dynamic_rotate %174 by %c124_i32_107 dim 1 : vector<16x128xf32>, i32 -> vector<16x128xf32>
    %196 = vector.broadcast %194 : f32 to vector<16x128xf32>
    %197 = arith.mulf %196, %195 : vector<16x128xf32>
    %198 = arith.addf %193, %197 : vector<16x128xf32>
    %c12_108 = arith.constant 12 : index
    %199 = memref.load %arg1[%c12_108] : memref<99xf32, #tpu.memory_space<smem>>
    %c123_i32_109 = arith.constant 123 : i32
    %200 = tpu.dynamic_rotate %174 by %c123_i32_109 dim 1 : vector<16x128xf32>, i32 -> vector<16x128xf32>
    %201 = vector.broadcast %199 : f32 to vector<16x128xf32>
    %202 = arith.mulf %201, %200 : vector<16x128xf32>
    %203 = arith.addf %198, %202 : vector<16x128xf32>
    %c13_110 = arith.constant 13 : index
    %204 = memref.load %arg1[%c13_110] : memref<99xf32, #tpu.memory_space<smem>>
    %c122_i32_111 = arith.constant 122 : i32
    %205 = tpu.dynamic_rotate %174 by %c122_i32_111 dim 1 : vector<16x128xf32>, i32 -> vector<16x128xf32>
    %206 = vector.broadcast %204 : f32 to vector<16x128xf32>
    %207 = arith.mulf %206, %205 : vector<16x128xf32>
    %208 = arith.addf %203, %207 : vector<16x128xf32>
    %c0_112 = arith.constant 0 : index
    %c2_113 = arith.constant 2 : index
    %c0_114 = arith.constant 0 : index
    %209 = vector.load %arg4[%c0_112, %c2_113, %c0_114] : memref<2x22x128xf32, #tpu.memory_space<vmem>>, vector<1x16x128xf32>
    %210 = vector.shape_cast %209 : vector<1x16x128xf32> to vector<16x128xf32>
    %c14_115 = arith.constant 14 : index
    %211 = memref.load %arg1[%c14_115] : memref<99xf32, #tpu.memory_space<smem>>
    %212 = vector.broadcast %211 : f32 to vector<16x128xf32>
    %213 = arith.mulf %212, %210 : vector<16x128xf32>
    %214 = arith.addf %208, %213 : vector<16x128xf32>
    %c15_116 = arith.constant 15 : index
    %215 = memref.load %arg1[%c15_116] : memref<99xf32, #tpu.memory_space<smem>>
    %c127_i32_117 = arith.constant 127 : i32
    %216 = tpu.dynamic_rotate %210 by %c127_i32_117 dim 1 : vector<16x128xf32>, i32 -> vector<16x128xf32>
    %217 = vector.broadcast %215 : f32 to vector<16x128xf32>
    %218 = arith.mulf %217, %216 : vector<16x128xf32>
    %219 = arith.addf %214, %218 : vector<16x128xf32>
    %c16_118 = arith.constant 16 : index
    %220 = memref.load %arg1[%c16_118] : memref<99xf32, #tpu.memory_space<smem>>
    %c126_i32_119 = arith.constant 126 : i32
    %221 = tpu.dynamic_rotate %210 by %c126_i32_119 dim 1 : vector<16x128xf32>, i32 -> vector<16x128xf32>
    %222 = vector.broadcast %220 : f32 to vector<16x128xf32>
    %223 = arith.mulf %222, %221 : vector<16x128xf32>
    %224 = arith.addf %219, %223 : vector<16x128xf32>
    %c17_120 = arith.constant 17 : index
    %225 = memref.load %arg1[%c17_120] : memref<99xf32, #tpu.memory_space<smem>>
    %c125_i32_121 = arith.constant 125 : i32
    %226 = tpu.dynamic_rotate %210 by %c125_i32_121 dim 1 : vector<16x128xf32>, i32 -> vector<16x128xf32>
    %227 = vector.broadcast %225 : f32 to vector<16x128xf32>
    %228 = arith.mulf %227, %226 : vector<16x128xf32>
    %229 = arith.addf %224, %228 : vector<16x128xf32>
    %c18_122 = arith.constant 18 : index
    %230 = memref.load %arg1[%c18_122] : memref<99xf32, #tpu.memory_space<smem>>
    %c124_i32_123 = arith.constant 124 : i32
    %231 = tpu.dynamic_rotate %210 by %c124_i32_123 dim 1 : vector<16x128xf32>, i32 -> vector<16x128xf32>
    %232 = vector.broadcast %230 : f32 to vector<16x128xf32>
    %233 = arith.mulf %232, %231 : vector<16x128xf32>
    %234 = arith.addf %229, %233 : vector<16x128xf32>
    %c19 = arith.constant 19 : index
    %235 = memref.load %arg1[%c19] : memref<99xf32, #tpu.memory_space<smem>>
    %c123_i32_124 = arith.constant 123 : i32
    %236 = tpu.dynamic_rotate %210 by %c123_i32_124 dim 1 : vector<16x128xf32>, i32 -> vector<16x128xf32>
    %237 = vector.broadcast %235 : f32 to vector<16x128xf32>
    %238 = arith.mulf %237, %236 : vector<16x128xf32>
    %239 = arith.addf %234, %238 : vector<16x128xf32>
    %c20 = arith.constant 20 : index
    %240 = memref.load %arg1[%c20] : memref<99xf32, #tpu.memory_space<smem>>
    %c122_i32_125 = arith.constant 122 : i32
    %241 = tpu.dynamic_rotate %210 by %c122_i32_125 dim 1 : vector<16x128xf32>, i32 -> vector<16x128xf32>
    %242 = vector.broadcast %240 : f32 to vector<16x128xf32>
    %243 = arith.mulf %242, %241 : vector<16x128xf32>
    %244 = arith.addf %239, %243 : vector<16x128xf32>
    %c0_126 = arith.constant 0 : index
    %c3_127 = arith.constant 3 : index
    %c0_128 = arith.constant 0 : index
    %245 = vector.load %arg4[%c0_126, %c3_127, %c0_128] : memref<2x22x128xf32, #tpu.memory_space<vmem>>, vector<1x16x128xf32>
    %246 = vector.shape_cast %245 : vector<1x16x128xf32> to vector<16x128xf32>
    %c21 = arith.constant 21 : index
    %247 = memref.load %arg1[%c21] : memref<99xf32, #tpu.memory_space<smem>>
    %248 = vector.broadcast %247 : f32 to vector<16x128xf32>
    %249 = arith.mulf %248, %246 : vector<16x128xf32>
    %250 = arith.addf %244, %249 : vector<16x128xf32>
    %c22 = arith.constant 22 : index
    %251 = memref.load %arg1[%c22] : memref<99xf32, #tpu.memory_space<smem>>
    %c127_i32_129 = arith.constant 127 : i32
    %252 = tpu.dynamic_rotate %246 by %c127_i32_129 dim 1 : vector<16x128xf32>, i32 -> vector<16x128xf32>
    %253 = vector.broadcast %251 : f32 to vector<16x128xf32>
    %254 = arith.mulf %253, %252 : vector<16x128xf32>
    %255 = arith.addf %250, %254 : vector<16x128xf32>
    %c23 = arith.constant 23 : index
    %256 = memref.load %arg1[%c23] : memref<99xf32, #tpu.memory_space<smem>>
    %c126_i32_130 = arith.constant 126 : i32
    %257 = tpu.dynamic_rotate %246 by %c126_i32_130 dim 1 : vector<16x128xf32>, i32 -> vector<16x128xf32>
    %258 = vector.broadcast %256 : f32 to vector<16x128xf32>
    %259 = arith.mulf %258, %257 : vector<16x128xf32>
    %260 = arith.addf %255, %259 : vector<16x128xf32>
    %c24 = arith.constant 24 : index
    %261 = memref.load %arg1[%c24] : memref<99xf32, #tpu.memory_space<smem>>
    %c125_i32_131 = arith.constant 125 : i32
    %262 = tpu.dynamic_rotate %246 by %c125_i32_131 dim 1 : vector<16x128xf32>, i32 -> vector<16x128xf32>
    %263 = vector.broadcast %261 : f32 to vector<16x128xf32>
    %264 = arith.mulf %263, %262 : vector<16x128xf32>
    %265 = arith.addf %260, %264 : vector<16x128xf32>
    %c25 = arith.constant 25 : index
    %266 = memref.load %arg1[%c25] : memref<99xf32, #tpu.memory_space<smem>>
    %c124_i32_132 = arith.constant 124 : i32
    %267 = tpu.dynamic_rotate %246 by %c124_i32_132 dim 1 : vector<16x128xf32>, i32 -> vector<16x128xf32>
    %268 = vector.broadcast %266 : f32 to vector<16x128xf32>
    %269 = arith.mulf %268, %267 : vector<16x128xf32>
    %270 = arith.addf %265, %269 : vector<16x128xf32>
    %c26 = arith.constant 26 : index
    %271 = memref.load %arg1[%c26] : memref<99xf32, #tpu.memory_space<smem>>
    %c123_i32_133 = arith.constant 123 : i32
    %272 = tpu.dynamic_rotate %246 by %c123_i32_133 dim 1 : vector<16x128xf32>, i32 -> vector<16x128xf32>
    %273 = vector.broadcast %271 : f32 to vector<16x128xf32>
    %274 = arith.mulf %273, %272 : vector<16x128xf32>
    %275 = arith.addf %270, %274 : vector<16x128xf32>
    %c27 = arith.constant 27 : index
    %276 = memref.load %arg1[%c27] : memref<99xf32, #tpu.memory_space<smem>>
    %c122_i32_134 = arith.constant 122 : i32
    %277 = tpu.dynamic_rotate %246 by %c122_i32_134 dim 1 : vector<16x128xf32>, i32 -> vector<16x128xf32>
    %278 = vector.broadcast %276 : f32 to vector<16x128xf32>
    %279 = arith.mulf %278, %277 : vector<16x128xf32>
    %280 = arith.addf %275, %279 : vector<16x128xf32>
    %c0_135 = arith.constant 0 : index
    %c4_136 = arith.constant 4 : index
    %c0_137 = arith.constant 0 : index
    %281 = vector.load %arg4[%c0_135, %c4_136, %c0_137] : memref<2x22x128xf32, #tpu.memory_space<vmem>>, vector<1x16x128xf32>
    %282 = vector.shape_cast %281 : vector<1x16x128xf32> to vector<16x128xf32>
    %c28 = arith.constant 28 : index
    %283 = memref.load %arg1[%c28] : memref<99xf32, #tpu.memory_space<smem>>
    %284 = vector.broadcast %283 : f32 to vector<16x128xf32>
    %285 = arith.mulf %284, %282 : vector<16x128xf32>
    %286 = arith.addf %280, %285 : vector<16x128xf32>
    %c29 = arith.constant 29 : index
    %287 = memref.load %arg1[%c29] : memref<99xf32, #tpu.memory_space<smem>>
    %c127_i32_138 = arith.constant 127 : i32
    %288 = tpu.dynamic_rotate %282 by %c127_i32_138 dim 1 : vector<16x128xf32>, i32 -> vector<16x128xf32>
    %289 = vector.broadcast %287 : f32 to vector<16x128xf32>
    %290 = arith.mulf %289, %288 : vector<16x128xf32>
    %291 = arith.addf %286, %290 : vector<16x128xf32>
    %c30 = arith.constant 30 : index
    %292 = memref.load %arg1[%c30] : memref<99xf32, #tpu.memory_space<smem>>
    %c126_i32_139 = arith.constant 126 : i32
    %293 = tpu.dynamic_rotate %282 by %c126_i32_139 dim 1 : vector<16x128xf32>, i32 -> vector<16x128xf32>
    %294 = vector.broadcast %292 : f32 to vector<16x128xf32>
    %295 = arith.mulf %294, %293 : vector<16x128xf32>
    %296 = arith.addf %291, %295 : vector<16x128xf32>
    %c31 = arith.constant 31 : index
    %297 = memref.load %arg1[%c31] : memref<99xf32, #tpu.memory_space<smem>>
    %c125_i32_140 = arith.constant 125 : i32
    %298 = tpu.dynamic_rotate %282 by %c125_i32_140 dim 1 : vector<16x128xf32>, i32 -> vector<16x128xf32>
    %299 = vector.broadcast %297 : f32 to vector<16x128xf32>
    %300 = arith.mulf %299, %298 : vector<16x128xf32>
    %301 = arith.addf %296, %300 : vector<16x128xf32>
    %c32 = arith.constant 32 : index
    %302 = memref.load %arg1[%c32] : memref<99xf32, #tpu.memory_space<smem>>
    %c124_i32_141 = arith.constant 124 : i32
    %303 = tpu.dynamic_rotate %282 by %c124_i32_141 dim 1 : vector<16x128xf32>, i32 -> vector<16x128xf32>
    %304 = vector.broadcast %302 : f32 to vector<16x128xf32>
    %305 = arith.mulf %304, %303 : vector<16x128xf32>
    %306 = arith.addf %301, %305 : vector<16x128xf32>
    %c33 = arith.constant 33 : index
    %307 = memref.load %arg1[%c33] : memref<99xf32, #tpu.memory_space<smem>>
    %c123_i32_142 = arith.constant 123 : i32
    %308 = tpu.dynamic_rotate %282 by %c123_i32_142 dim 1 : vector<16x128xf32>, i32 -> vector<16x128xf32>
    %309 = vector.broadcast %307 : f32 to vector<16x128xf32>
    %310 = arith.mulf %309, %308 : vector<16x128xf32>
    %311 = arith.addf %306, %310 : vector<16x128xf32>
    %c34 = arith.constant 34 : index
    %312 = memref.load %arg1[%c34] : memref<99xf32, #tpu.memory_space<smem>>
    %c122_i32_143 = arith.constant 122 : i32
    %313 = tpu.dynamic_rotate %282 by %c122_i32_143 dim 1 : vector<16x128xf32>, i32 -> vector<16x128xf32>
    %314 = vector.broadcast %312 : f32 to vector<16x128xf32>
    %315 = arith.mulf %314, %313 : vector<16x128xf32>
    %316 = arith.addf %311, %315 : vector<16x128xf32>
    %c0_144 = arith.constant 0 : index
    %c5_145 = arith.constant 5 : index
    %c0_146 = arith.constant 0 : index
    %317 = vector.load %arg4[%c0_144, %c5_145, %c0_146] : memref<2x22x128xf32, #tpu.memory_space<vmem>>, vector<1x16x128xf32>
    %318 = vector.shape_cast %317 : vector<1x16x128xf32> to vector<16x128xf32>
    %c35 = arith.constant 35 : index
    %319 = memref.load %arg1[%c35] : memref<99xf32, #tpu.memory_space<smem>>
    %320 = vector.broadcast %319 : f32 to vector<16x128xf32>
    %321 = arith.mulf %320, %318 : vector<16x128xf32>
    %322 = arith.addf %316, %321 : vector<16x128xf32>
    %c36 = arith.constant 36 : index
    %323 = memref.load %arg1[%c36] : memref<99xf32, #tpu.memory_space<smem>>
    %c127_i32_147 = arith.constant 127 : i32
    %324 = tpu.dynamic_rotate %318 by %c127_i32_147 dim 1 : vector<16x128xf32>, i32 -> vector<16x128xf32>
    %325 = vector.broadcast %323 : f32 to vector<16x128xf32>
    %326 = arith.mulf %325, %324 : vector<16x128xf32>
    %327 = arith.addf %322, %326 : vector<16x128xf32>
    %c37 = arith.constant 37 : index
    %328 = memref.load %arg1[%c37] : memref<99xf32, #tpu.memory_space<smem>>
    %c126_i32_148 = arith.constant 126 : i32
    %329 = tpu.dynamic_rotate %318 by %c126_i32_148 dim 1 : vector<16x128xf32>, i32 -> vector<16x128xf32>
    %330 = vector.broadcast %328 : f32 to vector<16x128xf32>
    %331 = arith.mulf %330, %329 : vector<16x128xf32>
    %332 = arith.addf %327, %331 : vector<16x128xf32>
    %c38 = arith.constant 38 : index
    %333 = memref.load %arg1[%c38] : memref<99xf32, #tpu.memory_space<smem>>
    %c125_i32_149 = arith.constant 125 : i32
    %334 = tpu.dynamic_rotate %318 by %c125_i32_149 dim 1 : vector<16x128xf32>, i32 -> vector<16x128xf32>
    %335 = vector.broadcast %333 : f32 to vector<16x128xf32>
    %336 = arith.mulf %335, %334 : vector<16x128xf32>
    %337 = arith.addf %332, %336 : vector<16x128xf32>
    %c39 = arith.constant 39 : index
    %338 = memref.load %arg1[%c39] : memref<99xf32, #tpu.memory_space<smem>>
    %c124_i32_150 = arith.constant 124 : i32
    %339 = tpu.dynamic_rotate %318 by %c124_i32_150 dim 1 : vector<16x128xf32>, i32 -> vector<16x128xf32>
    %340 = vector.broadcast %338 : f32 to vector<16x128xf32>
    %341 = arith.mulf %340, %339 : vector<16x128xf32>
    %342 = arith.addf %337, %341 : vector<16x128xf32>
    %c40 = arith.constant 40 : index
    %343 = memref.load %arg1[%c40] : memref<99xf32, #tpu.memory_space<smem>>
    %c123_i32_151 = arith.constant 123 : i32
    %344 = tpu.dynamic_rotate %318 by %c123_i32_151 dim 1 : vector<16x128xf32>, i32 -> vector<16x128xf32>
    %345 = vector.broadcast %343 : f32 to vector<16x128xf32>
    %346 = arith.mulf %345, %344 : vector<16x128xf32>
    %347 = arith.addf %342, %346 : vector<16x128xf32>
    %c41 = arith.constant 41 : index
    %348 = memref.load %arg1[%c41] : memref<99xf32, #tpu.memory_space<smem>>
    %c122_i32_152 = arith.constant 122 : i32
    %349 = tpu.dynamic_rotate %318 by %c122_i32_152 dim 1 : vector<16x128xf32>, i32 -> vector<16x128xf32>
    %350 = vector.broadcast %348 : f32 to vector<16x128xf32>
    %351 = arith.mulf %350, %349 : vector<16x128xf32>
    %352 = arith.addf %347, %351 : vector<16x128xf32>
    %c0_153 = arith.constant 0 : index
    %c6_154 = arith.constant 6 : index
    %c0_155 = arith.constant 0 : index
    %353 = vector.load %arg4[%c0_153, %c6_154, %c0_155] : memref<2x22x128xf32, #tpu.memory_space<vmem>>, vector<1x16x128xf32>
    %354 = vector.shape_cast %353 : vector<1x16x128xf32> to vector<16x128xf32>
    %c42 = arith.constant 42 : index
    %355 = memref.load %arg1[%c42] : memref<99xf32, #tpu.memory_space<smem>>
    %356 = vector.broadcast %355 : f32 to vector<16x128xf32>
    %357 = arith.mulf %356, %354 : vector<16x128xf32>
    %358 = arith.addf %352, %357 : vector<16x128xf32>
    %c43 = arith.constant 43 : index
    %359 = memref.load %arg1[%c43] : memref<99xf32, #tpu.memory_space<smem>>
    %c127_i32_156 = arith.constant 127 : i32
    %360 = tpu.dynamic_rotate %354 by %c127_i32_156 dim 1 : vector<16x128xf32>, i32 -> vector<16x128xf32>
    %361 = vector.broadcast %359 : f32 to vector<16x128xf32>
    %362 = arith.mulf %361, %360 : vector<16x128xf32>
    %363 = arith.addf %358, %362 : vector<16x128xf32>
    %c44 = arith.constant 44 : index
    %364 = memref.load %arg1[%c44] : memref<99xf32, #tpu.memory_space<smem>>
    %c126_i32_157 = arith.constant 126 : i32
    %365 = tpu.dynamic_rotate %354 by %c126_i32_157 dim 1 : vector<16x128xf32>, i32 -> vector<16x128xf32>
    %366 = vector.broadcast %364 : f32 to vector<16x128xf32>
    %367 = arith.mulf %366, %365 : vector<16x128xf32>
    %368 = arith.addf %363, %367 : vector<16x128xf32>
    %c45 = arith.constant 45 : index
    %369 = memref.load %arg1[%c45] : memref<99xf32, #tpu.memory_space<smem>>
    %c125_i32_158 = arith.constant 125 : i32
    %370 = tpu.dynamic_rotate %354 by %c125_i32_158 dim 1 : vector<16x128xf32>, i32 -> vector<16x128xf32>
    %371 = vector.broadcast %369 : f32 to vector<16x128xf32>
    %372 = arith.mulf %371, %370 : vector<16x128xf32>
    %373 = arith.addf %368, %372 : vector<16x128xf32>
    %c46 = arith.constant 46 : index
    %374 = memref.load %arg1[%c46] : memref<99xf32, #tpu.memory_space<smem>>
    %c124_i32_159 = arith.constant 124 : i32
    %375 = tpu.dynamic_rotate %354 by %c124_i32_159 dim 1 : vector<16x128xf32>, i32 -> vector<16x128xf32>
    %376 = vector.broadcast %374 : f32 to vector<16x128xf32>
    %377 = arith.mulf %376, %375 : vector<16x128xf32>
    %378 = arith.addf %373, %377 : vector<16x128xf32>
    %c47 = arith.constant 47 : index
    %379 = memref.load %arg1[%c47] : memref<99xf32, #tpu.memory_space<smem>>
    %c123_i32_160 = arith.constant 123 : i32
    %380 = tpu.dynamic_rotate %354 by %c123_i32_160 dim 1 : vector<16x128xf32>, i32 -> vector<16x128xf32>
    %381 = vector.broadcast %379 : f32 to vector<16x128xf32>
    %382 = arith.mulf %381, %380 : vector<16x128xf32>
    %383 = arith.addf %378, %382 : vector<16x128xf32>
    %c48 = arith.constant 48 : index
    %384 = memref.load %arg1[%c48] : memref<99xf32, #tpu.memory_space<smem>>
    %c122_i32_161 = arith.constant 122 : i32
    %385 = tpu.dynamic_rotate %354 by %c122_i32_161 dim 1 : vector<16x128xf32>, i32 -> vector<16x128xf32>
    %386 = vector.broadcast %384 : f32 to vector<16x128xf32>
    %387 = arith.mulf %386, %385 : vector<16x128xf32>
    %388 = arith.addf %383, %387 : vector<16x128xf32>
    %c1_162 = arith.constant 1 : index
    %c0_163 = arith.constant 0 : index
    %c0_164 = arith.constant 0 : index
    %389 = vector.load %arg4[%c1_162, %c0_163, %c0_164] : memref<2x22x128xf32, #tpu.memory_space<vmem>>, vector<1x16x128xf32>
    %390 = vector.shape_cast %389 : vector<1x16x128xf32> to vector<16x128xf32>
    %c49 = arith.constant 49 : index
    %391 = memref.load %arg1[%c49] : memref<99xf32, #tpu.memory_space<smem>>
    %392 = vector.broadcast %391 : f32 to vector<16x128xf32>
    %393 = arith.mulf %392, %390 : vector<16x128xf32>
    %c50 = arith.constant 50 : index
    %394 = memref.load %arg1[%c50] : memref<99xf32, #tpu.memory_space<smem>>
    %c127_i32_165 = arith.constant 127 : i32
    %395 = tpu.dynamic_rotate %390 by %c127_i32_165 dim 1 : vector<16x128xf32>, i32 -> vector<16x128xf32>
    %396 = vector.broadcast %394 : f32 to vector<16x128xf32>
    %397 = arith.mulf %396, %395 : vector<16x128xf32>
    %398 = arith.addf %393, %397 : vector<16x128xf32>
    %c51 = arith.constant 51 : index
    %399 = memref.load %arg1[%c51] : memref<99xf32, #tpu.memory_space<smem>>
    %c126_i32_166 = arith.constant 126 : i32
    %400 = tpu.dynamic_rotate %390 by %c126_i32_166 dim 1 : vector<16x128xf32>, i32 -> vector<16x128xf32>
    %401 = vector.broadcast %399 : f32 to vector<16x128xf32>
    %402 = arith.mulf %401, %400 : vector<16x128xf32>
    %403 = arith.addf %398, %402 : vector<16x128xf32>
    %c52 = arith.constant 52 : index
    %404 = memref.load %arg1[%c52] : memref<99xf32, #tpu.memory_space<smem>>
    %c125_i32_167 = arith.constant 125 : i32
    %405 = tpu.dynamic_rotate %390 by %c125_i32_167 dim 1 : vector<16x128xf32>, i32 -> vector<16x128xf32>
    %406 = vector.broadcast %404 : f32 to vector<16x128xf32>
    %407 = arith.mulf %406, %405 : vector<16x128xf32>
    %408 = arith.addf %403, %407 : vector<16x128xf32>
    %c53 = arith.constant 53 : index
    %409 = memref.load %arg1[%c53] : memref<99xf32, #tpu.memory_space<smem>>
    %c124_i32_168 = arith.constant 124 : i32
    %410 = tpu.dynamic_rotate %390 by %c124_i32_168 dim 1 : vector<16x128xf32>, i32 -> vector<16x128xf32>
    %411 = vector.broadcast %409 : f32 to vector<16x128xf32>
    %412 = arith.mulf %411, %410 : vector<16x128xf32>
    %413 = arith.addf %408, %412 : vector<16x128xf32>
    %c54 = arith.constant 54 : index
    %414 = memref.load %arg1[%c54] : memref<99xf32, #tpu.memory_space<smem>>
    %c123_i32_169 = arith.constant 123 : i32
    %415 = tpu.dynamic_rotate %390 by %c123_i32_169 dim 1 : vector<16x128xf32>, i32 -> vector<16x128xf32>
    %416 = vector.broadcast %414 : f32 to vector<16x128xf32>
    %417 = arith.mulf %416, %415 : vector<16x128xf32>
    %418 = arith.addf %413, %417 : vector<16x128xf32>
    %c55 = arith.constant 55 : index
    %419 = memref.load %arg1[%c55] : memref<99xf32, #tpu.memory_space<smem>>
    %c122_i32_170 = arith.constant 122 : i32
    %420 = tpu.dynamic_rotate %390 by %c122_i32_170 dim 1 : vector<16x128xf32>, i32 -> vector<16x128xf32>
    %421 = vector.broadcast %419 : f32 to vector<16x128xf32>
    %422 = arith.mulf %421, %420 : vector<16x128xf32>
    %423 = arith.addf %418, %422 : vector<16x128xf32>
    %c1_171 = arith.constant 1 : index
    %c1_172 = arith.constant 1 : index
    %c0_173 = arith.constant 0 : index
    %424 = vector.load %arg4[%c1_171, %c1_172, %c0_173] : memref<2x22x128xf32, #tpu.memory_space<vmem>>, vector<1x16x128xf32>
    %425 = vector.shape_cast %424 : vector<1x16x128xf32> to vector<16x128xf32>
    %c56 = arith.constant 56 : index
    %426 = memref.load %arg1[%c56] : memref<99xf32, #tpu.memory_space<smem>>
    %427 = vector.broadcast %426 : f32 to vector<16x128xf32>
    %428 = arith.mulf %427, %425 : vector<16x128xf32>
    %429 = arith.addf %423, %428 : vector<16x128xf32>
    %c57 = arith.constant 57 : index
    %430 = memref.load %arg1[%c57] : memref<99xf32, #tpu.memory_space<smem>>
    %c127_i32_174 = arith.constant 127 : i32
    %431 = tpu.dynamic_rotate %425 by %c127_i32_174 dim 1 : vector<16x128xf32>, i32 -> vector<16x128xf32>
    %432 = vector.broadcast %430 : f32 to vector<16x128xf32>
    %433 = arith.mulf %432, %431 : vector<16x128xf32>
    %434 = arith.addf %429, %433 : vector<16x128xf32>
    %c58 = arith.constant 58 : index
    %435 = memref.load %arg1[%c58] : memref<99xf32, #tpu.memory_space<smem>>
    %c126_i32_175 = arith.constant 126 : i32
    %436 = tpu.dynamic_rotate %425 by %c126_i32_175 dim 1 : vector<16x128xf32>, i32 -> vector<16x128xf32>
    %437 = vector.broadcast %435 : f32 to vector<16x128xf32>
    %438 = arith.mulf %437, %436 : vector<16x128xf32>
    %439 = arith.addf %434, %438 : vector<16x128xf32>
    %c59 = arith.constant 59 : index
    %440 = memref.load %arg1[%c59] : memref<99xf32, #tpu.memory_space<smem>>
    %c125_i32_176 = arith.constant 125 : i32
    %441 = tpu.dynamic_rotate %425 by %c125_i32_176 dim 1 : vector<16x128xf32>, i32 -> vector<16x128xf32>
    %442 = vector.broadcast %440 : f32 to vector<16x128xf32>
    %443 = arith.mulf %442, %441 : vector<16x128xf32>
    %444 = arith.addf %439, %443 : vector<16x128xf32>
    %c60 = arith.constant 60 : index
    %445 = memref.load %arg1[%c60] : memref<99xf32, #tpu.memory_space<smem>>
    %c124_i32_177 = arith.constant 124 : i32
    %446 = tpu.dynamic_rotate %425 by %c124_i32_177 dim 1 : vector<16x128xf32>, i32 -> vector<16x128xf32>
    %447 = vector.broadcast %445 : f32 to vector<16x128xf32>
    %448 = arith.mulf %447, %446 : vector<16x128xf32>
    %449 = arith.addf %444, %448 : vector<16x128xf32>
    %c61 = arith.constant 61 : index
    %450 = memref.load %arg1[%c61] : memref<99xf32, #tpu.memory_space<smem>>
    %c123_i32_178 = arith.constant 123 : i32
    %451 = tpu.dynamic_rotate %425 by %c123_i32_178 dim 1 : vector<16x128xf32>, i32 -> vector<16x128xf32>
    %452 = vector.broadcast %450 : f32 to vector<16x128xf32>
    %453 = arith.mulf %452, %451 : vector<16x128xf32>
    %454 = arith.addf %449, %453 : vector<16x128xf32>
    %c62 = arith.constant 62 : index
    %455 = memref.load %arg1[%c62] : memref<99xf32, #tpu.memory_space<smem>>
    %c122_i32_179 = arith.constant 122 : i32
    %456 = tpu.dynamic_rotate %425 by %c122_i32_179 dim 1 : vector<16x128xf32>, i32 -> vector<16x128xf32>
    %457 = vector.broadcast %455 : f32 to vector<16x128xf32>
    %458 = arith.mulf %457, %456 : vector<16x128xf32>
    %459 = arith.addf %454, %458 : vector<16x128xf32>
    %c1_180 = arith.constant 1 : index
    %c2_181 = arith.constant 2 : index
    %c0_182 = arith.constant 0 : index
    %460 = vector.load %arg4[%c1_180, %c2_181, %c0_182] : memref<2x22x128xf32, #tpu.memory_space<vmem>>, vector<1x16x128xf32>
    %461 = vector.shape_cast %460 : vector<1x16x128xf32> to vector<16x128xf32>
    %c63 = arith.constant 63 : index
    %462 = memref.load %arg1[%c63] : memref<99xf32, #tpu.memory_space<smem>>
    %463 = vector.broadcast %462 : f32 to vector<16x128xf32>
    %464 = arith.mulf %463, %461 : vector<16x128xf32>
    %465 = arith.addf %459, %464 : vector<16x128xf32>
    %c64 = arith.constant 64 : index
    %466 = memref.load %arg1[%c64] : memref<99xf32, #tpu.memory_space<smem>>
    %c127_i32_183 = arith.constant 127 : i32
    %467 = tpu.dynamic_rotate %461 by %c127_i32_183 dim 1 : vector<16x128xf32>, i32 -> vector<16x128xf32>
    %468 = vector.broadcast %466 : f32 to vector<16x128xf32>
    %469 = arith.mulf %468, %467 : vector<16x128xf32>
    %470 = arith.addf %465, %469 : vector<16x128xf32>
    %c65 = arith.constant 65 : index
    %471 = memref.load %arg1[%c65] : memref<99xf32, #tpu.memory_space<smem>>
    %c126_i32_184 = arith.constant 126 : i32
    %472 = tpu.dynamic_rotate %461 by %c126_i32_184 dim 1 : vector<16x128xf32>, i32 -> vector<16x128xf32>
    %473 = vector.broadcast %471 : f32 to vector<16x128xf32>
    %474 = arith.mulf %473, %472 : vector<16x128xf32>
    %475 = arith.addf %470, %474 : vector<16x128xf32>
    %c66 = arith.constant 66 : index
    %476 = memref.load %arg1[%c66] : memref<99xf32, #tpu.memory_space<smem>>
    %c125_i32_185 = arith.constant 125 : i32
    %477 = tpu.dynamic_rotate %461 by %c125_i32_185 dim 1 : vector<16x128xf32>, i32 -> vector<16x128xf32>
    %478 = vector.broadcast %476 : f32 to vector<16x128xf32>
    %479 = arith.mulf %478, %477 : vector<16x128xf32>
    %480 = arith.addf %475, %479 : vector<16x128xf32>
    %c67 = arith.constant 67 : index
    %481 = memref.load %arg1[%c67] : memref<99xf32, #tpu.memory_space<smem>>
    %c124_i32_186 = arith.constant 124 : i32
    %482 = tpu.dynamic_rotate %461 by %c124_i32_186 dim 1 : vector<16x128xf32>, i32 -> vector<16x128xf32>
    %483 = vector.broadcast %481 : f32 to vector<16x128xf32>
    %484 = arith.mulf %483, %482 : vector<16x128xf32>
    %485 = arith.addf %480, %484 : vector<16x128xf32>
    %c68 = arith.constant 68 : index
    %486 = memref.load %arg1[%c68] : memref<99xf32, #tpu.memory_space<smem>>
    %c123_i32_187 = arith.constant 123 : i32
    %487 = tpu.dynamic_rotate %461 by %c123_i32_187 dim 1 : vector<16x128xf32>, i32 -> vector<16x128xf32>
    %488 = vector.broadcast %486 : f32 to vector<16x128xf32>
    %489 = arith.mulf %488, %487 : vector<16x128xf32>
    %490 = arith.addf %485, %489 : vector<16x128xf32>
    %c69 = arith.constant 69 : index
    %491 = memref.load %arg1[%c69] : memref<99xf32, #tpu.memory_space<smem>>
    %c122_i32_188 = arith.constant 122 : i32
    %492 = tpu.dynamic_rotate %461 by %c122_i32_188 dim 1 : vector<16x128xf32>, i32 -> vector<16x128xf32>
    %493 = vector.broadcast %491 : f32 to vector<16x128xf32>
    %494 = arith.mulf %493, %492 : vector<16x128xf32>
    %495 = arith.addf %490, %494 : vector<16x128xf32>
    %c1_189 = arith.constant 1 : index
    %c3_190 = arith.constant 3 : index
    %c0_191 = arith.constant 0 : index
    %496 = vector.load %arg4[%c1_189, %c3_190, %c0_191] : memref<2x22x128xf32, #tpu.memory_space<vmem>>, vector<1x16x128xf32>
    %497 = vector.shape_cast %496 : vector<1x16x128xf32> to vector<16x128xf32>
    %c70 = arith.constant 70 : index
    %498 = memref.load %arg1[%c70] : memref<99xf32, #tpu.memory_space<smem>>
    %499 = vector.broadcast %498 : f32 to vector<16x128xf32>
    %500 = arith.mulf %499, %497 : vector<16x128xf32>
    %501 = arith.addf %495, %500 : vector<16x128xf32>
    %c71 = arith.constant 71 : index
    %502 = memref.load %arg1[%c71] : memref<99xf32, #tpu.memory_space<smem>>
    %c127_i32_192 = arith.constant 127 : i32
    %503 = tpu.dynamic_rotate %497 by %c127_i32_192 dim 1 : vector<16x128xf32>, i32 -> vector<16x128xf32>
    %504 = vector.broadcast %502 : f32 to vector<16x128xf32>
    %505 = arith.mulf %504, %503 : vector<16x128xf32>
    %506 = arith.addf %501, %505 : vector<16x128xf32>
    %c72 = arith.constant 72 : index
    %507 = memref.load %arg1[%c72] : memref<99xf32, #tpu.memory_space<smem>>
    %c126_i32_193 = arith.constant 126 : i32
    %508 = tpu.dynamic_rotate %497 by %c126_i32_193 dim 1 : vector<16x128xf32>, i32 -> vector<16x128xf32>
    %509 = vector.broadcast %507 : f32 to vector<16x128xf32>
    %510 = arith.mulf %509, %508 : vector<16x128xf32>
    %511 = arith.addf %506, %510 : vector<16x128xf32>
    %c73 = arith.constant 73 : index
    %512 = memref.load %arg1[%c73] : memref<99xf32, #tpu.memory_space<smem>>
    %c125_i32_194 = arith.constant 125 : i32
    %513 = tpu.dynamic_rotate %497 by %c125_i32_194 dim 1 : vector<16x128xf32>, i32 -> vector<16x128xf32>
    %514 = vector.broadcast %512 : f32 to vector<16x128xf32>
    %515 = arith.mulf %514, %513 : vector<16x128xf32>
    %516 = arith.addf %511, %515 : vector<16x128xf32>
    %c74 = arith.constant 74 : index
    %517 = memref.load %arg1[%c74] : memref<99xf32, #tpu.memory_space<smem>>
    %c124_i32_195 = arith.constant 124 : i32
    %518 = tpu.dynamic_rotate %497 by %c124_i32_195 dim 1 : vector<16x128xf32>, i32 -> vector<16x128xf32>
    %519 = vector.broadcast %517 : f32 to vector<16x128xf32>
    %520 = arith.mulf %519, %518 : vector<16x128xf32>
    %521 = arith.addf %516, %520 : vector<16x128xf32>
    %c75 = arith.constant 75 : index
    %522 = memref.load %arg1[%c75] : memref<99xf32, #tpu.memory_space<smem>>
    %c123_i32_196 = arith.constant 123 : i32
    %523 = tpu.dynamic_rotate %497 by %c123_i32_196 dim 1 : vector<16x128xf32>, i32 -> vector<16x128xf32>
    %524 = vector.broadcast %522 : f32 to vector<16x128xf32>
    %525 = arith.mulf %524, %523 : vector<16x128xf32>
    %526 = arith.addf %521, %525 : vector<16x128xf32>
    %c76 = arith.constant 76 : index
    %527 = memref.load %arg1[%c76] : memref<99xf32, #tpu.memory_space<smem>>
    %c122_i32_197 = arith.constant 122 : i32
    %528 = tpu.dynamic_rotate %497 by %c122_i32_197 dim 1 : vector<16x128xf32>, i32 -> vector<16x128xf32>
    %529 = vector.broadcast %527 : f32 to vector<16x128xf32>
    %530 = arith.mulf %529, %528 : vector<16x128xf32>
    %531 = arith.addf %526, %530 : vector<16x128xf32>
    %c1_198 = arith.constant 1 : index
    %c4_199 = arith.constant 4 : index
    %c0_200 = arith.constant 0 : index
    %532 = vector.load %arg4[%c1_198, %c4_199, %c0_200] : memref<2x22x128xf32, #tpu.memory_space<vmem>>, vector<1x16x128xf32>
    %533 = vector.shape_cast %532 : vector<1x16x128xf32> to vector<16x128xf32>
    %c77 = arith.constant 77 : index
    %534 = memref.load %arg1[%c77] : memref<99xf32, #tpu.memory_space<smem>>
    %535 = vector.broadcast %534 : f32 to vector<16x128xf32>
    %536 = arith.mulf %535, %533 : vector<16x128xf32>
    %537 = arith.addf %531, %536 : vector<16x128xf32>
    %c78 = arith.constant 78 : index
    %538 = memref.load %arg1[%c78] : memref<99xf32, #tpu.memory_space<smem>>
    %c127_i32_201 = arith.constant 127 : i32
    %539 = tpu.dynamic_rotate %533 by %c127_i32_201 dim 1 : vector<16x128xf32>, i32 -> vector<16x128xf32>
    %540 = vector.broadcast %538 : f32 to vector<16x128xf32>
    %541 = arith.mulf %540, %539 : vector<16x128xf32>
    %542 = arith.addf %537, %541 : vector<16x128xf32>
    %c79 = arith.constant 79 : index
    %543 = memref.load %arg1[%c79] : memref<99xf32, #tpu.memory_space<smem>>
    %c126_i32_202 = arith.constant 126 : i32
    %544 = tpu.dynamic_rotate %533 by %c126_i32_202 dim 1 : vector<16x128xf32>, i32 -> vector<16x128xf32>
    %545 = vector.broadcast %543 : f32 to vector<16x128xf32>
    %546 = arith.mulf %545, %544 : vector<16x128xf32>
    %547 = arith.addf %542, %546 : vector<16x128xf32>
    %c80 = arith.constant 80 : index
    %548 = memref.load %arg1[%c80] : memref<99xf32, #tpu.memory_space<smem>>
    %c125_i32_203 = arith.constant 125 : i32
    %549 = tpu.dynamic_rotate %533 by %c125_i32_203 dim 1 : vector<16x128xf32>, i32 -> vector<16x128xf32>
    %550 = vector.broadcast %548 : f32 to vector<16x128xf32>
    %551 = arith.mulf %550, %549 : vector<16x128xf32>
    %552 = arith.addf %547, %551 : vector<16x128xf32>
    %c81 = arith.constant 81 : index
    %553 = memref.load %arg1[%c81] : memref<99xf32, #tpu.memory_space<smem>>
    %c124_i32_204 = arith.constant 124 : i32
    %554 = tpu.dynamic_rotate %533 by %c124_i32_204 dim 1 : vector<16x128xf32>, i32 -> vector<16x128xf32>
    %555 = vector.broadcast %553 : f32 to vector<16x128xf32>
    %556 = arith.mulf %555, %554 : vector<16x128xf32>
    %557 = arith.addf %552, %556 : vector<16x128xf32>
    %c82 = arith.constant 82 : index
    %558 = memref.load %arg1[%c82] : memref<99xf32, #tpu.memory_space<smem>>
    %c123_i32_205 = arith.constant 123 : i32
    %559 = tpu.dynamic_rotate %533 by %c123_i32_205 dim 1 : vector<16x128xf32>, i32 -> vector<16x128xf32>
    %560 = vector.broadcast %558 : f32 to vector<16x128xf32>
    %561 = arith.mulf %560, %559 : vector<16x128xf32>
    %562 = arith.addf %557, %561 : vector<16x128xf32>
    %c83 = arith.constant 83 : index
    %563 = memref.load %arg1[%c83] : memref<99xf32, #tpu.memory_space<smem>>
    %c122_i32_206 = arith.constant 122 : i32
    %564 = tpu.dynamic_rotate %533 by %c122_i32_206 dim 1 : vector<16x128xf32>, i32 -> vector<16x128xf32>
    %565 = vector.broadcast %563 : f32 to vector<16x128xf32>
    %566 = arith.mulf %565, %564 : vector<16x128xf32>
    %567 = arith.addf %562, %566 : vector<16x128xf32>
    %c1_207 = arith.constant 1 : index
    %c5_208 = arith.constant 5 : index
    %c0_209 = arith.constant 0 : index
    %568 = vector.load %arg4[%c1_207, %c5_208, %c0_209] : memref<2x22x128xf32, #tpu.memory_space<vmem>>, vector<1x16x128xf32>
    %569 = vector.shape_cast %568 : vector<1x16x128xf32> to vector<16x128xf32>
    %c84 = arith.constant 84 : index
    %570 = memref.load %arg1[%c84] : memref<99xf32, #tpu.memory_space<smem>>
    %571 = vector.broadcast %570 : f32 to vector<16x128xf32>
    %572 = arith.mulf %571, %569 : vector<16x128xf32>
    %573 = arith.addf %567, %572 : vector<16x128xf32>
    %c85 = arith.constant 85 : index
    %574 = memref.load %arg1[%c85] : memref<99xf32, #tpu.memory_space<smem>>
    %c127_i32_210 = arith.constant 127 : i32
    %575 = tpu.dynamic_rotate %569 by %c127_i32_210 dim 1 : vector<16x128xf32>, i32 -> vector<16x128xf32>
    %576 = vector.broadcast %574 : f32 to vector<16x128xf32>
    %577 = arith.mulf %576, %575 : vector<16x128xf32>
    %578 = arith.addf %573, %577 : vector<16x128xf32>
    %c86 = arith.constant 86 : index
    %579 = memref.load %arg1[%c86] : memref<99xf32, #tpu.memory_space<smem>>
    %c126_i32_211 = arith.constant 126 : i32
    %580 = tpu.dynamic_rotate %569 by %c126_i32_211 dim 1 : vector<16x128xf32>, i32 -> vector<16x128xf32>
    %581 = vector.broadcast %579 : f32 to vector<16x128xf32>
    %582 = arith.mulf %581, %580 : vector<16x128xf32>
    %583 = arith.addf %578, %582 : vector<16x128xf32>
    %c87 = arith.constant 87 : index
    %584 = memref.load %arg1[%c87] : memref<99xf32, #tpu.memory_space<smem>>
    %c125_i32_212 = arith.constant 125 : i32
    %585 = tpu.dynamic_rotate %569 by %c125_i32_212 dim 1 : vector<16x128xf32>, i32 -> vector<16x128xf32>
    %586 = vector.broadcast %584 : f32 to vector<16x128xf32>
    %587 = arith.mulf %586, %585 : vector<16x128xf32>
    %588 = arith.addf %583, %587 : vector<16x128xf32>
    %c88 = arith.constant 88 : index
    %589 = memref.load %arg1[%c88] : memref<99xf32, #tpu.memory_space<smem>>
    %c124_i32_213 = arith.constant 124 : i32
    %590 = tpu.dynamic_rotate %569 by %c124_i32_213 dim 1 : vector<16x128xf32>, i32 -> vector<16x128xf32>
    %591 = vector.broadcast %589 : f32 to vector<16x128xf32>
    %592 = arith.mulf %591, %590 : vector<16x128xf32>
    %593 = arith.addf %588, %592 : vector<16x128xf32>
    %c89 = arith.constant 89 : index
    %594 = memref.load %arg1[%c89] : memref<99xf32, #tpu.memory_space<smem>>
    %c123_i32_214 = arith.constant 123 : i32
    %595 = tpu.dynamic_rotate %569 by %c123_i32_214 dim 1 : vector<16x128xf32>, i32 -> vector<16x128xf32>
    %596 = vector.broadcast %594 : f32 to vector<16x128xf32>
    %597 = arith.mulf %596, %595 : vector<16x128xf32>
    %598 = arith.addf %593, %597 : vector<16x128xf32>
    %c90 = arith.constant 90 : index
    %599 = memref.load %arg1[%c90] : memref<99xf32, #tpu.memory_space<smem>>
    %c122_i32_215 = arith.constant 122 : i32
    %600 = tpu.dynamic_rotate %569 by %c122_i32_215 dim 1 : vector<16x128xf32>, i32 -> vector<16x128xf32>
    %601 = vector.broadcast %599 : f32 to vector<16x128xf32>
    %602 = arith.mulf %601, %600 : vector<16x128xf32>
    %603 = arith.addf %598, %602 : vector<16x128xf32>
    %c1_216 = arith.constant 1 : index
    %c6_217 = arith.constant 6 : index
    %c0_218 = arith.constant 0 : index
    %604 = vector.load %arg4[%c1_216, %c6_217, %c0_218] : memref<2x22x128xf32, #tpu.memory_space<vmem>>, vector<1x16x128xf32>
    %605 = vector.shape_cast %604 : vector<1x16x128xf32> to vector<16x128xf32>
    %c91 = arith.constant 91 : index
    %606 = memref.load %arg1[%c91] : memref<99xf32, #tpu.memory_space<smem>>
    %607 = vector.broadcast %606 : f32 to vector<16x128xf32>
    %608 = arith.mulf %607, %605 : vector<16x128xf32>
    %609 = arith.addf %603, %608 : vector<16x128xf32>
    %c92 = arith.constant 92 : index
    %610 = memref.load %arg1[%c92] : memref<99xf32, #tpu.memory_space<smem>>
    %c127_i32_219 = arith.constant 127 : i32
    %611 = tpu.dynamic_rotate %605 by %c127_i32_219 dim 1 : vector<16x128xf32>, i32 -> vector<16x128xf32>
    %612 = vector.broadcast %610 : f32 to vector<16x128xf32>
    %613 = arith.mulf %612, %611 : vector<16x128xf32>
    %614 = arith.addf %609, %613 : vector<16x128xf32>
    %c93 = arith.constant 93 : index
    %615 = memref.load %arg1[%c93] : memref<99xf32, #tpu.memory_space<smem>>
    %c126_i32_220 = arith.constant 126 : i32
    %616 = tpu.dynamic_rotate %605 by %c126_i32_220 dim 1 : vector<16x128xf32>, i32 -> vector<16x128xf32>
    %617 = vector.broadcast %615 : f32 to vector<16x128xf32>
    %618 = arith.mulf %617, %616 : vector<16x128xf32>
    %619 = arith.addf %614, %618 : vector<16x128xf32>
    %c94 = arith.constant 94 : index
    %620 = memref.load %arg1[%c94] : memref<99xf32, #tpu.memory_space<smem>>
    %c125_i32_221 = arith.constant 125 : i32
    %621 = tpu.dynamic_rotate %605 by %c125_i32_221 dim 1 : vector<16x128xf32>, i32 -> vector<16x128xf32>
    %622 = vector.broadcast %620 : f32 to vector<16x128xf32>
    %623 = arith.mulf %622, %621 : vector<16x128xf32>
    %624 = arith.addf %619, %623 : vector<16x128xf32>
    %c95 = arith.constant 95 : index
    %625 = memref.load %arg1[%c95] : memref<99xf32, #tpu.memory_space<smem>>
    %c124_i32_222 = arith.constant 124 : i32
    %626 = tpu.dynamic_rotate %605 by %c124_i32_222 dim 1 : vector<16x128xf32>, i32 -> vector<16x128xf32>
    %627 = vector.broadcast %625 : f32 to vector<16x128xf32>
    %628 = arith.mulf %627, %626 : vector<16x128xf32>
    %629 = arith.addf %624, %628 : vector<16x128xf32>
    %c96 = arith.constant 96 : index
    %630 = memref.load %arg1[%c96] : memref<99xf32, #tpu.memory_space<smem>>
    %c123_i32_223 = arith.constant 123 : i32
    %631 = tpu.dynamic_rotate %605 by %c123_i32_223 dim 1 : vector<16x128xf32>, i32 -> vector<16x128xf32>
    %632 = vector.broadcast %630 : f32 to vector<16x128xf32>
    %633 = arith.mulf %632, %631 : vector<16x128xf32>
    %634 = arith.addf %629, %633 : vector<16x128xf32>
    %c97 = arith.constant 97 : index
    %635 = memref.load %arg1[%c97] : memref<99xf32, #tpu.memory_space<smem>>
    %c122_i32_224 = arith.constant 122 : i32
    %636 = tpu.dynamic_rotate %605 by %c122_i32_224 dim 1 : vector<16x128xf32>, i32 -> vector<16x128xf32>
    %637 = vector.broadcast %635 : f32 to vector<16x128xf32>
    %638 = arith.mulf %637, %636 : vector<16x128xf32>
    %639 = arith.addf %634, %638 : vector<16x128xf32>
    %c98 = arith.constant 98 : index
    %640 = memref.load %arg1[%c98] : memref<99xf32, #tpu.memory_space<smem>>
    %641 = arith.addf %388, %639 : vector<16x128xf32>
    %642 = vector.broadcast %640 : f32 to vector<16x128xf32>
    %643 = arith.addf %641, %642 : vector<16x128xf32>
    %644 = arith.negf %643 : vector<16x128xf32>
    %645 = math.exp %644 : vector<16x128xf32>
    %cst_225 = arith.constant 1.000000e+00 : f32
    %646 = vector.broadcast %cst_225 : f32 to vector<16x128xf32>
    %647 = arith.addf %646, %645 : vector<16x128xf32>
    %648 = arith.divf %646, %647 : vector<16x128xf32>
    %649 = vector.extract_strided_slice %648 {offsets = [0, 0], sizes = [1, 16], strides = [1, 1]} : vector<16x128xf32> to vector<1x16xf32>
    %c0_226 = arith.constant 0 : index
    %c0_227 = arith.constant 0 : index
    %650 = vector.load %arg5[%c0_226, %c0_227] : memref<1x256xf32, #tpu.memory_space<vmem>>, vector<1x16xf32>
    tpu.vector_store %arg5[%c0_226, %c0_227], %649 {strides = array<i32>} : memref<1x256xf32, #tpu.memory_space<vmem>>, vector<1x16xf32>,
    %651 = vector.extract_strided_slice %648 {offsets = [1, 0], sizes = [1, 16], strides = [1, 1]} : vector<16x128xf32> to vector<1x16xf32>
    %c0_228 = arith.constant 0 : index
    %c16_229 = arith.constant 16 : index
    %652 = vector.load %arg5[%c0_228, %c16_229] : memref<1x256xf32, #tpu.memory_space<vmem>>, vector<1x16xf32>
    tpu.vector_store %arg5[%c0_228, %c16_229], %651 {strides = array<i32>} : memref<1x256xf32, #tpu.memory_space<vmem>>, vector<1x16xf32>,
    %653 = vector.extract_strided_slice %648 {offsets = [2, 0], sizes = [1, 16], strides = [1, 1]} : vector<16x128xf32> to vector<1x16xf32>
    %c0_230 = arith.constant 0 : index
    %c32_231 = arith.constant 32 : index
    %654 = vector.load %arg5[%c0_230, %c32_231] : memref<1x256xf32, #tpu.memory_space<vmem>>, vector<1x16xf32>
    tpu.vector_store %arg5[%c0_230, %c32_231], %653 {strides = array<i32>} : memref<1x256xf32, #tpu.memory_space<vmem>>, vector<1x16xf32>,
    %655 = vector.extract_strided_slice %648 {offsets = [3, 0], sizes = [1, 16], strides = [1, 1]} : vector<16x128xf32> to vector<1x16xf32>
    %c0_232 = arith.constant 0 : index
    %c48_233 = arith.constant 48 : index
    %656 = vector.load %arg5[%c0_232, %c48_233] : memref<1x256xf32, #tpu.memory_space<vmem>>, vector<1x16xf32>
    tpu.vector_store %arg5[%c0_232, %c48_233], %655 {strides = array<i32>} : memref<1x256xf32, #tpu.memory_space<vmem>>, vector<1x16xf32>,
    %657 = vector.extract_strided_slice %648 {offsets = [4, 0], sizes = [1, 16], strides = [1, 1]} : vector<16x128xf32> to vector<1x16xf32>
    %c0_234 = arith.constant 0 : index
    %c64_235 = arith.constant 64 : index
    %658 = vector.load %arg5[%c0_234, %c64_235] : memref<1x256xf32, #tpu.memory_space<vmem>>, vector<1x16xf32>
    tpu.vector_store %arg5[%c0_234, %c64_235], %657 {strides = array<i32>} : memref<1x256xf32, #tpu.memory_space<vmem>>, vector<1x16xf32>,
    %659 = vector.extract_strided_slice %648 {offsets = [5, 0], sizes = [1, 16], strides = [1, 1]} : vector<16x128xf32> to vector<1x16xf32>
    %c0_236 = arith.constant 0 : index
    %c80_237 = arith.constant 80 : index
    %660 = vector.load %arg5[%c0_236, %c80_237] : memref<1x256xf32, #tpu.memory_space<vmem>>, vector<1x16xf32>
    tpu.vector_store %arg5[%c0_236, %c80_237], %659 {strides = array<i32>} : memref<1x256xf32, #tpu.memory_space<vmem>>, vector<1x16xf32>,
    %661 = vector.extract_strided_slice %648 {offsets = [6, 0], sizes = [1, 16], strides = [1, 1]} : vector<16x128xf32> to vector<1x16xf32>
    %c0_238 = arith.constant 0 : index
    %c96_239 = arith.constant 96 : index
    %662 = vector.load %arg5[%c0_238, %c96_239] : memref<1x256xf32, #tpu.memory_space<vmem>>, vector<1x16xf32>
    tpu.vector_store %arg5[%c0_238, %c96_239], %661 {strides = array<i32>} : memref<1x256xf32, #tpu.memory_space<vmem>>, vector<1x16xf32>,
    %663 = vector.extract_strided_slice %648 {offsets = [7, 0], sizes = [1, 16], strides = [1, 1]} : vector<16x128xf32> to vector<1x16xf32>
    %c0_240 = arith.constant 0 : index
    %c112 = arith.constant 112 : index
    %664 = vector.load %arg5[%c0_240, %c112] : memref<1x256xf32, #tpu.memory_space<vmem>>, vector<1x16xf32>
    tpu.vector_store %arg5[%c0_240, %c112], %663 {strides = array<i32>} : memref<1x256xf32, #tpu.memory_space<vmem>>, vector<1x16xf32>,
    %665 = vector.extract_strided_slice %648 {offsets = [8, 0], sizes = [1, 16], strides = [1, 1]} : vector<16x128xf32> to vector<1x16xf32>
    %c0_241 = arith.constant 0 : index
    %c128 = arith.constant 128 : index
    %666 = vector.load %arg5[%c0_241, %c128] : memref<1x256xf32, #tpu.memory_space<vmem>>, vector<1x16xf32>
    tpu.vector_store %arg5[%c0_241, %c128], %665 {strides = array<i32>} : memref<1x256xf32, #tpu.memory_space<vmem>>, vector<1x16xf32>,
    %667 = vector.extract_strided_slice %648 {offsets = [9, 0], sizes = [1, 16], strides = [1, 1]} : vector<16x128xf32> to vector<1x16xf32>
    %c0_242 = arith.constant 0 : index
    %c144 = arith.constant 144 : index
    %668 = vector.load %arg5[%c0_242, %c144] : memref<1x256xf32, #tpu.memory_space<vmem>>, vector<1x16xf32>
    tpu.vector_store %arg5[%c0_242, %c144], %667 {strides = array<i32>} : memref<1x256xf32, #tpu.memory_space<vmem>>, vector<1x16xf32>,
    %669 = vector.extract_strided_slice %648 {offsets = [10, 0], sizes = [1, 16], strides = [1, 1]} : vector<16x128xf32> to vector<1x16xf32>
    %c0_243 = arith.constant 0 : index
    %c160 = arith.constant 160 : index
    %670 = vector.load %arg5[%c0_243, %c160] : memref<1x256xf32, #tpu.memory_space<vmem>>, vector<1x16xf32>
    tpu.vector_store %arg5[%c0_243, %c160], %669 {strides = array<i32>} : memref<1x256xf32, #tpu.memory_space<vmem>>, vector<1x16xf32>,
    %671 = vector.extract_strided_slice %648 {offsets = [11, 0], sizes = [1, 16], strides = [1, 1]} : vector<16x128xf32> to vector<1x16xf32>
    %c0_244 = arith.constant 0 : index
    %c176 = arith.constant 176 : index
    %672 = vector.load %arg5[%c0_244, %c176] : memref<1x256xf32, #tpu.memory_space<vmem>>, vector<1x16xf32>
    tpu.vector_store %arg5[%c0_244, %c176], %671 {strides = array<i32>} : memref<1x256xf32, #tpu.memory_space<vmem>>, vector<1x16xf32>,
    %673 = vector.extract_strided_slice %648 {offsets = [12, 0], sizes = [1, 16], strides = [1, 1]} : vector<16x128xf32> to vector<1x16xf32>
    %c0_245 = arith.constant 0 : index
    %c192 = arith.constant 192 : index
    %674 = vector.load %arg5[%c0_245, %c192] : memref<1x256xf32, #tpu.memory_space<vmem>>, vector<1x16xf32>
    tpu.vector_store %arg5[%c0_245, %c192], %673 {strides = array<i32>} : memref<1x256xf32, #tpu.memory_space<vmem>>, vector<1x16xf32>,
    %675 = vector.extract_strided_slice %648 {offsets = [13, 0], sizes = [1, 16], strides = [1, 1]} : vector<16x128xf32> to vector<1x16xf32>
    %c0_246 = arith.constant 0 : index
    %c208 = arith.constant 208 : index
    %676 = vector.load %arg5[%c0_246, %c208] : memref<1x256xf32, #tpu.memory_space<vmem>>, vector<1x16xf32>
    tpu.vector_store %arg5[%c0_246, %c208], %675 {strides = array<i32>} : memref<1x256xf32, #tpu.memory_space<vmem>>, vector<1x16xf32>,
    %677 = vector.extract_strided_slice %648 {offsets = [14, 0], sizes = [1, 16], strides = [1, 1]} : vector<16x128xf32> to vector<1x16xf32>
    %c0_247 = arith.constant 0 : index
    %c224 = arith.constant 224 : index
    %678 = vector.load %arg5[%c0_247, %c224] : memref<1x256xf32, #tpu.memory_space<vmem>>, vector<1x16xf32>
    tpu.vector_store %arg5[%c0_247, %c224], %677 {strides = array<i32>} : memref<1x256xf32, #tpu.memory_space<vmem>>, vector<1x16xf32>,
    %679 = vector.extract_strided_slice %648 {offsets = [15, 0], sizes = [1, 16], strides = [1, 1]} : vector<16x128xf32> to vector<1x16xf32>
    %c0_248 = arith.constant 0 : index
    %c240 = arith.constant 240 : index
    %680 = vector.load %arg5[%c0_248, %c240] : memref<1x256xf32, #tpu.memory_space<vmem>>, vector<1x16xf32>
    tpu.vector_store %arg5[%c0_248, %c240], %679 {strides = array<i32>} : memref<1x256xf32, #tpu.memory_space<vmem>>, vector<1x16xf32>,
    %c0_249 = arith.constant 0 : index
    %c0_250 = arith.constant 0 : index
    %681 = vector.load %arg5[%c0_249, %c0_250] : memref<1x256xf32, #tpu.memory_space<vmem>>, vector<1x256xf32>
    %682 = vector.shape_cast %681 : vector<1x256xf32> to vector<1x256xf32>
    %683 = vector.broadcast %682 : vector<1x256xf32> to vector<4x256xf32>
    %c0_251 = arith.constant 0 : index
    %c0_252 = arith.constant 0 : index
    %c0_253 = arith.constant 0 : index
    %684 = vector.load %arg2[%c0_251, %c0_252, %c0_253] : memref<1x4x256xf32, #tpu.memory_space<vmem>>, vector<1x4x256xf32>
    %685 = vector.shape_cast %684 : vector<1x4x256xf32> to vector<4x256xf32>
    %686 = arith.mulf %685, %683 : vector<4x256xf32>
    %c0_254 = arith.constant 0 : index
    %c0_255 = arith.constant 0 : index
    %c0_256 = arith.constant 0 : index
    %687 = vector.load %arg3[%c0_254, %c0_255, %c0_256] : memref<1x4x256xf32, #tpu.memory_space<vmem>>, vector<1x4x256xf32>
    %688 = vector.shape_cast %687 : vector<1x4x256xf32> to vector<4x256xf32>
    %689 = vector.shape_cast %686 : vector<4x256xf32> to vector<1x4x256xf32>
    tpu.vector_store %arg3[%c0_254, %c0_255, %c0_256], %689 {strides = array<i32>} : memref<1x4x256xf32, #tpu.memory_space<vmem>>, vector<1x4x256xf32>,
    return
  }
  func.func @transform_0(%arg0: i32) -> i32 {
    %c0_i32 = arith.constant 0 : i32
    %c0_i32_0 = arith.constant 0 : i32
    return %c0_i32 : i32
  }
  func.func @transform_1(%arg0: i32) -> (i32, i32, i32) {
    %c0_i32 = arith.constant 0 : i32
    %c0_i32_0 = arith.constant 0 : i32
    %c0_i32_1 = arith.constant 0 : i32
    return %arg0, %c0_i32, %c0_i32_0 : i32, i32, i32
  }
  func.func @transform_2(%arg0: i32) -> (i32, i32, i32) {
    %c0_i32 = arith.constant 0 : i32
    %c0_i32_0 = arith.constant 0 : i32
    %c0_i32_1 = arith.constant 0 : i32
    return %arg0, %c0_i32, %c0_i32_0 : i32, i32, i32
  }
}

</mosaic_0001>

<llo_original>
// kernel: tpu_custom_call.1
$region0: #{tpu_custom_call.1}
  #allocation0 [shape = 'u32[]', space=smem, size = 0x4, offset = 0x4, fixed_abs, tag = 'smem constant byte address 0x4 - core index']
  #allocation1 [shape = 'u32[144,128]{1,0:T(1,128)}', space=vmem, size = 0x12000, scoped, tag = 'internal scratch']
  #allocation2 [shape = 'f32[2,22,128]{2,1,0:T(8,128)}', space=vmem, size = 0x6000, scoped, tag = 'scratch operand']
  #allocation3 [shape = 'f32[1,256]{1,0:T(1,128)}', space=vmem, size = 0x400, scoped, tag = 'scratch operand']
  %s0 = inlined_call_operand.hbm [shape: f32[99], index: 0, kind: input, shape index: {}]
  %s1 = inlined_call_operand.hbm [shape: f32[2,4,256], index: 1, kind: input, shape index: {}]
  %s2 = inlined_call_operand.hbm [shape: f32[2,4,256], index: 2, kind: output, shape index: {}]
  %s3 = sld [smem:[#allocation0]]
  $region49: #{tpu_custom_call.1} parent=0
    _
  %s5 = ssub.s32 1, %s3
  %s6 = scalar_select 0, %s5, %s3
  $region1: #{tpu_custom_call.1} parent=0
    #allocation4 [shape = 'u8[512]{0}', space=smem, size = 0x200, scoped, tag = 'input window, operand 0, single buffered']
    #allocation5 [shape = 's32[2]{0}', space=sflag, size = 0x8, scoped, tag = 'scoped memory for tpu_custom_call.1']
    #allocation6 [shape = 's32[2]{0}', space=sflag, size = 0x8, scoped, tag = 'scoped memory for tpu_custom_call.1']
    #allocation7 [shape = 's32[2]{0}', space=sflag, size = 0x8, scoped, tag = 'scoped memory for tpu_custom_call.1']
    #allocation8 [shape = 'u8[8192]{0}', space=vmem, size = 0x2000, scoped, tag = 'input window, operand 1']
    #allocation9 [shape = 'u8[8192]{0}', space=vmem, size = 0x2000, scoped, tag = 'output window, operand 0']
    %7 = vsyncpa [#allocation7], 0
    %8 = vsyncpa [#allocation5], 0
    %s9 = scalar_lea.sflag [#allocation5], 1
    %10 = vsyncpa %s9, 0
    %11 = vsyncpa [#allocation6], 0
    %s12 = scalar_lea.sflag [#allocation6], 1
    %13 = vsyncpa %s12, 0
    loop: start=0, step=1, limit=4
    $region2: #{tpu_custom_call.1} parent=1 // loop_pre_header
      _
    $region3: #{tpu_custom_call.1} parent=1 // loop_header
      %s15 = sphi 0, %s19
      %p16 = scmp.ge.s32.totalorder %s15, 4
      %s23 = sphi 0, %s23
      %s25 = sphi 0, %s23
      %s26 = sphi 0, %s25
      %s40 = sphi 0, %s26
      %s46 = sphi 0, %s48
      %s49 = sphi 0, %s46
      %s50 = sphi 0, %s49
      %s66 = sphi 0, %s50
      %s72 = sphi 0, %s74
      %s75 = sphi 0, %s72
      %s76 = sphi 0, %s75
      %s92 = sphi 0, %s76
    $region4: #{tpu_custom_call.1} parent=1 // loop_header_branch
      %18 = sbr.rel (%p16) target = $region8
    $region5: #{tpu_custom_call.1} parent=1 // loop_body
      %s20 = ssub.s32 %s15, 1
      %s21 = ssub.s32 %s15, 2
      %s22 = sadd.s32 %s15, 1
      %s24 = sadd.s32 %s23, 1
      %p27 = scmp.eq.s32.totalorder %s15, 1
      %p28 = scmp.ne.s32.totalorder %s23, %s25
      %p29 = scmp.eq.s32.totalorder %s15, 0
      %p30 = por %p28, %p29
      %p31 = scmp.ne.s32.totalorder %s23, %s25
      %p32 = scmp.eq.s32.totalorder %s20, 1
      %p33 = por %p31, %p32
      %p34 = scmp.ne.s32.totalorder %s25, %s26
      %p35 = scmp.eq.s32.totalorder %s20, 0
      %p36 = por %p34, %p35
      %p37 = scmp.ne.s32.totalorder %s25, %s26
      %p38 = scmp.eq.s32.totalorder %s21, 1
      %p39 = por %p37, %p38
      %p41 = scmp.ne.s32.totalorder %s26, %s40
      %p42 = scmp.eq.s32.totalorder %s21, 0
      %p43 = por %p41, %p42
      %s44 = ssub.s32 %s15, %s22
      %p45 = scmp.eq.s32.totalorder %s44, 0
      %s47 = sadd.s32 %s46, 1
      %s48 = scalar_select %p45, %s46, %s47
      %p51 = pneg %p45
      %p52 = scmp.eq.s32.totalorder %s15, 1
      %p53 = por %p51, %p52
      %p54 = scmp.ne.s32.totalorder %s46, %s49
      %p55 = scmp.eq.s32.totalorder %s15, 0
      %p56 = por %p54, %p55
      %p57 = scmp.ne.s32.totalorder %s46, %s49
      %p58 = scmp.eq.s32.totalorder %s20, 1
      %p59 = por %p57, %p58
      %p60 = scmp.ne.s32.totalorder %s49, %s50
      %p61 = scmp.eq.s32.totalorder %s20, 0
      %p62 = por %p60, %p61
      %p63 = scmp.ne.s32.totalorder %s49, %s50
      %p64 = scmp.eq.s32.totalorder %s21, 1
      %p65 = por %p63, %p64
      %p67 = scmp.ne.s32.totalorder %s50, %s66
      %p68 = scmp.eq.s32.totalorder %s21, 0
      %p69 = por %p67, %p68
      %s70 = ssub.s32 %s15, %s22
      %p71 = scmp.eq.s32.totalorder %s70, 0
      %s73 = sadd.s32 %s72, 1
      %s74 = scalar_select %p71, %s72, %s73
      %p77 = pneg %p71
      %p78 = scmp.eq.s32.totalorder %s15, 1
      %p79 = por %p77, %p78
      %p80 = scmp.ne.s32.totalorder %s72, %s75
      %p81 = scmp.eq.s32.totalorder %s15, 0
      %p82 = por %p80, %p81
      %p83 = scmp.ne.s32.totalorder %s72, %s75
      %p84 = scmp.eq.s32.totalorder %s20, 1
      %p85 = por %p83, %p84
      %p86 = scmp.ne.s32.totalorder %s75, %s76
      %p87 = scmp.eq.s32.totalorder %s20, 0
      %p88 = por %p86, %p87
      %p89 = scmp.ne.s32.totalorder %s75, %s76
      %p90 = scmp.eq.s32.totalorder %s21, 1
      %p91 = por %p89, %p90
      %p93 = scmp.ne.s32.totalorder %s76, %s92
      %p94 = scmp.eq.s32.totalorder %s21, 0
      %p95 = por %p93, %p94
      %p96 = scmp.le.s32.totalorder 1, %s15
      %p97 = scmp.lt.s32.totalorder %s15, 3
      %p98 = pnand %p96, %p97
      %p99 = pneg %p98
      // Predicated region
      $region9: #{tpu_custom_call.1} parent=5 // pred_check
        _
      $region10: #{tpu_custom_call.1} parent=5 // pred_check_branch
        %101 = sbr.rel (%p98) target = $region12
      $region11: #{tpu_custom_call.1} parent=5 // pred_region
        %s102 = ssub.s32 %s15, 1
        // Predicated region
        $region13: #{tpu_custom_call.1} parent=11 // pred_check
          %p103 = pneg %p36
        $region14: #{tpu_custom_call.1} parent=11 // pred_check_branch
          %105 = sbr.rel (%p103) target = $region16
        $region15: #{tpu_custom_call.1} parent=11 // pred_region
          %s107 = ssub.s32 16, 16
          %108 = vsyncadd [#allocation7], %s107
          %111 = dma.hbm_to_smem %s0, 16, [#allocation4], [#allocation7]
        $region16: #{tpu_custom_call.1} parent=11 // pred_fallthru
          _
      $region12: #{tpu_custom_call.1} parent=5 // pred_fallthru
        _
      %p112 = scmp.lt.s32.totalorder %s15, 2
      // Predicated region
      $region17: #{tpu_custom_call.1} parent=5 // pred_check
        %p113 = pneg %p112
      $region18: #{tpu_custom_call.1} parent=5 // pred_check_branch
        %115 = sbr.rel (%p113) target = $region20
      $region19: #{tpu_custom_call.1} parent=5 // pred_region
        // Predicated region
        $region21: #{tpu_custom_call.1} parent=19 // pred_check
          %p116 = pneg %p56
        $region22: #{tpu_custom_call.1} parent=19 // pred_check_branch
          %118 = sbr.rel (%p116) target = $region24
        $region23: #{tpu_custom_call.1} parent=19 // pred_region
          %s119 = sand.u32 %s46, 1
          %s120 = scalar_lea.sflag [#allocation5], %s119
          %s121 = sand.u32 %s46, 1
          %s122 = smul.addr %s121, 8
          %s123 = scalar_lea.vmem [#allocation8], %s122
          %s125 = ssub.s32 128, 128
          %126 = vsyncadd %s120, %s125
          %s127 = smul.addr %s15, 2
          %s128 = smul.addr %s127, 64
          %s129 = scalar_lea.hbm %s1, %s128
          %s131 = sshll.u32 %s123, 4
          %s132 = int_to_ptr.vmem [resolvable:$true] %s131
          %134 = dma.hbm_to_vmem [thread:$0]  %s129, 128, %s132, %s120
        $region24: #{tpu_custom_call.1} parent=19 // pred_fallthru
          _
      $region20: #{tpu_custom_call.1} parent=5 // pred_fallthru
        _
      %p135 = scmp.le.s32.totalorder 1, %s15
      %p136 = scmp.lt.s32.totalorder %s15, 3
      %p137 = pnand %p135, %p136
      %p138 = pneg %p137
      // Predicated region
      $region25: #{tpu_custom_call.1} parent=5 // pred_check
        _
      $region26: #{tpu_custom_call.1} parent=5 // pred_check_branch
        %140 = sbr.rel (%p137) target = $region28
      $region27: #{tpu_custom_call.1} parent=5 // pred_region
        %s141 = ssub.s32 %s15, 1
        // Predicated region
        $region29: #{tpu_custom_call.1} parent=27 // pred_check
          %p142 = pneg %p36
        $region30: #{tpu_custom_call.1} parent=27 // pred_check_branch
          %144 = sbr.rel (%p142) target = $region32
        $region31: #{tpu_custom_call.1} parent=27 // pred_region
          %145 = dma.done [#allocation7], 16
        $region32: #{tpu_custom_call.1} parent=27 // pred_fallthru
          _
        %s146 = sand.u32 %s49, 1
        %s147 = scalar_lea.sflag [#allocation5], %s146
        %s148 = sand.u32 %s49, 1
        %s149 = smul.addr %s148, 8
        %s150 = scalar_lea.vmem [#allocation8], %s149
        // Predicated region
        $region33: #{tpu_custom_call.1} parent=27 // pred_check
          %p151 = pneg %p62
        $region34: #{tpu_custom_call.1} parent=27 // pred_check_branch
          %153 = sbr.rel (%p151) target = $region36
        $region35: #{tpu_custom_call.1} parent=27 // pred_region
          %154 = dma.done %s147, 128
        $region36: #{tpu_custom_call.1} parent=27 // pred_fallthru
          _
        %155 = sfence
        %p156 = pneg %p36
        %p157 = pneg %p33
        %s158 = sand.u32 %s49, 1
        %s159 = scalar_lea.sflag [#allocation5], %s158
        %s160 = sand.u32 %s49, 1
        %s161 = smul.addr %s160, 8
        %s162 = scalar_lea.vmem [#allocation8], %s161
        %p163 = pneg %p62
        %p164 = pneg %p59
        %p165 = pneg %p88
        %p166 = pneg %p85
        %s167 = sand.u32 %s75, 1
        %s168 = scalar_lea.sflag [#allocation6], %s167
        %s169 = sand.u32 %s75, 1
        %s170 = smul.addr %s169, 8
        %s171 = scalar_lea.vmem [#allocation9], %s170
        %172 = vst [vmem:[#allocation2] sm:$0xff] 0.0
        %173 = vst [vmem:[#allocation2 + $0x8] sm:$0xff] 0.0
        %174 = vst [vmem:[#allocation2 + $0x10] sm:$0x3f] 0.0
        %175 = vst [vmem:[#allocation2 + $0x18] sm:$0xff] 0.0
        %176 = vst [vmem:[#allocation2 + $0x20] sm:$0xff] 0.0
        %177 = vst [vmem:[#allocation2 + $0x28] sm:$0x3f] 0.0
        %v178 = vld [vmem:[%s150] sm:$0xff]
        %v180 = vcombine.high %v178, %v178
        %vm182 = vcmask 1043456
        %v183 = vsel %vm182, %v178, -inf
        %v184 = vrot.slane %v183, 4
        %v185 = vmax.f32 %v183, %v184
        %v186 = vrot.slane %v185, 2
        %v187 = vmax.f32 %v185, %v186
        %v188 = vrot.slane %v187, 1
        %v189 = vmax.f32 %v187, %v188
        %v190 = vsel %vm182, %v180, -inf
        %v191 = vrot.slane %v190, 4
        %v192 = vmax.f32 %v190, %v191
        %v193 = vrot.slane %v192, 2
        %v194 = vmax.f32 %v192, %v193
        %v195 = vrot.slane %v194, 1
        %v196 = vmax.f32 %v194, %v195
        %v197 = vsel %vm182, %v178, 0.0
        %v198 = vrot.slane %v197, 4
        %v199 = vadd.f32 %v197, %v198
        %v200 = vrot.slane %v199, 2
        %v201 = vadd.f32 %v199, %v200
        %v202 = vrot.slane %v201, 1
        %v203 = vadd.f32 %v201, %v202
        %v204 = vsel %vm182, %v180, 0.0
        %v205 = vrot.slane %v204, 4
        %v206 = vadd.f32 %v204, %v205
        %v207 = vrot.slane %v206, 2
        %v208 = vadd.f32 %v206, %v207
        %v209 = vrot.slane %v208, 1
        %v210 = vadd.f32 %v208, %v209
        %v211 = vmul.f32 %v203, 0.25
        %v212 = vmul.f32 %v210, 0.25
        %214 = vrot.lane.b32.xlu0 %v189, 3
        %v215 = vpop.permute.xlu0 %214
        %vm217 = vcmask 147480
        %218 = vst.msk [vmem:[#allocation2 + $0x3] sm:$0x1] %vm217, %v215
        %220 = vrot.lane.b32.xlu0 %v211, 3
        %v221 = vpop.permute.xlu0 %220
        %s223 = scalar_lea.vmem [#allocation2], 24
        %224 = vst.msk [vmem:[%s223 + $0x3] sm:$0x1] %vm217, %v221
        %225 = vrot.lane.b32.xlu0 %v189, 115
        %v226 = vpop.permute.xlu0 %225
        %228 = vst.msk [vmem:[#allocation2 + $0x4] sm:$0x1] %vm217, %v226
        %229 = vrot.lane.b32.xlu0 %v211, 115
        %v230 = vpop.permute.xlu0 %229
        %232 = vst.msk [vmem:[%s223 + $0x4] sm:$0x1] %vm217, %v230
        %233 = vrot.lane.b32.xlu0 %v189, 99
        %v234 = vpop.permute.xlu0 %233
        %236 = vst.msk [vmem:[#allocation2 + $0x5] sm:$0x1] %vm217, %v234
        %237 = vrot.lane.b32.xlu0 %v211, 99
        %v238 = vpop.permute.xlu0 %237
        %240 = vst.msk [vmem:[%s223 + $0x5] sm:$0x1] %vm217, %v238
        %241 = vrot.lane.b32.xlu0 %v189, 83
        %v242 = vpop.permute.xlu0 %241
        %244 = vst.msk [vmem:[#allocation2 + $0x6] sm:$0x1] %vm217, %v242
        %245 = vrot.lane.b32.xlu0 %v211, 83
        %v246 = vpop.permute.xlu0 %245
        %248 = vst.msk [vmem:[%s223 + $0x6] sm:$0x1] %vm217, %v246
        %249 = vrot.lane.b32.xlu0 %v189, 67
        %v250 = vpop.permute.xlu0 %249
        %252 = vst.msk [vmem:[#allocation2 + $0x7] sm:$0x1] %vm217, %v250
        %253 = vrot.lane.b32.xlu0 %v211, 67
        %v254 = vpop.permute.xlu0 %253
        %256 = vst.msk [vmem:[%s223 + $0x7] sm:$0x1] %vm217, %v254
        %257 = vrot.lane.b32.xlu0 %v189, 51
        %v258 = vpop.permute.xlu0 %257
        %260 = vst.msk [vmem:[#allocation2 + $0x8] sm:$0x1] %vm217, %v258
        %261 = vrot.lane.b32.xlu0 %v211, 51
        %v262 = vpop.permute.xlu0 %261
        %264 = vst.msk [vmem:[%s223 + $0x8] sm:$0x1] %vm217, %v262
        %265 = vrot.lane.b32.xlu0 %v189, 35
        %v266 = vpop.permute.xlu0 %265
        %268 = vst.msk [vmem:[#allocation2 + $0x9] sm:$0x1] %vm217, %v266
        %269 = vrot.lane.b32.xlu0 %v211, 35
        %v270 = vpop.permute.xlu0 %269
        %272 = vst.msk [vmem:[%s223 + $0x9] sm:$0x1] %vm217, %v270
        %273 = vrot.lane.b32.xlu0 %v189, 19
        %v274 = vpop.permute.xlu0 %273
        %276 = vst.msk [vmem:[#allocation2 + $0xa] sm:$0x1] %vm217, %v274
        %277 = vrot.lane.b32.xlu0 %v211, 19
        %v278 = vpop.permute.xlu0 %277
        %280 = vst.msk [vmem:[%s223 + $0xa] sm:$0x1] %vm217, %v278
        %282 = vrot.lane.b32.xlu0 %v196, 3
        %v283 = vpop.permute.xlu0 %282
        %285 = vst.msk [vmem:[#allocation2 + $0xb] sm:$0x1] %vm217, %v283
        %287 = vrot.lane.b32.xlu0 %v212, 3
        %v288 = vpop.permute.xlu0 %287
        %290 = vst.msk [vmem:[%s223 + $0xb] sm:$0x1] %vm217, %v288
        %291 = vrot.lane.b32.xlu0 %v196, 115
        %v292 = vpop.permute.xlu0 %291
        %294 = vst.msk [vmem:[#allocation2 + $0xc] sm:$0x1] %vm217, %v292
        %295 = vrot.lane.b32.xlu0 %v212, 115
        %v296 = vpop.permute.xlu0 %295
        %298 = vst.msk [vmem:[%s223 + $0xc] sm:$0x1] %vm217, %v296
        %299 = vrot.lane.b32.xlu0 %v196, 99
        %v300 = vpop.permute.xlu0 %299
        %302 = vst.msk [vmem:[#allocation2 + $0xd] sm:$0x1] %vm217, %v300
        %303 = vrot.lane.b32.xlu0 %v212, 99
        %v304 = vpop.permute.xlu0 %303
        %306 = vst.msk [vmem:[%s223 + $0xd] sm:$0x1] %vm217, %v304
        %307 = vrot.lane.b32.xlu0 %v196, 83
        %v308 = vpop.permute.xlu0 %307
        %310 = vst.msk [vmem:[#allocation2 + $0xe] sm:$0x1] %vm217, %v308
        %311 = vrot.lane.b32.xlu0 %v212, 83
        %v312 = vpop.permute.xlu0 %311
        %314 = vst.msk [vmem:[%s223 + $0xe] sm:$0x1] %vm217, %v312
        %315 = vrot.lane.b32.xlu0 %v196, 67
        %v316 = vpop.permute.xlu0 %315
        %318 = vst.msk [vmem:[#allocation2 + $0xf] sm:$0x1] %vm217, %v316
        %319 = vrot.lane.b32.xlu0 %v212, 67
        %v320 = vpop.permute.xlu0 %319
        %322 = vst.msk [vmem:[%s223 + $0xf] sm:$0x1] %vm217, %v320
        %323 = vrot.lane.b32.xlu0 %v196, 51
        %v324 = vpop.permute.xlu0 %323
        %326 = vst.msk [vmem:[#allocation2 + $0x10] sm:$0x1] %vm217, %v324
        %327 = vrot.lane.b32.xlu0 %v212, 51
        %v328 = vpop.permute.xlu0 %327
        %330 = vst.msk [vmem:[%s223 + $0x10] sm:$0x1] %vm217, %v328
        %331 = vrot.lane.b32.xlu0 %v196, 35
        %v332 = vpop.permute.xlu0 %331
        %334 = vst.msk [vmem:[#allocation2 + $0x11] sm:$0x1] %vm217, %v332
        %335 = vrot.lane.b32.xlu0 %v212, 35
        %v336 = vpop.permute.xlu0 %335
        %338 = vst.msk [vmem:[%s223 + $0x11] sm:$0x1] %vm217, %v336
        %339 = vrot.lane.b32.xlu0 %v196, 19
        %v340 = vpop.permute.xlu0 %339
        %342 = vst.msk [vmem:[#allocation2 + $0x12] sm:$0x1] %vm217, %v340
        %343 = vrot.lane.b32.xlu0 %v212, 19
        %v344 = vpop.permute.xlu0 %343
        %346 = vst.msk [vmem:[%s223 + $0x12] sm:$0x1] %vm217, %v344
        %v347 = vld [vmem:[#allocation2] sm:$0xff]
        %v348 = vld [vmem:[#allocation2 + $0x8] sm:$0xff]
        %s349 = sld [smem:[#allocation4]]
        %v350 = vstv %s349
        %v351 = vmul.f32 %v350, %v347
        %v352 = vmul.f32 %v350, %v348
        %s353 = sld [smem:[#allocation4 + $0x1]]
        %354 = vrot.lane.b32.xlu0 %v347, 127
        %v355 = vpop.permute.xlu0 %354
        %356 = vrot.lane.b32.xlu0 %v348, 127
        %v357 = vpop.permute.xlu0 %356
        %v358 = vstv %s353
        %v359 = vmul.f32 %v358, %v355
        %v360 = vmul.f32 %v358, %v357
        %v361 = vadd.f32 %v351, %v359
        %v362 = vadd.f32 %v352, %v360
        %s363 = sld [smem:[#allocation4 + $0x2]]
        %364 = vrot.lane.b32.xlu0 %v347, 126
        %v365 = vpop.permute.xlu0 %364
        %366 = vrot.lane.b32.xlu0 %v348, 126
        %v367 = vpop.permute.xlu0 %366
        %v368 = vstv %s363
        %v369 = vmul.f32 %v368, %v365
        %v370 = vmul.f32 %v368, %v367
        %v371 = vadd.f32 %v361, %v369
        %v372 = vadd.f32 %v362, %v370
        %s373 = sld [smem:[#allocation4 + $0x3]]
        %374 = vrot.lane.b32.xlu0 %v347, 125
        %v375 = vpop.permute.xlu0 %374
        %376 = vrot.lane.b32.xlu0 %v348, 125
        %v377 = vpop.permute.xlu0 %376
        %v378 = vstv %s373
        %v379 = vmul.f32 %v378, %v375
        %v380 = vmul.f32 %v378, %v377
        %v381 = vadd.f32 %v371, %v379
        %v382 = vadd.f32 %v372, %v380
        %s383 = sld [smem:[#allocation4 + $0x4]]
        %384 = vrot.lane.b32.xlu0 %v347, 124
        %v385 = vpop.permute.xlu0 %384
        %386 = vrot.lane.b32.xlu0 %v348, 124
        %v387 = vpop.permute.xlu0 %386
        %v388 = vstv %s383
        %v389 = vmul.f32 %v388, %v385
        %v390 = vmul.f32 %v388, %v387
        %v391 = vadd.f32 %v381, %v389
        %v392 = vadd.f32 %v382, %v390
        %s393 = sld [smem:[#allocation4 + $0x5]]
        %394 = vrot.lane.b32.xlu0 %v347, 123
        %v395 = vpop.permute.xlu0 %394
        %396 = vrot.lane.b32.xlu0 %v348, 123
        %v397 = vpop.permute.xlu0 %396
        %v398 = vstv %s393
        %v399 = vmul.f32 %v398, %v395
        %v400 = vmul.f32 %v398, %v397
        %v401 = vadd.f32 %v391, %v399
        %v402 = vadd.f32 %v392, %v400
        %s403 = sld [smem:[#allocation4 + $0x6]]
        %404 = vrot.lane.b32.xlu0 %v347, 122
        %v405 = vpop.permute.xlu0 %404
        %406 = vrot.lane.b32.xlu0 %v348, 122
        %v407 = vpop.permute.xlu0 %406
        %v408 = vstv %s403
        %v409 = vmul.f32 %v408, %v405
        %v410 = vmul.f32 %v408, %v407
        %v411 = vadd.f32 %v401, %v409
        %v412 = vadd.f32 %v402, %v410
        %v413 = vld [vmem:[#allocation2 + $0x1] sm:$0xff]
        %v414 = vld [vmem:[#allocation2 + $0x9] sm:$0xff]
        %s415 = sld [smem:[#allocation4 + $0x7]]
        %v416 = vstv %s415
        %v417 = vmul.f32 %v416, %v413
        %v418 = vmul.f32 %v416, %v414
        %v419 = vadd.f32 %v411, %v417
        %v420 = vadd.f32 %v412, %v418
        %s421 = sld [smem:[#allocation4 + $0x8]]
        %422 = vrot.lane.b32.xlu0 %v413, 127
        %v423 = vpop.permute.xlu0 %422
        %424 = vrot.lane.b32.xlu0 %v414, 127
        %v425 = vpop.permute.xlu0 %424
        %v426 = vstv %s421
        %v427 = vmul.f32 %v426, %v423
        %v428 = vmul.f32 %v426, %v425
        %v429 = vadd.f32 %v419, %v427
        %v430 = vadd.f32 %v420, %v428
        %s431 = sld [smem:[#allocation4 + $0x9]]
        %432 = vrot.lane.b32.xlu0 %v413, 126
        %v433 = vpop.permute.xlu0 %432
        %434 = vrot.lane.b32.xlu0 %v414, 126
        %v435 = vpop.permute.xlu0 %434
        %v436 = vstv %s431
        %v437 = vmul.f32 %v436, %v433
        %v438 = vmul.f32 %v436, %v435
        %v439 = vadd.f32 %v429, %v437
        %v440 = vadd.f32 %v430, %v438
        %s441 = sld [smem:[#allocation4 + $0xa]]
        %442 = vrot.lane.b32.xlu0 %v413, 125
        %v443 = vpop.permute.xlu0 %442
        %444 = vrot.lane.b32.xlu0 %v414, 125
        %v445 = vpop.permute.xlu0 %444
        %v446 = vstv %s441
        %v447 = vmul.f32 %v446, %v443
        %v448 = vmul.f32 %v446, %v445
        %v449 = vadd.f32 %v439, %v447
        %v450 = vadd.f32 %v440, %v448
        %s451 = sld [smem:[#allocation4 + $0xb]]
        %452 = vrot.lane.b32.xlu0 %v413, 124
        %v453 = vpop.permute.xlu0 %452
        %454 = vrot.lane.b32.xlu0 %v414, 124
        %v455 = vpop.permute.xlu0 %454
        %v456 = vstv %s451
        %v457 = vmul.f32 %v456, %v453
        %v458 = vmul.f32 %v456, %v455
        %v459 = vadd.f32 %v449, %v457
        %v460 = vadd.f32 %v450, %v458
        %s461 = sld [smem:[#allocation4 + $0xc]]
        %462 = vrot.lane.b32.xlu0 %v413, 123
        %v463 = vpop.permute.xlu0 %462
        %464 = vrot.lane.b32.xlu0 %v414, 123
        %v465 = vpop.permute.xlu0 %464
        %v466 = vstv %s461
        %v467 = vmul.f32 %v466, %v463
        %v468 = vmul.f32 %v466, %v465
        %v469 = vadd.f32 %v459, %v467
        %v470 = vadd.f32 %v460, %v468
        %s471 = sld [smem:[#allocation4 + $0xd]]
        %472 = vrot.lane.b32.xlu0 %v413, 122
        %v473 = vpop.permute.xlu0 %472
        %474 = vrot.lane.b32.xlu0 %v414, 122
        %v475 = vpop.permute.xlu0 %474
        %v476 = vstv %s471
        %v477 = vmul.f32 %v476, %v473
        %v478 = vmul.f32 %v476, %v475
        %v479 = vadd.f32 %v469, %v477
        %v480 = vadd.f32 %v470, %v478
        %v481 = vld [vmem:[#allocation2 + $0x2] sm:$0xff]
        %v482 = vld [vmem:[#allocation2 + $0xa] sm:$0xff]
        %s483 = sld [smem:[#allocation4 + $0xe]]
        %v484 = vstv %s483
        %v485 = vmul.f32 %v484, %v481
        %v486 = vmul.f32 %v484, %v482
        %v487 = vadd.f32 %v479, %v485
        %v488 = vadd.f32 %v480, %v486
        %s489 = sld [smem:[#allocation4 + $0xf]]
        %490 = vrot.lane.b32.xlu0 %v481, 127
        %v491 = vpop.permute.xlu0 %490
        %492 = vrot.lane.b32.xlu0 %v482, 127
        %v493 = vpop.permute.xlu0 %492
        %v494 = vstv %s489
        %v495 = vmul.f32 %v494, %v491
        %v496 = vmul.f32 %v494, %v493
        %v497 = vadd.f32 %v487, %v495
        %v498 = vadd.f32 %v488, %v496
        %s499 = sld [smem:[#allocation4 + $0x10]]
        %500 = vrot.lane.b32.xlu0 %v481, 126
        %v501 = vpop.permute.xlu0 %500
        %502 = vrot.lane.b32.xlu0 %v482, 126
        %v503 = vpop.permute.xlu0 %502
        %v504 = vstv %s499
        %v505 = vmul.f32 %v504, %v501
        %v506 = vmul.f32 %v504, %v503
        %v507 = vadd.f32 %v497, %v505
        %v508 = vadd.f32 %v498, %v506
        %s509 = sld [smem:[#allocation4 + $0x11]]
        %510 = vrot.lane.b32.xlu0 %v481, 125
        %v511 = vpop.permute.xlu0 %510
        %512 = vrot.lane.b32.xlu0 %v482, 125
        %v513 = vpop.permute.xlu0 %512
        %v514 = vstv %s509
        %v515 = vmul.f32 %v514, %v511
        %v516 = vmul.f32 %v514, %v513
        %v517 = vadd.f32 %v507, %v515
        %v518 = vadd.f32 %v508, %v516
        %s519 = sld [smem:[#allocation4 + $0x12]]
        %520 = vrot.lane.b32.xlu0 %v481, 124
        %v521 = vpop.permute.xlu0 %520
        %522 = vrot.lane.b32.xlu0 %v482, 124
        %v523 = vpop.permute.xlu0 %522
        %v524 = vstv %s519
        %v525 = vmul.f32 %v524, %v521
        %v526 = vmul.f32 %v524, %v523
        %v527 = vadd.f32 %v517, %v525
        %v528 = vadd.f32 %v518, %v526
        %s529 = sld [smem:[#allocation4 + $0x13]]
        %530 = vrot.lane.b32.xlu0 %v481, 123
        %v531 = vpop.permute.xlu0 %530
        %532 = vrot.lane.b32.xlu0 %v482, 123
        %v533 = vpop.permute.xlu0 %532
        %v534 = vstv %s529
        %v535 = vmul.f32 %v534, %v531
        %v536 = vmul.f32 %v534, %v533
        %v537 = vadd.f32 %v527, %v535
        %v538 = vadd.f32 %v528, %v536
        %s539 = sld [smem:[#allocation4 + $0x14]]
        %540 = vrot.lane.b32.xlu0 %v481, 122
        %v541 = vpop.permute.xlu0 %540
        %542 = vrot.lane.b32.xlu0 %v482, 122
        %v543 = vpop.permute.xlu0 %542
        %v544 = vstv %s539
        %v545 = vmul.f32 %v544, %v541
        %v546 = vmul.f32 %v544, %v543
        %v547 = vadd.f32 %v537, %v545
        %v548 = vadd.f32 %v538, %v546
        %v549 = vld [vmem:[#allocation2 + $0x3] sm:$0xff]
        %v550 = vld [vmem:[#allocation2 + $0xb] sm:$0xff]
        %s551 = sld [smem:[#allocation4 + $0x15]]
        %v552 = vstv %s551
        %v553 = vmul.f32 %v552, %v549
        %v554 = vmul.f32 %v552, %v550
        %v555 = vadd.f32 %v547, %v553
        %v556 = vadd.f32 %v548, %v554
        %s557 = sld [smem:[#allocation4 + $0x16]]
        %558 = vrot.lane.b32.xlu0 %v549, 127
        %v559 = vpop.permute.xlu0 %558
        %560 = vrot.lane.b32.xlu0 %v550, 127
        %v561 = vpop.permute.xlu0 %560
        %v562 = vstv %s557
        %v563 = vmul.f32 %v562, %v559
        %v564 = vmul.f32 %v562, %v561
        %v565 = vadd.f32 %v555, %v563
        %v566 = vadd.f32 %v556, %v564
        %s567 = sld [smem:[#allocation4 + $0x17]]
        %568 = vrot.lane.b32.xlu0 %v549, 126
        %v569 = vpop.permute.xlu0 %568
        %570 = vrot.lane.b32.xlu0 %v550, 126
        %v571 = vpop.permute.xlu0 %570
        %v572 = vstv %s567
        %v573 = vmul.f32 %v572, %v569
        %v574 = vmul.f32 %v572, %v571
        %v575 = vadd.f32 %v565, %v573
        %v576 = vadd.f32 %v566, %v574
        %s577 = sld [smem:[#allocation4 + $0x18]]
        %578 = vrot.lane.b32.xlu0 %v549, 125
        %v579 = vpop.permute.xlu0 %578
        %580 = vrot.lane.b32.xlu0 %v550, 125
        %v581 = vpop.permute.xlu0 %580
        %v582 = vstv %s577
        %v583 = vmul.f32 %v582, %v579
        %v584 = vmul.f32 %v582, %v581
        %v585 = vadd.f32 %v575, %v583
        %v586 = vadd.f32 %v576, %v584
        %s587 = sld [smem:[#allocation4 + $0x19]]
        %588 = vrot.lane.b32.xlu0 %v549, 124
        %v589 = vpop.permute.xlu0 %588
        %590 = vrot.lane.b32.xlu0 %v550, 124
        %v591 = vpop.permute.xlu0 %590
        %v592 = vstv %s587
        %v593 = vmul.f32 %v592, %v589
        %v594 = vmul.f32 %v592, %v591
        %v595 = vadd.f32 %v585, %v593
        %v596 = vadd.f32 %v586, %v594
        %s597 = sld [smem:[#allocation4 + $0x1a]]
        %598 = vrot.lane.b32.xlu0 %v549, 123
        %v599 = vpop.permute.xlu0 %598
        %600 = vrot.lane.b32.xlu0 %v550, 123
        %v601 = vpop.permute.xlu0 %600
        %v602 = vstv %s597
        %v603 = vmul.f32 %v602, %v599
        %v604 = vmul.f32 %v602, %v601
        %v605 = vadd.f32 %v595, %v603
        %v606 = vadd.f32 %v596, %v604
        %s607 = sld [smem:[#allocation4 + $0x1b]]
        %608 = vrot.lane.b32.xlu0 %v549, 122
        %v609 = vpop.permute.xlu0 %608
        %610 = vrot.lane.b32.xlu0 %v550, 122
        %v611 = vpop.permute.xlu0 %610
        %v612 = vstv %s607
        %v613 = vmul.f32 %v612, %v609
        %v614 = vmul.f32 %v612, %v611
        %v615 = vadd.f32 %v605, %v613
        %v616 = vadd.f32 %v606, %v614
        %v617 = vld [vmem:[#allocation2 + $0x4] sm:$0xff]
        %v618 = vld [vmem:[#allocation2 + $0xc] sm:$0xff]
        %s619 = sld [smem:[#allocation4 + $0x1c]]
        %v620 = vstv %s619
        %v621 = vmul.f32 %v620, %v617
        %v622 = vmul.f32 %v620, %v618
        %v623 = vadd.f32 %v615, %v621
        %v624 = vadd.f32 %v616, %v622
        %s625 = sld [smem:[#allocation4 + $0x1d]]
        %626 = vrot.lane.b32.xlu0 %v617, 127
        %v627 = vpop.permute.xlu0 %626
        %628 = vrot.lane.b32.xlu0 %v618, 127
        %v629 = vpop.permute.xlu0 %628
        %v630 = vstv %s625
        %v631 = vmul.f32 %v630, %v627
        %v632 = vmul.f32 %v630, %v629
        %v633 = vadd.f32 %v623, %v631
        %v634 = vadd.f32 %v624, %v632
        %s635 = sld [smem:[#allocation4 + $0x1e]]
        %636 = vrot.lane.b32.xlu0 %v617, 126
        %v637 = vpop.permute.xlu0 %636
        %638 = vrot.lane.b32.xlu0 %v618, 126
        %v639 = vpop.permute.xlu0 %638
        %v640 = vstv %s635
        %v641 = vmul.f32 %v640, %v637
        %v642 = vmul.f32 %v640, %v639
        %v643 = vadd.f32 %v633, %v641
        %v644 = vadd.f32 %v634, %v642
        %s645 = sld [smem:[#allocation4 + $0x1f]]
        %646 = vrot.lane.b32.xlu0 %v617, 125
        %v647 = vpop.permute.xlu0 %646
        %648 = vrot.lane.b32.xlu0 %v618, 125
        %v649 = vpop.permute.xlu0 %648
        %v650 = vstv %s645
        %v651 = vmul.f32 %v650, %v647
        %v652 = vmul.f32 %v650, %v649
        %v653 = vadd.f32 %v643, %v651
        %v654 = vadd.f32 %v644, %v652
        %s655 = sld [smem:[#allocation4 + $0x20]]
        %656 = vrot.lane.b32.xlu0 %v617, 124
        %v657 = vpop.permute.xlu0 %656
        %658 = vrot.lane.b32.xlu0 %v618, 124
        %v659 = vpop.permute.xlu0 %658
        %v660 = vstv %s655
        %v661 = vmul.f32 %v660, %v657
        %v662 = vmul.f32 %v660, %v659
        %v663 = vadd.f32 %v653, %v661
        %v664 = vadd.f32 %v654, %v662
        %s665 = sld [smem:[#allocation4 + $0x21]]
        %666 = vrot.lane.b32.xlu0 %v617, 123
        %v667 = vpop.permute.xlu0 %666
        %668 = vrot.lane.b32.xlu0 %v618, 123
        %v669 = vpop.permute.xlu0 %668
        %v670 = vstv %s665
        %v671 = vmul.f32 %v670, %v667
        %v672 = vmul.f32 %v670, %v669
        %v673 = vadd.f32 %v663, %v671
        %v674 = vadd.f32 %v664, %v672
        %s675 = sld [smem:[#allocation4 + $0x22]]
        %676 = vrot.lane.b32.xlu0 %v617, 122
        %v677 = vpop.permute.xlu0 %676
        %678 = vrot.lane.b32.xlu0 %v618, 122
        %v679 = vpop.permute.xlu0 %678
        %v680 = vstv %s675
        %v681 = vmul.f32 %v680, %v677
        %v682 = vmul.f32 %v680, %v679
        %v683 = vadd.f32 %v673, %v681
        %v684 = vadd.f32 %v674, %v682
        %v685 = vld [vmem:[#allocation2 + $0x5] sm:$0xff]
        %v686 = vld [vmem:[#allocation2 + $0xd] sm:$0xff]
        %s687 = sld [smem:[#allocation4 + $0x23]]
        %v688 = vstv %s687
        %v689 = vmul.f32 %v688, %v685
        %v690 = vmul.f32 %v688, %v686
        %v691 = vadd.f32 %v683, %v689
        %v692 = vadd.f32 %v684, %v690
        %s693 = sld [smem:[#allocation4 + $0x24]]
        %694 = vrot.lane.b32.xlu0 %v685, 127
        %v695 = vpop.permute.xlu0 %694
        %696 = vrot.lane.b32.xlu0 %v686, 127
        %v697 = vpop.permute.xlu0 %696
        %v698 = vstv %s693
        %v699 = vmul.f32 %v698, %v695
        %v700 = vmul.f32 %v698, %v697
        %v701 = vadd.f32 %v691, %v699
        %v702 = vadd.f32 %v692, %v700
        %s703 = sld [smem:[#allocation4 + $0x25]]
        %704 = vrot.lane.b32.xlu0 %v685, 126
        %v705 = vpop.permute.xlu0 %704
        %706 = vrot.lane.b32.xlu0 %v686, 126
        %v707 = vpop.permute.xlu0 %706
        %v708 = vstv %s703
        %v709 = vmul.f32 %v708, %v705
        %v710 = vmul.f32 %v708, %v707
        %v711 = vadd.f32 %v701, %v709
        %v712 = vadd.f32 %v702, %v710
        %s713 = sld [smem:[#allocation4 + $0x26]]
        %714 = vrot.lane.b32.xlu0 %v685, 125
        %v715 = vpop.permute.xlu0 %714
        %716 = vrot.lane.b32.xlu0 %v686, 125
        %v717 = vpop.permute.xlu0 %716
        %v718 = vstv %s713
        %v719 = vmul.f32 %v718, %v715
        %v720 = vmul.f32 %v718, %v717
        %v721 = vadd.f32 %v711, %v719
        %v722 = vadd.f32 %v712, %v720
        %s723 = sld [smem:[#allocation4 + $0x27]]
        %724 = vrot.lane.b32.xlu0 %v685, 124
        %v725 = vpop.permute.xlu0 %724
        %726 = vrot.lane.b32.xlu0 %v686, 124
        %v727 = vpop.permute.xlu0 %726
        %v728 = vstv %s723
        %v729 = vmul.f32 %v728, %v725
        %v730 = vmul.f32 %v728, %v727
        %v731 = vadd.f32 %v721, %v729
        %v732 = vadd.f32 %v722, %v730
        %s733 = sld [smem:[#allocation4 + $0x28]]
        %734 = vrot.lane.b32.xlu0 %v685, 123
        %v735 = vpop.permute.xlu0 %734
        %736 = vrot.lane.b32.xlu0 %v686, 123
        %v737 = vpop.permute.xlu0 %736
        %v738 = vstv %s733
        %v739 = vmul.f32 %v738, %v735
        %v740 = vmul.f32 %v738, %v737
        %v741 = vadd.f32 %v731, %v739
        %v742 = vadd.f32 %v732, %v740
        %s743 = sld [smem:[#allocation4 + $0x29]]
        %744 = vrot.lane.b32.xlu0 %v685, 122
        %v745 = vpop.permute.xlu0 %744
        %746 = vrot.lane.b32.xlu0 %v686, 122
        %v747 = vpop.permute.xlu0 %746
        %v748 = vstv %s743
        %v749 = vmul.f32 %v748, %v745
        %v750 = vmul.f32 %v748, %v747
        %v751 = vadd.f32 %v741, %v749
        %v752 = vadd.f32 %v742, %v750
        %v753 = vld [vmem:[#allocation2 + $0x6] sm:$0xff]
        %v754 = vld [vmem:[#allocation2 + $0xe] sm:$0xff]
        %s755 = sld [smem:[#allocation4 + $0x2a]]
        %v756 = vstv %s755
        %v757 = vmul.f32 %v756, %v753
        %v758 = vmul.f32 %v756, %v754
        %v759 = vadd.f32 %v751, %v757
        %v760 = vadd.f32 %v752, %v758
        %s761 = sld [smem:[#allocation4 + $0x2b]]
        %762 = vrot.lane.b32.xlu0 %v753, 127
        %v763 = vpop.permute.xlu0 %762
        %764 = vrot.lane.b32.xlu0 %v754, 127
        %v765 = vpop.permute.xlu0 %764
        %v766 = vstv %s761
        %v767 = vmul.f32 %v766, %v763
        %v768 = vmul.f32 %v766, %v765
        %v769 = vadd.f32 %v759, %v767
        %v770 = vadd.f32 %v760, %v768
        %s771 = sld [smem:[#allocation4 + $0x2c]]
        %772 = vrot.lane.b32.xlu0 %v753, 126
        %v773 = vpop.permute.xlu0 %772
        %774 = vrot.lane.b32.xlu0 %v754, 126
        %v775 = vpop.permute.xlu0 %774
        %v776 = vstv %s771
        %v777 = vmul.f32 %v776, %v773
        %v778 = vmul.f32 %v776, %v775
        %v779 = vadd.f32 %v769, %v777
        %v780 = vadd.f32 %v770, %v778
        %s781 = sld [smem:[#allocation4 + $0x2d]]
        %782 = vrot.lane.b32.xlu0 %v753, 125
        %v783 = vpop.permute.xlu0 %782
        %784 = vrot.lane.b32.xlu0 %v754, 125
        %v785 = vpop.permute.xlu0 %784
        %v786 = vstv %s781
        %v787 = vmul.f32 %v786, %v783
        %v788 = vmul.f32 %v786, %v785
        %v789 = vadd.f32 %v779, %v787
        %v790 = vadd.f32 %v780, %v788
        %s791 = sld [smem:[#allocation4 + $0x2e]]
        %792 = vrot.lane.b32.xlu0 %v753, 124
        %v793 = vpop.permute.xlu0 %792
        %794 = vrot.lane.b32.xlu0 %v754, 124
        %v795 = vpop.permute.xlu0 %794
        %v796 = vstv %s791
        %v797 = vmul.f32 %v796, %v793
        %v798 = vmul.f32 %v796, %v795
        %v799 = vadd.f32 %v789, %v797
        %v800 = vadd.f32 %v790, %v798
        %s801 = sld [smem:[#allocation4 + $0x2f]]
        %802 = vrot.lane.b32.xlu0 %v753, 123
        %v803 = vpop.permute.xlu0 %802
        %804 = vrot.lane.b32.xlu0 %v754, 123
        %v805 = vpop.permute.xlu0 %804
        %v806 = vstv %s801
        %v807 = vmul.f32 %v806, %v803
        %v808 = vmul.f32 %v806, %v805
        %v809 = vadd.f32 %v799, %v807
        %v810 = vadd.f32 %v800, %v808
        %s811 = sld [smem:[#allocation4 + $0x30]]
        %812 = vrot.lane.b32.xlu0 %v753, 122
        %v813 = vpop.permute.xlu0 %812
        %814 = vrot.lane.b32.xlu0 %v754, 122
        %v815 = vpop.permute.xlu0 %814
        %v816 = vstv %s811
        %v817 = vmul.f32 %v816, %v813
        %v818 = vmul.f32 %v816, %v815
        %v819 = vadd.f32 %v809, %v817
        %v820 = vadd.f32 %v810, %v818
        %v821 = vld [vmem:[%s223] sm:$0xff]
        %v822 = vld [vmem:[%s223 + $0x8] sm:$0xff]
        %s823 = sld [smem:[#allocation4 + $0x31]]
        %v824 = vstv %s823
        %v825 = vmul.f32 %v824, %v821
        %v826 = vmul.f32 %v824, %v822
        %s827 = sld [smem:[#allocation4 + $0x32]]
        %828 = vrot.lane.b32.xlu0 %v821, 127
        %v829 = vpop.permute.xlu0 %828
        %830 = vrot.lane.b32.xlu0 %v822, 127
        %v831 = vpop.permute.xlu0 %830
        %v832 = vstv %s827
        %v833 = vmul.f32 %v832, %v829
        %v834 = vmul.f32 %v832, %v831
        %v835 = vadd.f32 %v825, %v833
        %v836 = vadd.f32 %v826, %v834
        %s837 = sld [smem:[#allocation4 + $0x33]]
        %838 = vrot.lane.b32.xlu0 %v821, 126
        %v839 = vpop.permute.xlu0 %838
        %840 = vrot.lane.b32.xlu0 %v822, 126
        %v841 = vpop.permute.xlu0 %840
        %v842 = vstv %s837
        %v843 = vmul.f32 %v842, %v839
        %v844 = vmul.f32 %v842, %v841
        %v845 = vadd.f32 %v835, %v843
        %v846 = vadd.f32 %v836, %v844
        %s847 = sld [smem:[#allocation4 + $0x34]]
        %848 = vrot.lane.b32.xlu0 %v821, 125
        %v849 = vpop.permute.xlu0 %848
        %850 = vrot.lane.b32.xlu0 %v822, 125
        %v851 = vpop.permute.xlu0 %850
        %v852 = vstv %s847
        %v853 = vmul.f32 %v852, %v849
        %v854 = vmul.f32 %v852, %v851
        %v855 = vadd.f32 %v845, %v853
        %v856 = vadd.f32 %v846, %v854
        %s857 = sld [smem:[#allocation4 + $0x35]]
        %858 = vrot.lane.b32.xlu0 %v821, 124
        %v859 = vpop.permute.xlu0 %858
        %860 = vrot.lane.b32.xlu0 %v822, 124
        %v861 = vpop.permute.xlu0 %860
        %v862 = vstv %s857
        %v863 = vmul.f32 %v862, %v859
        %v864 = vmul.f32 %v862, %v861
        %v865 = vadd.f32 %v855, %v863
        %v866 = vadd.f32 %v856, %v864
        %s867 = sld [smem:[#allocation4 + $0x36]]
        %868 = vrot.lane.b32.xlu0 %v821, 123
        %v869 = vpop.permute.xlu0 %868
        %870 = vrot.lane.b32.xlu0 %v822, 123
        %v871 = vpop.permute.xlu0 %870
        %v872 = vstv %s867
        %v873 = vmul.f32 %v872, %v869
        %v874 = vmul.f32 %v872, %v871
        %v875 = vadd.f32 %v865, %v873
        %v876 = vadd.f32 %v866, %v874
        %s877 = sld [smem:[#allocation4 + $0x37]]
        %878 = vrot.lane.b32.xlu0 %v821, 122
        %v879 = vpop.permute.xlu0 %878
        %880 = vrot.lane.b32.xlu0 %v822, 122
        %v881 = vpop.permute.xlu0 %880
        %v882 = vstv %s877
        %v883 = vmul.f32 %v882, %v879
        %v884 = vmul.f32 %v882, %v881
        %v885 = vadd.f32 %v875, %v883
        %v886 = vadd.f32 %v876, %v884
        %v887 = vld [vmem:[%s223 + $0x1] sm:$0xff]
        %v888 = vld [vmem:[%s223 + $0x9] sm:$0xff]
        %s889 = sld [smem:[#allocation4 + $0x38]]
        %v890 = vstv %s889
        %v891 = vmul.f32 %v890, %v887
        %v892 = vmul.f32 %v890, %v888
        %v893 = vadd.f32 %v885, %v891
        %v894 = vadd.f32 %v886, %v892
        %s895 = sld [smem:[#allocation4 + $0x39]]
        %896 = vrot.lane.b32.xlu0 %v887, 127
        %v897 = vpop.permute.xlu0 %896
        %898 = vrot.lane.b32.xlu0 %v888, 127
        %v899 = vpop.permute.xlu0 %898
        %v900 = vstv %s895
        %v901 = vmul.f32 %v900, %v897
        %v902 = vmul.f32 %v900, %v899
        %v903 = vadd.f32 %v893, %v901
        %v904 = vadd.f32 %v894, %v902
        %s905 = sld [smem:[#allocation4 + $0x3a]]
        %906 = vrot.lane.b32.xlu0 %v887, 126
        %v907 = vpop.permute.xlu0 %906
        %908 = vrot.lane.b32.xlu0 %v888, 126
        %v909 = vpop.permute.xlu0 %908
        %v910 = vstv %s905
        %v911 = vmul.f32 %v910, %v907
        %v912 = vmul.f32 %v910, %v909
        %v913 = vadd.f32 %v903, %v911
        %v914 = vadd.f32 %v904, %v912
        %s915 = sld [smem:[#allocation4 + $0x3b]]
        %916 = vrot.lane.b32.xlu0 %v887, 125
        %v917 = vpop.permute.xlu0 %916
        %918 = vrot.lane.b32.xlu0 %v888, 125
        %v919 = vpop.permute.xlu0 %918
        %v920 = vstv %s915
        %v921 = vmul.f32 %v920, %v917
        %v922 = vmul.f32 %v920, %v919
        %v923 = vadd.f32 %v913, %v921
        %v924 = vadd.f32 %v914, %v922
        %s925 = sld [smem:[#allocation4 + $0x3c]]
        %926 = vrot.lane.b32.xlu0 %v887, 124
        %v927 = vpop.permute.xlu0 %926
        %928 = vrot.lane.b32.xlu0 %v888, 124
        %v929 = vpop.permute.xlu0 %928
        %v930 = vstv %s925
        %v931 = vmul.f32 %v930, %v927
        %v932 = vmul.f32 %v930, %v929
        %v933 = vadd.f32 %v923, %v931
        %v934 = vadd.f32 %v924, %v932
        %s935 = sld [smem:[#allocation4 + $0x3d]]
        %936 = vrot.lane.b32.xlu0 %v887, 123
        %v937 = vpop.permute.xlu0 %936
        %938 = vrot.lane.b32.xlu0 %v888, 123
        %v939 = vpop.permute.xlu0 %938
        %v940 = vstv %s935
        %v941 = vmul.f32 %v940, %v937
        %v942 = vmul.f32 %v940, %v939
        %v943 = vadd.f32 %v933, %v941
        %v944 = vadd.f32 %v934, %v942
        %s945 = sld [smem:[#allocation4 + $0x3e]]
        %946 = vrot.lane.b32.xlu0 %v887, 122
        %v947 = vpop.permute.xlu0 %946
        %948 = vrot.lane.b32.xlu0 %v888, 122
        %v949 = vpop.permute.xlu0 %948
        %v950 = vstv %s945
        %v951 = vmul.f32 %v950, %v947
        %v952 = vmul.f32 %v950, %v949
        %v953 = vadd.f32 %v943, %v951
        %v954 = vadd.f32 %v944, %v952
        %v955 = vld [vmem:[%s223 + $0x2] sm:$0xff]
        %v956 = vld [vmem:[%s223 + $0xa] sm:$0xff]
        %s957 = sld [smem:[#allocation4 + $0x3f]]
        %v958 = vstv %s957
        %v959 = vmul.f32 %v958, %v955
        %v960 = vmul.f32 %v958, %v956
        %v961 = vadd.f32 %v953, %v959
        %v962 = vadd.f32 %v954, %v960
        %s963 = sld [smem:[#allocation4 + $0x40]]
        %964 = vrot.lane.b32.xlu0 %v955, 127
        %v965 = vpop.permute.xlu0 %964
        %966 = vrot.lane.b32.xlu0 %v956, 127
        %v967 = vpop.permute.xlu0 %966
        %v968 = vstv %s963
        %v969 = vmul.f32 %v968, %v965
        %v970 = vmul.f32 %v968, %v967
        %v971 = vadd.f32 %v961, %v969
        %v972 = vadd.f32 %v962, %v970
        %s973 = sld [smem:[#allocation4 + $0x41]]
        %974 = vrot.lane.b32.xlu0 %v955, 126
        %v975 = vpop.permute.xlu0 %974
        %976 = vrot.lane.b32.xlu0 %v956, 126
        %v977 = vpop.permute.xlu0 %976
        %v978 = vstv %s973
        %v979 = vmul.f32 %v978, %v975
        %v980 = vmul.f32 %v978, %v977
        %v981 = vadd.f32 %v971, %v979
        %v982 = vadd.f32 %v972, %v980
        %s983 = sld [smem:[#allocation4 + $0x42]]
        %984 = vrot.lane.b32.xlu0 %v955, 125
        %v985 = vpop.permute.xlu0 %984
        %986 = vrot.lane.b32.xlu0 %v956, 125
        %v987 = vpop.permute.xlu0 %986
        %v988 = vstv %s983
        %v989 = vmul.f32 %v988, %v985
        %v990 = vmul.f32 %v988, %v987
        %v991 = vadd.f32 %v981, %v989
        %v992 = vadd.f32 %v982, %v990
        %s993 = sld [smem:[#allocation4 + $0x43]]
        %994 = vrot.lane.b32.xlu0 %v955, 124
        %v995 = vpop.permute.xlu0 %994
        %996 = vrot.lane.b32.xlu0 %v956, 124
        %v997 = vpop.permute.xlu0 %996
        %v998 = vstv %s993
        %v999 = vmul.f32 %v998, %v995
        %v1000 = vmul.f32 %v998, %v997
        %v1001 = vadd.f32 %v991, %v999
        %v1002 = vadd.f32 %v992, %v1000
        %s1003 = sld [smem:[#allocation4 + $0x44]]
        %1004 = vrot.lane.b32.xlu0 %v955, 123
        %v1005 = vpop.permute.xlu0 %1004
        %1006 = vrot.lane.b32.xlu0 %v956, 123
        %v1007 = vpop.permute.xlu0 %1006
        %v1008 = vstv %s1003
        %v1009 = vmul.f32 %v1008, %v1005
        %v1010 = vmul.f32 %v1008, %v1007
        %v1011 = vadd.f32 %v1001, %v1009
        %v1012 = vadd.f32 %v1002, %v1010
        %s1013 = sld [smem:[#allocation4 + $0x45]]
        %1014 = vrot.lane.b32.xlu0 %v955, 122
        %v1015 = vpop.permute.xlu0 %1014
        %1016 = vrot.lane.b32.xlu0 %v956, 122
        %v1017 = vpop.permute.xlu0 %1016
        %v1018 = vstv %s1013
        %v1019 = vmul.f32 %v1018, %v1015
        %v1020 = vmul.f32 %v1018, %v1017
        %v1021 = vadd.f32 %v1011, %v1019
        %v1022 = vadd.f32 %v1012, %v1020
        %v1023 = vld [vmem:[%s223 + $0x3] sm:$0xff]
        %v1024 = vld [vmem:[%s223 + $0xb] sm:$0xff]
        %s1025 = sld [smem:[#allocation4 + $0x46]]
        %v1026 = vstv %s1025
        %v1027 = vmul.f32 %v1026, %v1023
        %v1028 = vmul.f32 %v1026, %v1024
        %v1029 = vadd.f32 %v1021, %v1027
        %v1030 = vadd.f32 %v1022, %v1028
        %s1031 = sld [smem:[#allocation4 + $0x47]]
        %1032 = vrot.lane.b32.xlu0 %v1023, 127
        %v1033 = vpop.permute.xlu0 %1032
        %1034 = vrot.lane.b32.xlu0 %v1024, 127
        %v1035 = vpop.permute.xlu0 %1034
        %v1036 = vstv %s1031
        %v1037 = vmul.f32 %v1036, %v1033
        %v1038 = vmul.f32 %v1036, %v1035
        %v1039 = vadd.f32 %v1029, %v1037
        %v1040 = vadd.f32 %v1030, %v1038
        %s1041 = sld [smem:[#allocation4 + $0x48]]
        %1042 = vrot.lane.b32.xlu0 %v1023, 126
        %v1043 = vpop.permute.xlu0 %1042
        %1044 = vrot.lane.b32.xlu0 %v1024, 126
        %v1045 = vpop.permute.xlu0 %1044
        %v1046 = vstv %s1041
        %v1047 = vmul.f32 %v1046, %v1043
        %v1048 = vmul.f32 %v1046, %v1045
        %v1049 = vadd.f32 %v1039, %v1047
        %v1050 = vadd.f32 %v1040, %v1048
        %s1051 = sld [smem:[#allocation4 + $0x49]]
        %1052 = vrot.lane.b32.xlu0 %v1023, 125
        %v1053 = vpop.permute.xlu0 %1052
        %1054 = vrot.lane.b32.xlu0 %v1024, 125
        %v1055 = vpop.permute.xlu0 %1054
        %v1056 = vstv %s1051
        %v1057 = vmul.f32 %v1056, %v1053
        %v1058 = vmul.f32 %v1056, %v1055
        %v1059 = vadd.f32 %v1049, %v1057
        %v1060 = vadd.f32 %v1050, %v1058
        %s1061 = sld [smem:[#allocation4 + $0x4a]]
        %1062 = vrot.lane.b32.xlu0 %v1023, 124
        %v1063 = vpop.permute.xlu0 %1062
        %1064 = vrot.lane.b32.xlu0 %v1024, 124
        %v1065 = vpop.permute.xlu0 %1064
        %v1066 = vstv %s1061
        %v1067 = vmul.f32 %v1066, %v1063
        %v1068 = vmul.f32 %v1066, %v1065
        %v1069 = vadd.f32 %v1059, %v1067
        %v1070 = vadd.f32 %v1060, %v1068
        %s1071 = sld [smem:[#allocation4 + $0x4b]]
        %1072 = vrot.lane.b32.xlu0 %v1023, 123
        %v1073 = vpop.permute.xlu0 %1072
        %1074 = vrot.lane.b32.xlu0 %v1024, 123
        %v1075 = vpop.permute.xlu0 %1074
        %v1076 = vstv %s1071
        %v1077 = vmul.f32 %v1076, %v1073
        %v1078 = vmul.f32 %v1076, %v1075
        %v1079 = vadd.f32 %v1069, %v1077
        %v1080 = vadd.f32 %v1070, %v1078
        %s1081 = sld [smem:[#allocation4 + $0x4c]]
        %1082 = vrot.lane.b32.xlu0 %v1023, 122
        %v1083 = vpop.permute.xlu0 %1082
        %1084 = vrot.lane.b32.xlu0 %v1024, 122
        %v1085 = vpop.permute.xlu0 %1084
        %v1086 = vstv %s1081
        %v1087 = vmul.f32 %v1086, %v1083
        %v1088 = vmul.f32 %v1086, %v1085
        %v1089 = vadd.f32 %v1079, %v1087
        %v1090 = vadd.f32 %v1080, %v1088
        %v1091 = vld [vmem:[%s223 + $0x4] sm:$0xff]
        %v1092 = vld [vmem:[%s223 + $0xc] sm:$0xff]
        %s1093 = sld [smem:[#allocation4 + $0x4d]]
        %v1094 = vstv %s1093
        %v1095 = vmul.f32 %v1094, %v1091
        %v1096 = vmul.f32 %v1094, %v1092
        %v1097 = vadd.f32 %v1089, %v1095
        %v1098 = vadd.f32 %v1090, %v1096
        %s1099 = sld [smem:[#allocation4 + $0x4e]]
        %1100 = vrot.lane.b32.xlu0 %v1091, 127
        %v1101 = vpop.permute.xlu0 %1100
        %1102 = vrot.lane.b32.xlu0 %v1092, 127
        %v1103 = vpop.permute.xlu0 %1102
        %v1104 = vstv %s1099
        %v1105 = vmul.f32 %v1104, %v1101
        %v1106 = vmul.f32 %v1104, %v1103
        %v1107 = vadd.f32 %v1097, %v1105
        %v1108 = vadd.f32 %v1098, %v1106
        %s1109 = sld [smem:[#allocation4 + $0x4f]]
        %1110 = vrot.lane.b32.xlu0 %v1091, 126
        %v1111 = vpop.permute.xlu0 %1110
        %1112 = vrot.lane.b32.xlu0 %v1092, 126
        %v1113 = vpop.permute.xlu0 %1112
        %v1114 = vstv %s1109
        %v1115 = vmul.f32 %v1114, %v1111
        %v1116 = vmul.f32 %v1114, %v1113
        %v1117 = vadd.f32 %v1107, %v1115
        %v1118 = vadd.f32 %v1108, %v1116
        %s1119 = sld [smem:[#allocation4 + $0x50]]
        %1120 = vrot.lane.b32.xlu0 %v1091, 125
        %v1121 = vpop.permute.xlu0 %1120
        %1122 = vrot.lane.b32.xlu0 %v1092, 125
        %v1123 = vpop.permute.xlu0 %1122
        %v1124 = vstv %s1119
        %v1125 = vmul.f32 %v1124, %v1121
        %v1126 = vmul.f32 %v1124, %v1123
        %v1127 = vadd.f32 %v1117, %v1125
        %v1128 = vadd.f32 %v1118, %v1126
        %s1129 = sld [smem:[#allocation4 + $0x51]]
        %1130 = vrot.lane.b32.xlu0 %v1091, 124
        %v1131 = vpop.permute.xlu0 %1130
        %1132 = vrot.lane.b32.xlu0 %v1092, 124
        %v1133 = vpop.permute.xlu0 %1132
        %v1134 = vstv %s1129
        %v1135 = vmul.f32 %v1134, %v1131
        %v1136 = vmul.f32 %v1134, %v1133
        %v1137 = vadd.f32 %v1127, %v1135
        %v1138 = vadd.f32 %v1128, %v1136
        %s1139 = sld [smem:[#allocation4 + $0x52]]
        %1140 = vrot.lane.b32.xlu0 %v1091, 123
        %v1141 = vpop.permute.xlu0 %1140
        %1142 = vrot.lane.b32.xlu0 %v1092, 123
        %v1143 = vpop.permute.xlu0 %1142
        %v1144 = vstv %s1139
        %v1145 = vmul.f32 %v1144, %v1141
        %v1146 = vmul.f32 %v1144, %v1143
        %v1147 = vadd.f32 %v1137, %v1145
        %v1148 = vadd.f32 %v1138, %v1146
        %s1149 = sld [smem:[#allocation4 + $0x53]]
        %1150 = vrot.lane.b32.xlu0 %v1091, 122
        %v1151 = vpop.permute.xlu0 %1150
        %1152 = vrot.lane.b32.xlu0 %v1092, 122
        %v1153 = vpop.permute.xlu0 %1152
        %v1154 = vstv %s1149
        %v1155 = vmul.f32 %v1154, %v1151
        %v1156 = vmul.f32 %v1154, %v1153
        %v1157 = vadd.f32 %v1147, %v1155
        %v1158 = vadd.f32 %v1148, %v1156
        %v1159 = vld [vmem:[%s223 + $0x5] sm:$0xff]
        %v1160 = vld [vmem:[%s223 + $0xd] sm:$0xff]
        %s1161 = sld [smem:[#allocation4 + $0x54]]
        %v1162 = vstv %s1161
        %v1163 = vmul.f32 %v1162, %v1159
        %v1164 = vmul.f32 %v1162, %v1160
        %v1165 = vadd.f32 %v1157, %v1163
        %v1166 = vadd.f32 %v1158, %v1164
        %s1167 = sld [smem:[#allocation4 + $0x55]]
        %1168 = vrot.lane.b32.xlu0 %v1159, 127
        %v1169 = vpop.permute.xlu0 %1168
        %1170 = vrot.lane.b32.xlu0 %v1160, 127
        %v1171 = vpop.permute.xlu0 %1170
        %v1172 = vstv %s1167
        %v1173 = vmul.f32 %v1172, %v1169
        %v1174 = vmul.f32 %v1172, %v1171
        %v1175 = vadd.f32 %v1165, %v1173
        %v1176 = vadd.f32 %v1166, %v1174
        %s1177 = sld [smem:[#allocation4 + $0x56]]
        %1178 = vrot.lane.b32.xlu0 %v1159, 126
        %v1179 = vpop.permute.xlu0 %1178
        %1180 = vrot.lane.b32.xlu0 %v1160, 126
        %v1181 = vpop.permute.xlu0 %1180
        %v1182 = vstv %s1177
        %v1183 = vmul.f32 %v1182, %v1179
        %v1184 = vmul.f32 %v1182, %v1181
        %v1185 = vadd.f32 %v1175, %v1183
        %v1186 = vadd.f32 %v1176, %v1184
        %s1187 = sld [smem:[#allocation4 + $0x57]]
        %1188 = vrot.lane.b32.xlu0 %v1159, 125
        %v1189 = vpop.permute.xlu0 %1188
        %1190 = vrot.lane.b32.xlu0 %v1160, 125
        %v1191 = vpop.permute.xlu0 %1190
        %v1192 = vstv %s1187
        %v1193 = vmul.f32 %v1192, %v1189
        %v1194 = vmul.f32 %v1192, %v1191
        %v1195 = vadd.f32 %v1185, %v1193
        %v1196 = vadd.f32 %v1186, %v1194
        %s1197 = sld [smem:[#allocation4 + $0x58]]
        %1198 = vrot.lane.b32.xlu0 %v1159, 124
        %v1199 = vpop.permute.xlu0 %1198
        %1200 = vrot.lane.b32.xlu0 %v1160, 124
        %v1201 = vpop.permute.xlu0 %1200
        %v1202 = vstv %s1197
        %v1203 = vmul.f32 %v1202, %v1199
        %v1204 = vmul.f32 %v1202, %v1201
        %v1205 = vadd.f32 %v1195, %v1203
        %v1206 = vadd.f32 %v1196, %v1204
        %s1207 = sld [smem:[#allocation4 + $0x59]]
        %1208 = vrot.lane.b32.xlu0 %v1159, 123
        %v1209 = vpop.permute.xlu0 %1208
        %1210 = vrot.lane.b32.xlu0 %v1160, 123
        %v1211 = vpop.permute.xlu0 %1210
        %v1212 = vstv %s1207
        %v1213 = vmul.f32 %v1212, %v1209
        %v1214 = vmul.f32 %v1212, %v1211
        %v1215 = vadd.f32 %v1205, %v1213
        %v1216 = vadd.f32 %v1206, %v1214
        %s1217 = sld [smem:[#allocation4 + $0x5a]]
        %1218 = vrot.lane.b32.xlu0 %v1159, 122
        %v1219 = vpop.permute.xlu0 %1218
        %1220 = vrot.lane.b32.xlu0 %v1160, 122
        %v1221 = vpop.permute.xlu0 %1220
        %v1222 = vstv %s1217
        %v1223 = vmul.f32 %v1222, %v1219
        %v1224 = vmul.f32 %v1222, %v1221
        %v1225 = vadd.f32 %v1215, %v1223
        %v1226 = vadd.f32 %v1216, %v1224
        %v1227 = vld [vmem:[%s223 + $0x6] sm:$0xff]
        %v1228 = vld [vmem:[%s223 + $0xe] sm:$0xff]
        %s1229 = sld [smem:[#allocation4 + $0x5b]]
        %v1230 = vstv %s1229
        %v1231 = vmul.f32 %v1230, %v1227
        %v1232 = vmul.f32 %v1230, %v1228
        %v1233 = vadd.f32 %v1225, %v1231
        %v1234 = vadd.f32 %v1226, %v1232
        %s1235 = sld [smem:[#allocation4 + $0x5c]]
        %1236 = vrot.lane.b32.xlu0 %v1227, 127
        %v1237 = vpop.permute.xlu0 %1236
        %1238 = vrot.lane.b32.xlu0 %v1228, 127
        %v1239 = vpop.permute.xlu0 %1238
        %v1240 = vstv %s1235
        %v1241 = vmul.f32 %v1240, %v1237
        %v1242 = vmul.f32 %v1240, %v1239
        %v1243 = vadd.f32 %v1233, %v1241
        %v1244 = vadd.f32 %v1234, %v1242
        %s1245 = sld [smem:[#allocation4 + $0x5d]]
        %1246 = vrot.lane.b32.xlu0 %v1227, 126
        %v1247 = vpop.permute.xlu0 %1246
        %1248 = vrot.lane.b32.xlu0 %v1228, 126
        %v1249 = vpop.permute.xlu0 %1248
        %v1250 = vstv %s1245
        %v1251 = vmul.f32 %v1250, %v1247
        %v1252 = vmul.f32 %v1250, %v1249
        %v1253 = vadd.f32 %v1243, %v1251
        %v1254 = vadd.f32 %v1244, %v1252
        %s1255 = sld [smem:[#allocation4 + $0x5e]]
        %1256 = vrot.lane.b32.xlu0 %v1227, 125
        %v1257 = vpop.permute.xlu0 %1256
        %1258 = vrot.lane.b32.xlu0 %v1228, 125
        %v1259 = vpop.permute.xlu0 %1258
        %v1260 = vstv %s1255
        %v1261 = vmul.f32 %v1260, %v1257
        %v1262 = vmul.f32 %v1260, %v1259
        %v1263 = vadd.f32 %v1253, %v1261
        %v1264 = vadd.f32 %v1254, %v1262
        %s1265 = sld [smem:[#allocation4 + $0x5f]]
        %1266 = vrot.lane.b32.xlu0 %v1227, 124
        %v1267 = vpop.permute.xlu0 %1266
        %1268 = vrot.lane.b32.xlu0 %v1228, 124
        %v1269 = vpop.permute.xlu0 %1268
        %v1270 = vstv %s1265
        %v1271 = vmul.f32 %v1270, %v1267
        %v1272 = vmul.f32 %v1270, %v1269
        %v1273 = vadd.f32 %v1263, %v1271
        %v1274 = vadd.f32 %v1264, %v1272
        %s1275 = sld [smem:[#allocation4 + $0x60]]
        %1276 = vrot.lane.b32.xlu0 %v1227, 123
        %v1277 = vpop.permute.xlu0 %1276
        %1278 = vrot.lane.b32.xlu0 %v1228, 123
        %v1279 = vpop.permute.xlu0 %1278
        %v1280 = vstv %s1275
        %v1281 = vmul.f32 %v1280, %v1277
        %v1282 = vmul.f32 %v1280, %v1279
        %v1283 = vadd.f32 %v1273, %v1281
        %v1284 = vadd.f32 %v1274, %v1282
        %s1285 = sld [smem:[#allocation4 + $0x61]]
        %1286 = vrot.lane.b32.xlu0 %v1227, 122
        %v1287 = vpop.permute.xlu0 %1286
        %1288 = vrot.lane.b32.xlu0 %v1228, 122
        %v1289 = vpop.permute.xlu0 %1288
        %v1290 = vstv %s1285
        %v1291 = vmul.f32 %v1290, %v1287
        %v1292 = vmul.f32 %v1290, %v1289
        %v1293 = vadd.f32 %v1283, %v1291
        %v1294 = vadd.f32 %v1284, %v1292
        %s1295 = sld [smem:[#allocation4 + $0x62]]
        %v1296 = vadd.f32 %v819, %v1293
        %v1297 = vadd.f32 %v820, %v1294
        %v1298 = vstv %s1295
        %v1299 = vadd.f32 %v1296, %v1298
        %v1300 = vadd.f32 %v1297, %v1298
        %v1301 = vxor.u32 %v1299, 2147483648
        %v1302 = vxor.u32 %v1300, 2147483648
        %v1303 = vmul.f32 %v1301, 1.442695
        %v1304 = vpow.pop %v1303
        %v1305 = vmul.f32 %v1302, 1.442695
        %v1306 = vpow.pop %v1305
        %v1307 = vadd.f32 %v1304, 1.0
        %v1308 = vadd.f32 %v1306, 1.0
        %v1309 = vrcp.pop %v1307
        %v1310 = vmul.f32 1.0, %v1309
        %v1311 = vrcp.pop %v1308
        %v1312 = vmul.f32 1.0, %v1311
        %v1313 = vlaneseq
        %vm1314 = vcmp.ge.s32.totalorder %v1313, 0
        %vm1315 = vcmp.lt.s32.totalorder %v1313, 16
        %vm1316 = vmand %vm1314, %vm1315
        %1317 = vst.msk [vmem:[#allocation3] sm:$0x1] %vm1316, %v1310
        %v1320 = vunpack.c.l.s4 1966171168
        %v1321 = vunpack.c.0.s8 %v1320
        %v1322 = vlaneseq
        %v1323 = vshrl.u32 %v1322, 7
        %v1324 = vsub.s32 %v1321, %v1323
        %v1325 = vrot.slane %v1310, %v1324
        %v1326 = vcombine.high %v1325, %v1325
        %v1328 = vunpack.c.l.s4 1966171168
        %v1329 = vunpack.c.0.s8 %v1328
        %v1330 = vlaneseq
        %v1331 = vshrl.u32 %v1330, 7
        %v1332 = vsub.s32 %v1329, %v1331
        %v1333 = vrot.slane %v1325, %v1332
        %v1335 = vunpack.c.l.s4 1966171168
        %v1336 = vunpack.c.0.s8 %v1335
        %v1337 = vlaneseq
        %v1338 = vshrl.u32 %v1337, 7
        %v1339 = vsub.s32 %v1336, %v1338
        %v1340 = vrot.slane %v1326, %v1339
        %1341 = vrot.lane.b32.xlu0 %v1340, 16
        %v1342 = vpop.permute.xlu0 %1341
        %vm1344 = vcmp.ge.s32.totalorder %v1313, 16
        %vm1345 = vcmp.lt.s32.totalorder %v1313, 32
        %vm1346 = vmand %vm1344, %vm1345
        %1347 = vst.msk [vmem:[#allocation3] sm:$0x1] %vm1346, %v1342
        %v1348 = vcombine.high %v1333, %v1333
        %1349 = vrot.lane.b32.xlu0 %v1348, 32
        %v1350 = vpop.permute.xlu0 %1349
        %vm1352 = vcmp.ge.s32.totalorder %v1313, 32
        %vm1353 = vcmp.lt.s32.totalorder %v1313, 48
        %vm1354 = vmand %vm1352, %vm1353
        %1355 = vst.msk [vmem:[#allocation3] sm:$0x1] %vm1354, %v1350
        %v1356 = vcombine.high %v1340, %v1340
        %1357 = vrot.lane.b32.xlu0 %v1356, 48
        %v1358 = vpop.permute.xlu0 %1357
        %vm1360 = vcmp.ge.s32.totalorder %v1313, 48
        %vm1361 = vcmp.lt.s32.totalorder %v1313, 64
        %vm1362 = vmand %vm1360, %vm1361
        %1363 = vst.msk [vmem:[#allocation3] sm:$0x1] %vm1362, %v1358
        %v1364 = vcombine.high %v1310, %v1310
        %v1366 = vunpack.c.l.s4 1966171168
        %v1367 = vunpack.c.0.s8 %v1366
        %v1368 = vlaneseq
        %v1369 = vshrl.u32 %v1368, 7
        %v1370 = vsub.s32 %v1367, %v1369
        %v1371 = vrot.slane %v1364, %v1370
        %v1373 = vunpack.c.l.s4 1966171168
        %v1374 = vunpack.c.0.s8 %v1373
        %v1375 = vlaneseq
        %v1376 = vshrl.u32 %v1375, 7
        %v1377 = vsub.s32 %v1374, %v1376
        %v1378 = vrot.slane %v1371, %v1377
        %1379 = vrot.lane.b32.xlu0 %v1378, 64
        %v1380 = vpop.permute.xlu0 %1379
        %vm1382 = vcmp.ge.s32.totalorder %v1313, 64
        %vm1383 = vcmp.lt.s32.totalorder %v1313, 80
        %vm1384 = vmand %vm1382, %vm1383
        %1385 = vst.msk [vmem:[#allocation3] sm:$0x1] %vm1384, %v1380
        %v1386 = vcombine.high %v1371, %v1371
        %v1388 = vunpack.c.l.s4 1966171168
        %v1389 = vunpack.c.0.s8 %v1388
        %v1390 = vlaneseq
        %v1391 = vshrl.u32 %v1390, 7
        %v1392 = vsub.s32 %v1389, %v1391
        %v1393 = vrot.slane %v1386, %v1392
        %1394 = vrot.lane.b32.xlu0 %v1393, 80
        %v1395 = vpop.permute.xlu0 %1394
        %vm1397 = vcmp.ge.s32.totalorder %v1313, 80
        %vm1398 = vcmp.lt.s32.totalorder %v1313, 96
        %vm1399 = vmand %vm1397, %vm1398
        %1400 = vst.msk [vmem:[#allocation3] sm:$0x1] %vm1399, %v1395
        %v1401 = vcombine.high %v1378, %v1378
        %1402 = vrot.lane.b32.xlu0 %v1401, 96
        %v1403 = vpop.permute.xlu0 %1402
        %vm1405 = vcmp.ge.s32.totalorder %v1313, 96
        %vm1406 = vcmp.lt.s32.totalorder %v1313, 112
        %vm1407 = vmand %vm1405, %vm1406
        %1408 = vst.msk [vmem:[#allocation3] sm:$0x1] %vm1407, %v1403
        %v1409 = vcombine.high %v1393, %v1393
        %1410 = vrot.lane.b32.xlu0 %v1409, 112
        %v1411 = vpop.permute.xlu0 %1410
        %vm1413 = vcmp.ge.s32.totalorder %v1313, 112
        %vm1414 = vcmp.lt.s32.totalorder %v1313, 128
        %vm1415 = vmand %vm1413, %vm1414
        %1416 = vst.msk [vmem:[#allocation3] sm:$0x1] %vm1415, %v1411
        %1417 = vst.msk [vmem:[#allocation3 + $0x1] sm:$0x1] %vm1316, %v1312
        %v1420 = vunpack.c.l.s4 1966171168
        %v1421 = vunpack.c.0.s8 %v1420
        %v1422 = vlaneseq
        %v1423 = vshrl.u32 %v1422, 7
        %v1424 = vsub.s32 %v1421, %v1423
        %v1425 = vrot.slane %v1312, %v1424
        %v1426 = vcombine.high %v1425, %v1425
        %v1428 = vunpack.c.l.s4 1966171168
        %v1429 = vunpack.c.0.s8 %v1428
        %v1430 = vlaneseq
        %v1431 = vshrl.u32 %v1430, 7
        %v1432 = vsub.s32 %v1429, %v1431
        %v1433 = vrot.slane %v1425, %v1432
        %v1435 = vunpack.c.l.s4 1966171168
        %v1436 = vunpack.c.0.s8 %v1435
        %v1437 = vlaneseq
        %v1438 = vshrl.u32 %v1437, 7
        %v1439 = vsub.s32 %v1436, %v1438
        %v1440 = vrot.slane %v1426, %v1439
        %1441 = vrot.lane.b32.xlu0 %v1440, 16
        %v1442 = vpop.permute.xlu0 %1441
        %1444 = vst.msk [vmem:[#allocation3 + $0x1] sm:$0x1] %vm1346, %v1442
        %v1445 = vcombine.high %v1433, %v1433
        %1446 = vrot.lane.b32.xlu0 %v1445, 32
        %v1447 = vpop.permute.xlu0 %1446
        %1449 = vst.msk [vmem:[#allocation3 + $0x1] sm:$0x1] %vm1354, %v1447
        %v1450 = vcombine.high %v1440, %v1440
        %1451 = vrot.lane.b32.xlu0 %v1450, 48
        %v1452 = vpop.permute.xlu0 %1451
        %1454 = vst.msk [vmem:[#allocation3 + $0x1] sm:$0x1] %vm1362, %v1452
        %v1455 = vcombine.high %v1312, %v1312
        %v1457 = vunpack.c.l.s4 1966171168
        %v1458 = vunpack.c.0.s8 %v1457
        %v1459 = vlaneseq
        %v1460 = vshrl.u32 %v1459, 7
        %v1461 = vsub.s32 %v1458, %v1460
        %v1462 = vrot.slane %v1455, %v1461
        %v1464 = vunpack.c.l.s4 1966171168
        %v1465 = vunpack.c.0.s8 %v1464
        %v1466 = vlaneseq
        %v1467 = vshrl.u32 %v1466, 7
        %v1468 = vsub.s32 %v1465, %v1467
        %v1469 = vrot.slane %v1462, %v1468
        %1470 = vrot.lane.b32.xlu0 %v1469, 64
        %v1471 = vpop.permute.xlu0 %1470
        %1473 = vst.msk [vmem:[#allocation3 + $0x1] sm:$0x1] %vm1384, %v1471
        %v1474 = vcombine.high %v1462, %v1462
        %v1476 = vunpack.c.l.s4 1966171168
        %v1477 = vunpack.c.0.s8 %v1476
        %v1478 = vlaneseq
        %v1479 = vshrl.u32 %v1478, 7
        %v1480 = vsub.s32 %v1477, %v1479
        %v1481 = vrot.slane %v1474, %v1480
        %1482 = vrot.lane.b32.xlu0 %v1481, 80
        %v1483 = vpop.permute.xlu0 %1482
        %1485 = vst.msk [vmem:[#allocation3 + $0x1] sm:$0x1] %vm1399, %v1483
        %v1486 = vcombine.high %v1469, %v1469
        %1487 = vrot.lane.b32.xlu0 %v1486, 96
        %v1488 = vpop.permute.xlu0 %1487
        %1490 = vst.msk [vmem:[#allocation3 + $0x1] sm:$0x1] %vm1407, %v1488
        %v1491 = vcombine.high %v1481, %v1481
        %1492 = vrot.lane.b32.xlu0 %v1491, 112
        %v1493 = vpop.permute.xlu0 %1492
        %1495 = vst.msk [vmem:[#allocation3 + $0x1] sm:$0x1] %vm1415, %v1493
        %v1496 = vld [vmem:[#allocation3] sm:$0x3]
        %v1498 = vlaneseq
        %v1499 = vshrl.u32 %v1498, 7
        %v1500 = vsub.s32 0, %v1499
        %v1501 = vrot.slane %v1496, %v1500
        %v1502 = vlaneseq
        %v1503 = vshrl.u32 %v1502, 7
        %v1504 = vsub.s32 1, %v1503
        %v1505 = vrot.slane %v1496, %v1504
        %v1506 = vld [vmem:[%s150] sm:$0xff]
        %v1507 = vcombine.low %v1501, %v1505
        %v1509 = vmul.f32 %v1506, %v1507
        %1510 = vst [vmem:[%s171] sm:$0xff] %v1509
        %s1511 = sand.u32 %s75, 1
        %s1512 = scalar_lea.sflag [#allocation6], %s1511
        %s1513 = sand.u32 %s75, 1
        %s1514 = smul.addr %s1513, 8
        %s1515 = scalar_lea.vmem [#allocation9], %s1514
        // Predicated region
        $region37: #{tpu_custom_call.1} parent=27 // pred_check
          %p1516 = pneg %p85
        $region38: #{tpu_custom_call.1} parent=27 // pred_check_branch
          %1518 = sbr.rel (%p1516) target = $region40
        $region39: #{tpu_custom_call.1} parent=27 // pred_region
          %s1520 = ssub.s32 128, 128
          %1521 = vsyncadd %s1512, %s1520
          %s1522 = smul.addr %s20, 2
          %s1523 = smul.addr %s1522, 64
          %s1524 = scalar_lea.hbm %s2, %s1523
          %s1526 = sshll.u32 %s1515, 4
          %s1527 = int_to_ptr.vmem [resolvable:$true] %s1526
          %1529 = dma.vmem_to_hbm [thread:$0]  %s1527, 128, %s1524, %s1512
        $region40: #{tpu_custom_call.1} parent=27 // pred_fallthru
          _
      $region28: #{tpu_custom_call.1} parent=5 // pred_fallthru
        _
      %p1530 = scmp.le.s32.totalorder 2, %s15
      // Predicated region
      $region41: #{tpu_custom_call.1} parent=5 // pred_check
        %p1531 = pneg %p1530
      $region42: #{tpu_custom_call.1} parent=5 // pred_check_branch
        %1533 = sbr.rel (%p1531) target = $region44
      $region43: #{tpu_custom_call.1} parent=5 // pred_region
        %s1534 = ssub.s32 %s15, 2
        // Predicated region
        $region45: #{tpu_custom_call.1} parent=43 // pred_check
          %p1535 = pneg %p91
        $region46: #{tpu_custom_call.1} parent=43 // pred_check_branch
          %1537 = sbr.rel (%p1535) target = $region48
        $region47: #{tpu_custom_call.1} parent=43 // pred_region
          %s1538 = sand.u32 %s76, 1
          %s1539 = scalar_lea.sflag [#allocation6], %s1538
          %s1540 = sand.u32 %s76, 1
          %s1541 = smul.addr %s1540, 8
          %s1542 = scalar_lea.vmem [#allocation9], %s1541
          %1543 = dma.done %s1539, 128
        $region48: #{tpu_custom_call.1} parent=43 // pred_fallthru
          _
      $region44: #{tpu_custom_call.1} parent=5 // pred_fallthru
        _
    $region6: #{tpu_custom_call.1} parent=1 // loop_footer
      %s19 = sadd.s32 1, %s15
    $region7: #{tpu_custom_call.1} parent=1 // loop_footer_branch
      %14 = sbr.rel target = $region3
    $region8: #{tpu_custom_call.1} parent=1 // loop_exit
      _
    %1544 = vsyncpa [#allocation5], 1
    %s1545 = scalar_lea.sflag [#allocation5], 1
    %1546 = vsyncpa %s1545, 1
    %1547 = vsyncpa [#allocation6], 1
    %s1548 = scalar_lea.sflag [#allocation6], 1
    %1549 = vsyncpa %s1548, 1
    %1550 = vsyncpa [#allocation7], 1
    %s1551 = scalar_lea.sflag [#allocation7], 1
    %1552 = vsyncpa %s1551, 1

</llo_original>
